<compile_context>
chip_gen: v5e
topology: v5e:2x2
jax: 0.10.0
libtpu: 0.0.40
codegen_flags: <defaults>
</compile_context>

<pallas_src>
import functools
import numpy as np
import jax
import jax.numpy as jnp
from jax.experimental import pallas as pl
from jax.experimental.pallas import tpu as pltpu


def _hydra_branch_kernel(x_ref, w_ref, out_ref, *, d, L_out, k, compute_dtype):
    """One (batch-tile, conv-group) grid step.

    x_ref  : (TN, Lp)   zero-padded series of this group for TN batch rows
    w_ref  : (k, 9)     this group's k dilated filters
    out_ref: (TN, 2, k) [:,0]=count_max (sum of winning max values per filter)
                        [:,1]=count_min (count of winning min time steps per filter)
    """
    TN, Lp = x_ref.shape
    xg = x_ref[...].astype(compute_dtype)                       # (TN, Lp)

    # im2col: the 9 dilated taps of the cross-correlation (conv1d = no flip),
    # stacked on the sublane axis -> (TN, 9, L_out).
    taps = jnp.stack([xg[:, r * d: r * d + L_out] for r in range(9)], axis=1)

    # Grouped conv as a batched matmul on the MXU:
    #   (TN, k, 9) @ (TN, 9, L_out) -> (TN, k, L_out), f32 accumulation.
    wg = jnp.broadcast_to(w_ref[...].astype(compute_dtype)[None, :, :], (TN, k, 9))
    z = jnp.einsum("nkr,nrl->nkl", wg, taps,
                   preferred_element_type=jnp.float32)          # (TN, k, L_out) f32

    # Running max/min + argmax/argmin over the k filters.
    # Strict >/< keeps the first occurrence (torch.max/min index semantics).
    maxv = z[:, 0, :]
    minv = z[:, 0, :]
    amax = jnp.zeros((TN, L_out), jnp.int32)
    amin = jnp.zeros((TN, L_out), jnp.int32)
    for j in range(1, k):
        zj = z[:, j, :]
        gt = zj > maxv
        amax = jnp.where(gt, j, amax)
        maxv = jnp.where(gt, zj, maxv)
        lt = zj < minv
        amin = jnp.where(lt, j, amin)
        minv = jnp.where(lt, zj, minv)

    # scatter_add_ pooling: per-filter masked lane reductions over time
    # (no (TN, k, L_out) one-hot/iota intermediate).
    cm_cols = []
    cn_cols = []
    for j in range(k):
        cm_cols.append(jnp.sum(jnp.where(amax == j, maxv, 0.0),
                               axis=-1, keepdims=True))          # (TN, 1)
        cn_cols.append(jnp.sum(jnp.where(amin == j, 1.0, 0.0),
                               axis=-1, keepdims=True))          # (TN, 1)
    out_ref[:, 0, :] = jnp.concatenate(cm_cols, axis=-1)         # (TN, k)
    out_ref[:, 1, :] = jnp.concatenate(cn_cols, axis=-1)         # (TN, k)


def _pick_batch_tile(n, lp):
    # Keep the per-step working set (input tile + im2col taps + f32 conv output +
    # argmax bookkeeping ~ 24 * TN * Lp * 4 bytes) well under the 32 MiB scoped
    # VMEM default (and v7x's 64 MiB physical VMEM).
    budget_rows = max(8, (8 * 1024 * 1024) // (24 * 4 * lp))
    for t in (64, 32, 16, 8):
        if t <= budget_rows and n % t == 0:
            return t
    return n
    # TODO(synk): for very long series also tile the time axis on the grid with a
    # halo of 8*d and cm/cn accumulator scratch.


def hydra_branch(xpad_hnl, w_hk9, *, d, L_out, compute_dtype=jnp.bfloat16):
    """xpad_hnl: (h, N, Lp) zero-padded grouped inputs; w_hk9: (h, k, 9) filters."""
    h, N, Lp = xpad_hnl.shape
    k = w_hk9.shape[1]
    TN = _pick_batch_tile(N, Lp)
    kern = functools.partial(_hydra_branch_kernel, d=d, L_out=L_out, k=k,
                             compute_dtype=compute_dtype)
    return pl.pallas_call(
        kern,
        out_shape=jax.ShapeDtypeStruct((N, h, 2, k), jnp.float32),
        grid=(N // TN, h),
        in_specs=[
            # one group's (TN, Lp) slab per step; group dim squeezed out
            pl.BlockSpec((None, TN, Lp), lambda ni, gi: (gi, ni, 0)),
            # this group's k filters, small VMEM tile
            pl.BlockSpec((None, k, 9), lambda ni, gi: (gi, 0, 0)),
        ],
        out_specs=pl.BlockSpec((TN, None, 2, k), lambda ni, gi: (ni, gi, 0, 0)),
        compiler_params=pltpu.CompilerParams(
            dimension_semantics=("parallel", "parallel")),
    )(xpad_hnl, w_hk9)


class HydraMultivariatePallas:
    """JAX/Pallas port of HydraMultivariateGPU (forward pass only)."""

    def __init__(self, input_length, num_channels, k=8, g=64, max_num_channels=8,
                 seed=0, compute_dtype=jnp.bfloat16):
        rng = np.random.RandomState(seed)   # deterministic synthetic parameters
        self.k = k
        self.g = g
        self.compute_dtype = compute_dtype
        max_exponent = np.log2((input_length - 1) / (9 - 1))
        self.dilations = (2 ** np.arange(int(max_exponent) + 1)).astype(np.int64)
        self.num_dilations = len(self.dilations)
        self.paddings = ((9 - 1) * self.dilations) // 2
        self.divisor = min(2, self.g)
        self.h = self.g // self.divisor
        W = rng.randn(self.num_dilations, self.divisor, self.k * self.h, 1, 9).astype(np.float32)
        W = W - W.mean(-1, keepdims=True)
        W = W / np.abs(W).sum(-1, keepdims=True)
        # grouped-conv out-channel c = gi*k + j  ->  store as (nd, divisor, h, k, 9)
        self.W = jnp.asarray(
            W[:, :, :, 0, :].reshape(self.num_dilations, self.divisor, self.h, self.k, 9),
            dtype=jnp.float32)
        self.num_features = self.num_dilations * self.divisor * self.k * self.h * 2
        num_channels_per = int(np.clip(num_channels // 2, 2, max_num_channels))
        self.I = rng.randint(
            0, num_channels, (self.num_dilations, self.divisor, self.h, num_channels_per))

    def __call__(self, X):
        N, C, L = X.shape
        # TODO(synk): the channel gather+sum, diff and zero-pad are XLA glue; they
        # could be fused into the kernel with scalar-prefetched channel indices to
        # cut one HBM round trip per branch, and the two divisor branches could
        # share a single pallas_call per dilation.
        diff_X = X[:, :, 1:] - X[:, :, :-1] if self.divisor > 1 else None   # torch.diff
        parts = []
        for di in range(self.num_dilations):
            d = int(self.dilations[di])
            p = int(self.paddings[di])
            for dj in range(self.divisor):
                src = X if dj == 0 else diff_X
                L_in = src.shape[-1]
                idx = self.I[di, dj]                             # (h, ncp) static ints
                Xg = src[:, idx, :].sum(axis=2)                  # (N, h, L_in) gather+sum
                Xg = jnp.moveaxis(Xg, 1, 0)                      # (h, N, L_in) group-major
                Xpad = jnp.pad(Xg, ((0, 0), (0, 0), (p, p)))     # 'same' conv zero pad
                out = hydra_branch(Xpad, self.W[di, dj], d=d, L_out=L_in,
                                   compute_dtype=self.compute_dtype)    # (N, h, 2, k)
                parts.append(out[:, :, 0, :].reshape(N, self.h * self.k))  # count_max
                parts.append(out[:, :, 1, :].reshape(N, self.h * self.k))  # count_min
        return jnp.concatenate(parts, axis=1)                    # (N, num_features)


if __name__ == "__main__":
    key = jax.random.PRNGKey(0)
    N, C, L = 2, 4, 32
    X = jax.random.normal(key, (N, C, L), dtype=jnp.float32)

    model = HydraMultivariatePallas(input_length=L, num_channels=C,
                                    k=8, g=8, max_num_channels=8, seed=0)
    fwd = jax.jit(lambda x: model(x))
    Z = jax.block_until_ready(fwd(X))
    assert Z.shape == (N, model.num_features), Z.shape
    assert bool(jnp.all(jnp.isfinite(Z)))
    print("KERNEL_OK")
</pallas_src>

<mosaic_0001>
module attributes {stable_mosaic.version = 11 : i64} {
  func.func @_hydra_branch_kernel(%arg0: i32, %arg1: i32, %arg2: memref<1x2x39xf32, #tpu.memory_space<vmem>>, %arg3: memref<1x8x9xf32, #tpu.memory_space<vmem>>, %arg4: memref<2x1x2x8xf32, #tpu.memory_space<vmem>>) attributes {dimension_semantics = [#tpu.dimension_semantics<parallel>, #tpu.dimension_semantics<parallel>], iteration_bounds = array<i64: 1, 4>, scalar_prefetch = 0 : i64, scratch_operands = 0 : i64, tpu.core_type = #tpu.core_type<tc>, window_params = [{transform_indices = @transform_0, window_bounds = array<i64: 1, 2, 39>}, {transform_indices = @transform_1, window_bounds = array<i64: 1, 8, 9>}, {transform_indices = @transform_2, window_bounds = array<i64: 2, 1, 2, 8>}]} {
    %c0 = arith.constant 0 : index
    %c0_0 = arith.constant 0 : index
    %c0_1 = arith.constant 0 : index
    %0 = vector.load %arg2[%c0, %c0_0, %c0_1] : memref<1x2x39xf32, #tpu.memory_space<vmem>>, vector<1x2x39xf32>
    %1 = vector.shape_cast %0 : vector<1x2x39xf32> to vector<2x39xf32>
    %2 = arith.truncf %1 : vector<2x39xf32> to vector<2x39xbf16>
    %3 = vector.extract_strided_slice %2 {offsets = [0, 0], sizes = [2, 31], strides = [1, 1]} : vector<2x39xbf16> to vector<2x31xbf16>
    %4 = vector.extract_strided_slice %2 {offsets = [0, 1], sizes = [2, 31], strides = [1, 1]} : vector<2x39xbf16> to vector<2x31xbf16>
    %5 = vector.extract_strided_slice %2 {offsets = [0, 2], sizes = [2, 31], strides = [1, 1]} : vector<2x39xbf16> to vector<2x31xbf16>
    %6 = vector.extract_strided_slice %2 {offsets = [0, 3], sizes = [2, 31], strides = [1, 1]} : vector<2x39xbf16> to vector<2x31xbf16>
    %7 = vector.extract_strided_slice %2 {offsets = [0, 4], sizes = [2, 31], strides = [1, 1]} : vector<2x39xbf16> to vector<2x31xbf16>
    %8 = vector.extract_strided_slice %2 {offsets = [0, 5], sizes = [2, 31], strides = [1, 1]} : vector<2x39xbf16> to vector<2x31xbf16>
    %9 = vector.extract_strided_slice %2 {offsets = [0, 6], sizes = [2, 31], strides = [1, 1]} : vector<2x39xbf16> to vector<2x31xbf16>
    %10 = vector.extract_strided_slice %2 {offsets = [0, 7], sizes = [2, 31], strides = [1, 1]} : vector<2x39xbf16> to vector<2x31xbf16>
    %11 = vector.extract_strided_slice %2 {offsets = [0, 8], sizes = [2, 31], strides = [1, 1]} : vector<2x39xbf16> to vector<2x31xbf16>
    %12 = vector.shape_cast %3 : vector<2x31xbf16> to vector<2x1x31xbf16>
    %13 = vector.shape_cast %4 : vector<2x31xbf16> to vector<2x1x31xbf16>
    %14 = vector.shape_cast %5 : vector<2x31xbf16> to vector<2x1x31xbf16>
    %15 = vector.shape_cast %6 : vector<2x31xbf16> to vector<2x1x31xbf16>
    %16 = vector.shape_cast %7 : vector<2x31xbf16> to vector<2x1x31xbf16>
    %17 = vector.shape_cast %8 : vector<2x31xbf16> to vector<2x1x31xbf16>
    %18 = vector.shape_cast %9 : vector<2x31xbf16> to vector<2x1x31xbf16>
    %19 = vector.shape_cast %10 : vector<2x31xbf16> to vector<2x1x31xbf16>
    %20 = vector.shape_cast %11 : vector<2x31xbf16> to vector<2x1x31xbf16>
    %21 = tpu.concatenate %12, %13, %14, %15, %16, %17, %18, %19, %20 in 1 : vector<2x1x31xbf16>, vector<2x1x31xbf16>, vector<2x1x31xbf16>, vector<2x1x31xbf16>, vector<2x1x31xbf16>, vector<2x1x31xbf16>, vector<2x1x31xbf16>, vector<2x1x31xbf16>, vector<2x1x31xbf16> -> vector<2x9x31xbf16>
    %c0_2 = arith.constant 0 : index
    %c0_3 = arith.constant 0 : index
    %c0_4 = arith.constant 0 : index
    %22 = vector.load %arg3[%c0_2, %c0_3, %c0_4] : memref<1x8x9xf32, #tpu.memory_space<vmem>>, vector<1x8x9xf32>
    %23 = vector.shape_cast %22 : vector<1x8x9xf32> to vector<8x9xf32>
    %24 = arith.truncf %23 : vector<8x9xf32> to vector<8x9xbf16>
    %25 = vector.shape_cast %24 : vector<8x9xbf16> to vector<1x8x9xbf16>
    %26 = vector.shape_cast %25 : vector<1x8x9xbf16> to vector<1x8x9xbf16>
    %27 = vector.broadcast %26 : vector<1x8x9xbf16> to vector<2x8x9xbf16>
    "tpu.trace_start"() <{level = 10 : i32, message = "nkr,nrl->nkl"}> : () -> ()
    %cst = arith.constant dense<0.000000e+00> : vector<2x8x31xf32>
    %28 = tpu.matmul %27, %21, %cst {dimension_numbers = #tpu.dot_dimension_numbers<[2], [1], [1], [2], [0, 0, 0, 1, 1, 2], [0], [0]>} : vector<2x8x9xbf16>, vector<2x9x31xbf16>, vector<2x8x31xf32> -> vector<2x8x31xf32>
    "tpu.trace_stop"() : () -> ()
    %29 = vector.extract_strided_slice %28 {offsets = [0, 0, 0], sizes = [2, 1, 31], strides = [1, 1, 1]} : vector<2x8x31xf32> to vector<2x1x31xf32>
    %30 = vector.shape_cast %29 : vector<2x1x31xf32> to vector<2x31xf32>
    %31 = vector.extract_strided_slice %28 {offsets = [0, 0, 0], sizes = [2, 1, 31], strides = [1, 1, 1]} : vector<2x8x31xf32> to vector<2x1x31xf32>
    %32 = vector.shape_cast %31 : vector<2x1x31xf32> to vector<2x31xf32>
    %c0_i32 = arith.constant 0 : i32
    %33 = vector.broadcast %c0_i32 : i32 to vector<2x31xi32>
    %c0_i32_5 = arith.constant 0 : i32
    %34 = vector.broadcast %c0_i32_5 : i32 to vector<2x31xi32>
    %35 = vector.extract_strided_slice %28 {offsets = [0, 1, 0], sizes = [2, 1, 31], strides = [1, 1, 1]} : vector<2x8x31xf32> to vector<2x1x31xf32>
    %36 = vector.shape_cast %35 : vector<2x1x31xf32> to vector<2x31xf32>
    %37 = arith.cmpf ogt, %36, %30 : vector<2x31xf32>
    %c1_i32 = arith.constant 1 : i32
    %38 = vector.broadcast %c1_i32 : i32 to vector<2x31xi32>
    %39 = arith.select %37, %38, %33 : vector<2x31xi1>, vector<2x31xi32>
    %40 = arith.select %37, %36, %30 : vector<2x31xi1>, vector<2x31xf32>
    %41 = arith.cmpf olt, %36, %32 : vector<2x31xf32>
    %c1_i32_6 = arith.constant 1 : i32
    %42 = vector.broadcast %c1_i32_6 : i32 to vector<2x31xi32>
    %43 = arith.select %41, %42, %34 : vector<2x31xi1>, vector<2x31xi32>
    %44 = arith.select %41, %36, %32 : vector<2x31xi1>, vector<2x31xf32>
    %45 = vector.extract_strided_slice %28 {offsets = [0, 2, 0], sizes = [2, 1, 31], strides = [1, 1, 1]} : vector<2x8x31xf32> to vector<2x1x31xf32>
    %46 = vector.shape_cast %45 : vector<2x1x31xf32> to vector<2x31xf32>
    %47 = arith.cmpf ogt, %46, %40 : vector<2x31xf32>
    %c2_i32 = arith.constant 2 : i32
    %48 = vector.broadcast %c2_i32 : i32 to vector<2x31xi32>
    %49 = arith.select %47, %48, %39 : vector<2x31xi1>, vector<2x31xi32>
    %50 = arith.select %47, %46, %40 : vector<2x31xi1>, vector<2x31xf32>
    %51 = arith.cmpf olt, %46, %44 : vector<2x31xf32>
    %c2_i32_7 = arith.constant 2 : i32
    %52 = vector.broadcast %c2_i32_7 : i32 to vector<2x31xi32>
    %53 = arith.select %51, %52, %43 : vector<2x31xi1>, vector<2x31xi32>
    %54 = arith.select %51, %46, %44 : vector<2x31xi1>, vector<2x31xf32>
    %55 = vector.extract_strided_slice %28 {offsets = [0, 3, 0], sizes = [2, 1, 31], strides = [1, 1, 1]} : vector<2x8x31xf32> to vector<2x1x31xf32>
    %56 = vector.shape_cast %55 : vector<2x1x31xf32> to vector<2x31xf32>
    %57 = arith.cmpf ogt, %56, %50 : vector<2x31xf32>
    %c3_i32 = arith.constant 3 : i32
    %58 = vector.broadcast %c3_i32 : i32 to vector<2x31xi32>
    %59 = arith.select %57, %58, %49 : vector<2x31xi1>, vector<2x31xi32>
    %60 = arith.select %57, %56, %50 : vector<2x31xi1>, vector<2x31xf32>
    %61 = arith.cmpf olt, %56, %54 : vector<2x31xf32>
    %c3_i32_8 = arith.constant 3 : i32
    %62 = vector.broadcast %c3_i32_8 : i32 to vector<2x31xi32>
    %63 = arith.select %61, %62, %53 : vector<2x31xi1>, vector<2x31xi32>
    %64 = arith.select %61, %56, %54 : vector<2x31xi1>, vector<2x31xf32>
    %65 = vector.extract_strided_slice %28 {offsets = [0, 4, 0], sizes = [2, 1, 31], strides = [1, 1, 1]} : vector<2x8x31xf32> to vector<2x1x31xf32>
    %66 = vector.shape_cast %65 : vector<2x1x31xf32> to vector<2x31xf32>
    %67 = arith.cmpf ogt, %66, %60 : vector<2x31xf32>
    %c4_i32 = arith.constant 4 : i32
    %68 = vector.broadcast %c4_i32 : i32 to vector<2x31xi32>
    %69 = arith.select %67, %68, %59 : vector<2x31xi1>, vector<2x31xi32>
    %70 = arith.select %67, %66, %60 : vector<2x31xi1>, vector<2x31xf32>
    %71 = arith.cmpf olt, %66, %64 : vector<2x31xf32>
    %c4_i32_9 = arith.constant 4 : i32
    %72 = vector.broadcast %c4_i32_9 : i32 to vector<2x31xi32>
    %73 = arith.select %71, %72, %63 : vector<2x31xi1>, vector<2x31xi32>
    %74 = arith.select %71, %66, %64 : vector<2x31xi1>, vector<2x31xf32>
    %75 = vector.extract_strided_slice %28 {offsets = [0, 5, 0], sizes = [2, 1, 31], strides = [1, 1, 1]} : vector<2x8x31xf32> to vector<2x1x31xf32>
    %76 = vector.shape_cast %75 : vector<2x1x31xf32> to vector<2x31xf32>
    %77 = arith.cmpf ogt, %76, %70 : vector<2x31xf32>
    %c5_i32 = arith.constant 5 : i32
    %78 = vector.broadcast %c5_i32 : i32 to vector<2x31xi32>
    %79 = arith.select %77, %78, %69 : vector<2x31xi1>, vector<2x31xi32>
    %80 = arith.select %77, %76, %70 : vector<2x31xi1>, vector<2x31xf32>
    %81 = arith.cmpf olt, %76, %74 : vector<2x31xf32>
    %c5_i32_10 = arith.constant 5 : i32
    %82 = vector.broadcast %c5_i32_10 : i32 to vector<2x31xi32>
    %83 = arith.select %81, %82, %73 : vector<2x31xi1>, vector<2x31xi32>
    %84 = arith.select %81, %76, %74 : vector<2x31xi1>, vector<2x31xf32>
    %85 = vector.extract_strided_slice %28 {offsets = [0, 6, 0], sizes = [2, 1, 31], strides = [1, 1, 1]} : vector<2x8x31xf32> to vector<2x1x31xf32>
    %86 = vector.shape_cast %85 : vector<2x1x31xf32> to vector<2x31xf32>
    %87 = arith.cmpf ogt, %86, %80 : vector<2x31xf32>
    %c6_i32 = arith.constant 6 : i32
    %88 = vector.broadcast %c6_i32 : i32 to vector<2x31xi32>
    %89 = arith.select %87, %88, %79 : vector<2x31xi1>, vector<2x31xi32>
    %90 = arith.select %87, %86, %80 : vector<2x31xi1>, vector<2x31xf32>
    %91 = arith.cmpf olt, %86, %84 : vector<2x31xf32>
    %c6_i32_11 = arith.constant 6 : i32
    %92 = vector.broadcast %c6_i32_11 : i32 to vector<2x31xi32>
    %93 = arith.select %91, %92, %83 : vector<2x31xi1>, vector<2x31xi32>
    %94 = arith.select %91, %86, %84 : vector<2x31xi1>, vector<2x31xf32>
    %95 = vector.extract_strided_slice %28 {offsets = [0, 7, 0], sizes = [2, 1, 31], strides = [1, 1, 1]} : vector<2x8x31xf32> to vector<2x1x31xf32>
    %96 = vector.shape_cast %95 : vector<2x1x31xf32> to vector<2x31xf32>
    %97 = arith.cmpf ogt, %96, %90 : vector<2x31xf32>
    %c7_i32 = arith.constant 7 : i32
    %98 = vector.broadcast %c7_i32 : i32 to vector<2x31xi32>
    %99 = arith.select %97, %98, %89 : vector<2x31xi1>, vector<2x31xi32>
    %100 = arith.select %97, %96, %90 : vector<2x31xi1>, vector<2x31xf32>
    %101 = arith.cmpf olt, %96, %94 : vector<2x31xf32>
    %c7_i32_12 = arith.constant 7 : i32
    %102 = vector.broadcast %c7_i32_12 : i32 to vector<2x31xi32>
    %103 = arith.select %101, %102, %93 : vector<2x31xi1>, vector<2x31xi32>
    %c0_i32_13 = arith.constant 0 : i32
    %104 = vector.broadcast %c0_i32_13 : i32 to vector<2x31xi32>
    %105 = arith.cmpi eq, %99, %104 : vector<2x31xi32>
    %cst_14 = arith.constant 0.000000e+00 : f32
    %106 = vector.broadcast %cst_14 : f32 to vector<2x31xf32>
    %107 = arith.select %105, %100, %106 : vector<2x31xi1>, vector<2x31xf32>
    %cst_15 = arith.constant dense<0.000000e+00> : vector<2xf32>
    %108 = vector.multi_reduction <add>, %107, %cst_15 [1] : vector<2x31xf32> to vector<2xf32>
    %109 = vector.shape_cast %108 : vector<2xf32> to vector<2x1xf32>
    %c0_i32_16 = arith.constant 0 : i32
    %110 = vector.broadcast %c0_i32_16 : i32 to vector<2x31xi32>
    %111 = arith.cmpi eq, %103, %110 : vector<2x31xi32>
    %cst_17 = arith.constant 1.000000e+00 : f32
    %cst_18 = arith.constant 0.000000e+00 : f32
    %112 = vector.broadcast %cst_17 : f32 to vector<2x31xf32>
    %113 = vector.broadcast %cst_18 : f32 to vector<2x31xf32>
    %114 = arith.select %111, %112, %113 : vector<2x31xi1>, vector<2x31xf32>
    %cst_19 = arith.constant dense<0.000000e+00> : vector<2xf32>
    %115 = vector.multi_reduction <add>, %114, %cst_19 [1] : vector<2x31xf32> to vector<2xf32>
    %116 = vector.shape_cast %115 : vector<2xf32> to vector<2x1xf32>
    %c1_i32_20 = arith.constant 1 : i32
    %117 = vector.broadcast %c1_i32_20 : i32 to vector<2x31xi32>
    %118 = arith.cmpi eq, %99, %117 : vector<2x31xi32>
    %cst_21 = arith.constant 0.000000e+00 : f32
    %119 = vector.broadcast %cst_21 : f32 to vector<2x31xf32>
    %120 = arith.select %118, %100, %119 : vector<2x31xi1>, vector<2x31xf32>
    %cst_22 = arith.constant dense<0.000000e+00> : vector<2xf32>
    %121 = vector.multi_reduction <add>, %120, %cst_22 [1] : vector<2x31xf32> to vector<2xf32>
    %122 = vector.shape_cast %121 : vector<2xf32> to vector<2x1xf32>
    %c1_i32_23 = arith.constant 1 : i32
    %123 = vector.broadcast %c1_i32_23 : i32 to vector<2x31xi32>
    %124 = arith.cmpi eq, %103, %123 : vector<2x31xi32>
    %cst_24 = arith.constant 1.000000e+00 : f32
    %cst_25 = arith.constant 0.000000e+00 : f32
    %125 = vector.broadcast %cst_24 : f32 to vector<2x31xf32>
    %126 = vector.broadcast %cst_25 : f32 to vector<2x31xf32>
    %127 = arith.select %124, %125, %126 : vector<2x31xi1>, vector<2x31xf32>
    %cst_26 = arith.constant dense<0.000000e+00> : vector<2xf32>
    %128 = vector.multi_reduction <add>, %127, %cst_26 [1] : vector<2x31xf32> to vector<2xf32>
    %129 = vector.shape_cast %128 : vector<2xf32> to vector<2x1xf32>
    %c2_i32_27 = arith.constant 2 : i32
    %130 = vector.broadcast %c2_i32_27 : i32 to vector<2x31xi32>
    %131 = arith.cmpi eq, %99, %130 : vector<2x31xi32>
    %cst_28 = arith.constant 0.000000e+00 : f32
    %132 = vector.broadcast %cst_28 : f32 to vector<2x31xf32>
    %133 = arith.select %131, %100, %132 : vector<2x31xi1>, vector<2x31xf32>
    %cst_29 = arith.constant dense<0.000000e+00> : vector<2xf32>
    %134 = vector.multi_reduction <add>, %133, %cst_29 [1] : vector<2x31xf32> to vector<2xf32>
    %135 = vector.shape_cast %134 : vector<2xf32> to vector<2x1xf32>
    %c2_i32_30 = arith.constant 2 : i32
    %136 = vector.broadcast %c2_i32_30 : i32 to vector<2x31xi32>
    %137 = arith.cmpi eq, %103, %136 : vector<2x31xi32>
    %cst_31 = arith.constant 1.000000e+00 : f32
    %cst_32 = arith.constant 0.000000e+00 : f32
    %138 = vector.broadcast %cst_31 : f32 to vector<2x31xf32>
    %139 = vector.broadcast %cst_32 : f32 to vector<2x31xf32>
    %140 = arith.select %137, %138, %139 : vector<2x31xi1>, vector<2x31xf32>
    %cst_33 = arith.constant dense<0.000000e+00> : vector<2xf32>
    %141 = vector.multi_reduction <add>, %140, %cst_33 [1] : vector<2x31xf32> to vector<2xf32>
    %142 = vector.shape_cast %141 : vector<2xf32> to vector<2x1xf32>
    %c3_i32_34 = arith.constant 3 : i32
    %143 = vector.broadcast %c3_i32_34 : i32 to vector<2x31xi32>
    %144 = arith.cmpi eq, %99, %143 : vector<2x31xi32>
    %cst_35 = arith.constant 0.000000e+00 : f32
    %145 = vector.broadcast %cst_35 : f32 to vector<2x31xf32>
    %146 = arith.select %144, %100, %145 : vector<2x31xi1>, vector<2x31xf32>
    %cst_36 = arith.constant dense<0.000000e+00> : vector<2xf32>
    %147 = vector.multi_reduction <add>, %146, %cst_36 [1] : vector<2x31xf32> to vector<2xf32>
    %148 = vector.shape_cast %147 : vector<2xf32> to vector<2x1xf32>
    %c3_i32_37 = arith.constant 3 : i32
    %149 = vector.broadcast %c3_i32_37 : i32 to vector<2x31xi32>
    %150 = arith.cmpi eq, %103, %149 : vector<2x31xi32>
    %cst_38 = arith.constant 1.000000e+00 : f32
    %cst_39 = arith.constant 0.000000e+00 : f32
    %151 = vector.broadcast %cst_38 : f32 to vector<2x31xf32>
    %152 = vector.broadcast %cst_39 : f32 to vector<2x31xf32>
    %153 = arith.select %150, %151, %152 : vector<2x31xi1>, vector<2x31xf32>
    %cst_40 = arith.constant dense<0.000000e+00> : vector<2xf32>
    %154 = vector.multi_reduction <add>, %153, %cst_40 [1] : vector<2x31xf32> to vector<2xf32>
    %155 = vector.shape_cast %154 : vector<2xf32> to vector<2x1xf32>
    %c4_i32_41 = arith.constant 4 : i32
    %156 = vector.broadcast %c4_i32_41 : i32 to vector<2x31xi32>
    %157 = arith.cmpi eq, %99, %156 : vector<2x31xi32>
    %cst_42 = arith.constant 0.000000e+00 : f32
    %158 = vector.broadcast %cst_42 : f32 to vector<2x31xf32>
    %159 = arith.select %157, %100, %158 : vector<2x31xi1>, vector<2x31xf32>
    %cst_43 = arith.constant dense<0.000000e+00> : vector<2xf32>
    %160 = vector.multi_reduction <add>, %159, %cst_43 [1] : vector<2x31xf32> to vector<2xf32>
    %161 = vector.shape_cast %160 : vector<2xf32> to vector<2x1xf32>
    %c4_i32_44 = arith.constant 4 : i32
    %162 = vector.broadcast %c4_i32_44 : i32 to vector<2x31xi32>
    %163 = arith.cmpi eq, %103, %162 : vector<2x31xi32>
    %cst_45 = arith.constant 1.000000e+00 : f32
    %cst_46 = arith.constant 0.000000e+00 : f32
    %164 = vector.broadcast %cst_45 : f32 to vector<2x31xf32>
    %165 = vector.broadcast %cst_46 : f32 to vector<2x31xf32>
    %166 = arith.select %163, %164, %165 : vector<2x31xi1>, vector<2x31xf32>
    %cst_47 = arith.constant dense<0.000000e+00> : vector<2xf32>
    %167 = vector.multi_reduction <add>, %166, %cst_47 [1] : vector<2x31xf32> to vector<2xf32>
    %168 = vector.shape_cast %167 : vector<2xf32> to vector<2x1xf32>
    %c5_i32_48 = arith.constant 5 : i32
    %169 = vector.broadcast %c5_i32_48 : i32 to vector<2x31xi32>
    %170 = arith.cmpi eq, %99, %169 : vector<2x31xi32>
    %cst_49 = arith.constant 0.000000e+00 : f32
    %171 = vector.broadcast %cst_49 : f32 to vector<2x31xf32>
    %172 = arith.select %170, %100, %171 : vector<2x31xi1>, vector<2x31xf32>
    %cst_50 = arith.constant dense<0.000000e+00> : vector<2xf32>
    %173 = vector.multi_reduction <add>, %172, %cst_50 [1] : vector<2x31xf32> to vector<2xf32>
    %174 = vector.shape_cast %173 : vector<2xf32> to vector<2x1xf32>
    %c5_i32_51 = arith.constant 5 : i32
    %175 = vector.broadcast %c5_i32_51 : i32 to vector<2x31xi32>
    %176 = arith.cmpi eq, %103, %175 : vector<2x31xi32>
    %cst_52 = arith.constant 1.000000e+00 : f32
    %cst_53 = arith.constant 0.000000e+00 : f32
    %177 = vector.broadcast %cst_52 : f32 to vector<2x31xf32>
    %178 = vector.broadcast %cst_53 : f32 to vector<2x31xf32>
    %179 = arith.select %176, %177, %178 : vector<2x31xi1>, vector<2x31xf32>
    %cst_54 = arith.constant dense<0.000000e+00> : vector<2xf32>
    %180 = vector.multi_reduction <add>, %179, %cst_54 [1] : vector<2x31xf32> to vector<2xf32>
    %181 = vector.shape_cast %180 : vector<2xf32> to vector<2x1xf32>
    %c6_i32_55 = arith.constant 6 : i32
    %182 = vector.broadcast %c6_i32_55 : i32 to vector<2x31xi32>
    %183 = arith.cmpi eq, %99, %182 : vector<2x31xi32>
    %cst_56 = arith.constant 0.000000e+00 : f32
    %184 = vector.broadcast %cst_56 : f32 to vector<2x31xf32>
    %185 = arith.select %183, %100, %184 : vector<2x31xi1>, vector<2x31xf32>
    %cst_57 = arith.constant dense<0.000000e+00> : vector<2xf32>
    %186 = vector.multi_reduction <add>, %185, %cst_57 [1] : vector<2x31xf32> to vector<2xf32>
    %187 = vector.shape_cast %186 : vector<2xf32> to vector<2x1xf32>
    %c6_i32_58 = arith.constant 6 : i32
    %188 = vector.broadcast %c6_i32_58 : i32 to vector<2x31xi32>
    %189 = arith.cmpi eq, %103, %188 : vector<2x31xi32>
    %cst_59 = arith.constant 1.000000e+00 : f32
    %cst_60 = arith.constant 0.000000e+00 : f32
    %190 = vector.broadcast %cst_59 : f32 to vector<2x31xf32>
    %191 = vector.broadcast %cst_60 : f32 to vector<2x31xf32>
    %192 = arith.select %189, %190, %191 : vector<2x31xi1>, vector<2x31xf32>
    %cst_61 = arith.constant dense<0.000000e+00> : vector<2xf32>
    %193 = vector.multi_reduction <add>, %192, %cst_61 [1] : vector<2x31xf32> to vector<2xf32>
    %194 = vector.shape_cast %193 : vector<2xf32> to vector<2x1xf32>
    %c7_i32_62 = arith.constant 7 : i32
    %195 = vector.broadcast %c7_i32_62 : i32 to vector<2x31xi32>
    %196 = arith.cmpi eq, %99, %195 : vector<2x31xi32>
    %cst_63 = arith.constant 0.000000e+00 : f32
    %197 = vector.broadcast %cst_63 : f32 to vector<2x31xf32>
    %198 = arith.select %196, %100, %197 : vector<2x31xi1>, vector<2x31xf32>
    %cst_64 = arith.constant dense<0.000000e+00> : vector<2xf32>
    %199 = vector.multi_reduction <add>, %198, %cst_64 [1] : vector<2x31xf32> to vector<2xf32>
    %200 = vector.shape_cast %199 : vector<2xf32> to vector<2x1xf32>
    %c7_i32_65 = arith.constant 7 : i32
    %201 = vector.broadcast %c7_i32_65 : i32 to vector<2x31xi32>
    %202 = arith.cmpi eq, %103, %201 : vector<2x31xi32>
    %cst_66 = arith.constant 1.000000e+00 : f32
    %cst_67 = arith.constant 0.000000e+00 : f32
    %203 = vector.broadcast %cst_66 : f32 to vector<2x31xf32>
    %204 = vector.broadcast %cst_67 : f32 to vector<2x31xf32>
    %205 = arith.select %202, %203, %204 : vector<2x31xi1>, vector<2x31xf32>
    %cst_68 = arith.constant dense<0.000000e+00> : vector<2xf32>
    %206 = vector.multi_reduction <add>, %205, %cst_68 [1] : vector<2x31xf32> to vector<2xf32>
    %207 = vector.shape_cast %206 : vector<2xf32> to vector<2x1xf32>
    %208 = tpu.concatenate %109, %122, %135, %148, %161, %174, %187, %200 in 1 : vector<2x1xf32>, vector<2x1xf32>, vector<2x1xf32>, vector<2x1xf32>, vector<2x1xf32>, vector<2x1xf32>, vector<2x1xf32>, vector<2x1xf32> -> vector<2x8xf32>
    %c0_69 = arith.constant 0 : index
    %c0_70 = arith.constant 0 : index
    %c0_71 = arith.constant 0 : index
    %c0_72 = arith.constant 0 : index
    %209 = vector.load %arg4[%c0_69, %c0_70, %c0_71, %c0_72] : memref<2x1x2x8xf32, #tpu.memory_space<vmem>>, vector<2x1x1x8xf32>
    %210 = vector.shape_cast %209 : vector<2x1x1x8xf32> to vector<2x8xf32>
    %211 = vector.shape_cast %208 : vector<2x8xf32> to vector<2x1x1x8xf32>
    tpu.vector_store %arg4[%c0_69, %c0_70, %c0_71, %c0_72], %211 {strides = array<i32>} : memref<2x1x2x8xf32, #tpu.memory_space<vmem>>, vector<2x1x1x8xf32>,
    %212 = tpu.concatenate %116, %129, %142, %155, %168, %181, %194, %207 in 1 : vector<2x1xf32>, vector<2x1xf32>, vector<2x1xf32>, vector<2x1xf32>, vector<2x1xf32>, vector<2x1xf32>, vector<2x1xf32>, vector<2x1xf32> -> vector<2x8xf32>
    %c0_73 = arith.constant 0 : index
    %c0_74 = arith.constant 0 : index
    %c1 = arith.constant 1 : index
    %c0_75 = arith.constant 0 : index
    %213 = vector.load %arg4[%c0_73, %c0_74, %c1, %c0_75] : memref<2x1x2x8xf32, #tpu.memory_space<vmem>>, vector<2x1x1x8xf32>
    %214 = vector.shape_cast %213 : vector<2x1x1x8xf32> to vector<2x8xf32>
    %215 = vector.shape_cast %212 : vector<2x8xf32> to vector<2x1x1x8xf32>
    tpu.vector_store %arg4[%c0_73, %c0_74, %c1, %c0_75], %215 {strides = array<i32>} : memref<2x1x2x8xf32, #tpu.memory_space<vmem>>, vector<2x1x1x8xf32>,
    return
  }
  func.func @transform_0(%arg0: i32, %arg1: i32) -> (i32, i32, i32) {
    %c0_i32 = arith.constant 0 : i32
    %c0_i32_0 = arith.constant 0 : i32
    return %arg1, %arg0, %c0_i32 : i32, i32, i32
  }
  func.func @transform_1(%arg0: i32, %arg1: i32) -> (i32, i32, i32) {
    %c0_i32 = arith.constant 0 : i32
    %c0_i32_0 = arith.constant 0 : i32
    %c0_i32_1 = arith.constant 0 : i32
    return %arg1, %c0_i32, %c0_i32_0 : i32, i32, i32
  }
  func.func @transform_2(%arg0: i32, %arg1: i32) -> (i32, i32, i32, i32) {
    %c0_i32 = arith.constant 0 : i32
    %c0_i32_0 = arith.constant 0 : i32
    %c0_i32_1 = arith.constant 0 : i32
    return %arg0, %arg1, %c0_i32, %c0_i32_0 : i32, i32, i32, i32
  }
}

module attributes {stable_mosaic.version = 11 : i64} {
  func.func @_hydra_branch_kernel(%arg0: i32, %arg1: i32, %arg2: memref<1x2x47xf32, #tpu.memory_space<vmem>>, %arg3: memref<1x8x9xf32, #tpu.memory_space<vmem>>, %arg4: memref<2x1x2x8xf32, #tpu.memory_space<vmem>>) attributes {dimension_semantics = [#tpu.dimension_semantics<parallel>, #tpu.dimension_semantics<parallel>], iteration_bounds = array<i64: 1, 4>, scalar_prefetch = 0 : i64, scratch_operands = 0 : i64, tpu.core_type = #tpu.core_type<tc>, window_params = [{transform_indices = @transform_0, window_bounds = array<i64: 1, 2, 47>}, {transform_indices = @transform_1, window_bounds = array<i64: 1, 8, 9>}, {transform_indices = @transform_2, window_bounds = array<i64: 2, 1, 2, 8>}]} {
    %c0 = arith.constant 0 : index
    %c0_0 = arith.constant 0 : index
    %c0_1 = arith.constant 0 : index
    %0 = vector.load %arg2[%c0, %c0_0, %c0_1] : memref<1x2x47xf32, #tpu.memory_space<vmem>>, vector<1x2x47xf32>
    %1 = vector.shape_cast %0 : vector<1x2x47xf32> to vector<2x47xf32>
    %2 = arith.truncf %1 : vector<2x47xf32> to vector<2x47xbf16>
    %3 = vector.extract_strided_slice %2 {offsets = [0, 0], sizes = [2, 31], strides = [1, 1]} : vector<2x47xbf16> to vector<2x31xbf16>
    %4 = vector.extract_strided_slice %2 {offsets = [0, 2], sizes = [2, 31], strides = [1, 1]} : vector<2x47xbf16> to vector<2x31xbf16>
    %5 = vector.extract_strided_slice %2 {offsets = [0, 4], sizes = [2, 31], strides = [1, 1]} : vector<2x47xbf16> to vector<2x31xbf16>
    %6 = vector.extract_strided_slice %2 {offsets = [0, 6], sizes = [2, 31], strides = [1, 1]} : vector<2x47xbf16> to vector<2x31xbf16>
    %7 = vector.extract_strided_slice %2 {offsets = [0, 8], sizes = [2, 31], strides = [1, 1]} : vector<2x47xbf16> to vector<2x31xbf16>
    %8 = vector.extract_strided_slice %2 {offsets = [0, 10], sizes = [2, 31], strides = [1, 1]} : vector<2x47xbf16> to vector<2x31xbf16>
    %9 = vector.extract_strided_slice %2 {offsets = [0, 12], sizes = [2, 31], strides = [1, 1]} : vector<2x47xbf16> to vector<2x31xbf16>
    %10 = vector.extract_strided_slice %2 {offsets = [0, 14], sizes = [2, 31], strides = [1, 1]} : vector<2x47xbf16> to vector<2x31xbf16>
    %11 = vector.extract_strided_slice %2 {offsets = [0, 16], sizes = [2, 31], strides = [1, 1]} : vector<2x47xbf16> to vector<2x31xbf16>
    %12 = vector.shape_cast %3 : vector<2x31xbf16> to vector<2x1x31xbf16>
    %13 = vector.shape_cast %4 : vector<2x31xbf16> to vector<2x1x31xbf16>
    %14 = vector.shape_cast %5 : vector<2x31xbf16> to vector<2x1x31xbf16>
    %15 = vector.shape_cast %6 : vector<2x31xbf16> to vector<2x1x31xbf16>
    %16 = vector.shape_cast %7 : vector<2x31xbf16> to vector<2x1x31xbf16>
    %17 = vector.shape_cast %8 : vector<2x31xbf16> to vector<2x1x31xbf16>
    %18 = vector.shape_cast %9 : vector<2x31xbf16> to vector<2x1x31xbf16>
    %19 = vector.shape_cast %10 : vector<2x31xbf16> to vector<2x1x31xbf16>
    %20 = vector.shape_cast %11 : vector<2x31xbf16> to vector<2x1x31xbf16>
    %21 = tpu.concatenate %12, %13, %14, %15, %16, %17, %18, %19, %20 in 1 : vector<2x1x31xbf16>, vector<2x1x31xbf16>, vector<2x1x31xbf16>, vector<2x1x31xbf16>, vector<2x1x31xbf16>, vector<2x1x31xbf16>, vector<2x1x31xbf16>, vector<2x1x31xbf16>, vector<2x1x31xbf16> -> vector<2x9x31xbf16>
    %c0_2 = arith.constant 0 : index
    %c0_3 = arith.constant 0 : index
    %c0_4 = arith.constant 0 : index
    %22 = vector.load %arg3[%c0_2, %c0_3, %c0_4] : memref<1x8x9xf32, #tpu.memory_space<vmem>>, vector<1x8x9xf32>
    %23 = vector.shape_cast %22 : vector<1x8x9xf32> to vector<8x9xf32>
    %24 = arith.truncf %23 : vector<8x9xf32> to vector<8x9xbf16>
    %25 = vector.shape_cast %24 : vector<8x9xbf16> to vector<1x8x9xbf16>
    %26 = vector.shape_cast %25 : vector<1x8x9xbf16> to vector<1x8x9xbf16>
    %27 = vector.broadcast %26 : vector<1x8x9xbf16> to vector<2x8x9xbf16>
    "tpu.trace_start"() <{level = 10 : i32, message = "nkr,nrl->nkl"}> : () -> ()
    %cst = arith.constant dense<0.000000e+00> : vector<2x8x31xf32>
    %28 = tpu.matmul %27, %21, %cst {dimension_numbers = #tpu.dot_dimension_numbers<[2], [1], [1], [2], [0, 0, 0, 1, 1, 2], [0], [0]>} : vector<2x8x9xbf16>, vector<2x9x31xbf16>, vector<2x8x31xf32> -> vector<2x8x31xf32>
    "tpu.trace_stop"() : () -> ()
    %29 = vector.extract_strided_slice %28 {offsets = [0, 0, 0], sizes = [2, 1, 31], strides = [1, 1, 1]} : vector<2x8x31xf32> to vector<2x1x31xf32>
    %30 = vector.shape_cast %29 : vector<2x1x31xf32> to vector<2x31xf32>
    %31 = vector.extract_strided_slice %28 {offsets = [0, 0, 0], sizes = [2, 1, 31], strides = [1, 1, 1]} : vector<2x8x31xf32> to vector<2x1x31xf32>
    %32 = vector.shape_cast %31 : vector<2x1x31xf32> to vector<2x31xf32>
    %c0_i32 = arith.constant 0 : i32
    %33 = vector.broadcast %c0_i32 : i32 to vector<2x31xi32>
    %c0_i32_5 = arith.constant 0 : i32
    %34 = vector.broadcast %c0_i32_5 : i32 to vector<2x31xi32>
    %35 = vector.extract_strided_slice %28 {offsets = [0, 1, 0], sizes = [2, 1, 31], strides = [1, 1, 1]} : vector<2x8x31xf32> to vector<2x1x31xf32>
    %36 = vector.shape_cast %35 : vector<2x1x31xf32> to vector<2x31xf32>
    %37 = arith.cmpf ogt, %36, %30 : vector<2x31xf32>
    %c1_i32 = arith.constant 1 : i32
    %38 = vector.broadcast %c1_i32 : i32 to vector<2x31xi32>
    %39 = arith.select %37, %38, %33 : vector<2x31xi1>, vector<2x31xi32>
    %40 = arith.select %37, %36, %30 : vector<2x31xi1>, vector<2x31xf32>
    %41 = arith.cmpf olt, %36, %32 : vector<2x31xf32>
    %c1_i32_6 = arith.constant 1 : i32
    %42 = vector.broadcast %c1_i32_6 : i32 to vector<2x31xi32>
    %43 = arith.select %41, %42, %34 : vector<2x31xi1>, vector<2x31xi32>
    %44 = arith.select %41, %36, %32 : vector<2x31xi1>, vector<2x31xf32>
    %45 = vector.extract_strided_slice %28 {offsets = [0, 2, 0], sizes = [2, 1, 31], strides = [1, 1, 1]} : vector<2x8x31xf32> to vector<2x1x31xf32>
    %46 = vector.shape_cast %45 : vector<2x1x31xf32> to vector<2x31xf32>
    %47 = arith.cmpf ogt, %46, %40 : vector<2x31xf32>
    %c2_i32 = arith.constant 2 : i32
    %48 = vector.broadcast %c2_i32 : i32 to vector<2x31xi32>
    %49 = arith.select %47, %48, %39 : vector<2x31xi1>, vector<2x31xi32>
    %50 = arith.select %47, %46, %40 : vector<2x31xi1>, vector<2x31xf32>
    %51 = arith.cmpf olt, %46, %44 : vector<2x31xf32>
    %c2_i32_7 = arith.constant 2 : i32
    %52 = vector.broadcast %c2_i32_7 : i32 to vector<2x31xi32>
    %53 = arith.select %51, %52, %43 : vector<2x31xi1>, vector<2x31xi32>
    %54 = arith.select %51, %46, %44 : vector<2x31xi1>, vector<2x31xf32>
    %55 = vector.extract_strided_slice %28 {offsets = [0, 3, 0], sizes = [2, 1, 31], strides = [1, 1, 1]} : vector<2x8x31xf32> to vector<2x1x31xf32>
    %56 = vector.shape_cast %55 : vector<2x1x31xf32> to vector<2x31xf32>
    %57 = arith.cmpf ogt, %56, %50 : vector<2x31xf32>
    %c3_i32 = arith.constant 3 : i32
    %58 = vector.broadcast %c3_i32 : i32 to vector<2x31xi32>
    %59 = arith.select %57, %58, %49 : vector<2x31xi1>, vector<2x31xi32>
    %60 = arith.select %57, %56, %50 : vector<2x31xi1>, vector<2x31xf32>
    %61 = arith.cmpf olt, %56, %54 : vector<2x31xf32>
    %c3_i32_8 = arith.constant 3 : i32
    %62 = vector.broadcast %c3_i32_8 : i32 to vector<2x31xi32>
    %63 = arith.select %61, %62, %53 : vector<2x31xi1>, vector<2x31xi32>
    %64 = arith.select %61, %56, %54 : vector<2x31xi1>, vector<2x31xf32>
    %65 = vector.extract_strided_slice %28 {offsets = [0, 4, 0], sizes = [2, 1, 31], strides = [1, 1, 1]} : vector<2x8x31xf32> to vector<2x1x31xf32>
    %66 = vector.shape_cast %65 : vector<2x1x31xf32> to vector<2x31xf32>
    %67 = arith.cmpf ogt, %66, %60 : vector<2x31xf32>
    %c4_i32 = arith.constant 4 : i32
    %68 = vector.broadcast %c4_i32 : i32 to vector<2x31xi32>
    %69 = arith.select %67, %68, %59 : vector<2x31xi1>, vector<2x31xi32>
    %70 = arith.select %67, %66, %60 : vector<2x31xi1>, vector<2x31xf32>
    %71 = arith.cmpf olt, %66, %64 : vector<2x31xf32>
    %c4_i32_9 = arith.constant 4 : i32
    %72 = vector.broadcast %c4_i32_9 : i32 to vector<2x31xi32>
    %73 = arith.select %71, %72, %63 : vector<2x31xi1>, vector<2x31xi32>
    %74 = arith.select %71, %66, %64 : vector<2x31xi1>, vector<2x31xf32>
    %75 = vector.extract_strided_slice %28 {offsets = [0, 5, 0], sizes = [2, 1, 31], strides = [1, 1, 1]} : vector<2x8x31xf32> to vector<2x1x31xf32>
    %76 = vector.shape_cast %75 : vector<2x1x31xf32> to vector<2x31xf32>
    %77 = arith.cmpf ogt, %76, %70 : vector<2x31xf32>
    %c5_i32 = arith.constant 5 : i32
    %78 = vector.broadcast %c5_i32 : i32 to vector<2x31xi32>
    %79 = arith.select %77, %78, %69 : vector<2x31xi1>, vector<2x31xi32>
    %80 = arith.select %77, %76, %70 : vector<2x31xi1>, vector<2x31xf32>
    %81 = arith.cmpf olt, %76, %74 : vector<2x31xf32>
    %c5_i32_10 = arith.constant 5 : i32
    %82 = vector.broadcast %c5_i32_10 : i32 to vector<2x31xi32>
    %83 = arith.select %81, %82, %73 : vector<2x31xi1>, vector<2x31xi32>
    %84 = arith.select %81, %76, %74 : vector<2x31xi1>, vector<2x31xf32>
    %85 = vector.extract_strided_slice %28 {offsets = [0, 6, 0], sizes = [2, 1, 31], strides = [1, 1, 1]} : vector<2x8x31xf32> to vector<2x1x31xf32>
    %86 = vector.shape_cast %85 : vector<2x1x31xf32> to vector<2x31xf32>
    %87 = arith.cmpf ogt, %86, %80 : vector<2x31xf32>
    %c6_i32 = arith.constant 6 : i32
    %88 = vector.broadcast %c6_i32 : i32 to vector<2x31xi32>
    %89 = arith.select %87, %88, %79 : vector<2x31xi1>, vector<2x31xi32>
    %90 = arith.select %87, %86, %80 : vector<2x31xi1>, vector<2x31xf32>
    %91 = arith.cmpf olt, %86, %84 : vector<2x31xf32>
    %c6_i32_11 = arith.constant 6 : i32
    %92 = vector.broadcast %c6_i32_11 : i32 to vector<2x31xi32>
    %93 = arith.select %91, %92, %83 : vector<2x31xi1>, vector<2x31xi32>
    %94 = arith.select %91, %86, %84 : vector<2x31xi1>, vector<2x31xf32>
    %95 = vector.extract_strided_slice %28 {offsets = [0, 7, 0], sizes = [2, 1, 31], strides = [1, 1, 1]} : vector<2x8x31xf32> to vector<2x1x31xf32>
    %96 = vector.shape_cast %95 : vector<2x1x31xf32> to vector<2x31xf32>
    %97 = arith.cmpf ogt, %96, %90 : vector<2x31xf32>
    %c7_i32 = arith.constant 7 : i32
    %98 = vector.broadcast %c7_i32 : i32 to vector<2x31xi32>
    %99 = arith.select %97, %98, %89 : vector<2x31xi1>, vector<2x31xi32>
    %100 = arith.select %97, %96, %90 : vector<2x31xi1>, vector<2x31xf32>
    %101 = arith.cmpf olt, %96, %94 : vector<2x31xf32>
    %c7_i32_12 = arith.constant 7 : i32
    %102 = vector.broadcast %c7_i32_12 : i32 to vector<2x31xi32>
    %103 = arith.select %101, %102, %93 : vector<2x31xi1>, vector<2x31xi32>
    %c0_i32_13 = arith.constant 0 : i32
    %104 = vector.broadcast %c0_i32_13 : i32 to vector<2x31xi32>
    %105 = arith.cmpi eq, %99, %104 : vector<2x31xi32>
    %cst_14 = arith.constant 0.000000e+00 : f32
    %106 = vector.broadcast %cst_14 : f32 to vector<2x31xf32>
    %107 = arith.select %105, %100, %106 : vector<2x31xi1>, vector<2x31xf32>
    %cst_15 = arith.constant dense<0.000000e+00> : vector<2xf32>
    %108 = vector.multi_reduction <add>, %107, %cst_15 [1] : vector<2x31xf32> to vector<2xf32>
    %109 = vector.shape_cast %108 : vector<2xf32> to vector<2x1xf32>
    %c0_i32_16 = arith.constant 0 : i32
    %110 = vector.broadcast %c0_i32_16 : i32 to vector<2x31xi32>
    %111 = arith.cmpi eq, %103, %110 : vector<2x31xi32>
    %cst_17 = arith.constant 1.000000e+00 : f32
    %cst_18 = arith.constant 0.000000e+00 : f32
    %112 = vector.broadcast %cst_17 : f32 to vector<2x31xf32>
    %113 = vector.broadcast %cst_18 : f32 to vector<2x31xf32>
    %114 = arith.select %111, %112, %113 : vector<2x31xi1>, vector<2x31xf32>
    %cst_19 = arith.constant dense<0.000000e+00> : vector<2xf32>
    %115 = vector.multi_reduction <add>, %114, %cst_19 [1] : vector<2x31xf32> to vector<2xf32>
    %116 = vector.shape_cast %115 : vector<2xf32> to vector<2x1xf32>
    %c1_i32_20 = arith.constant 1 : i32
    %117 = vector.broadcast %c1_i32_20 : i32 to vector<2x31xi32>
    %118 = arith.cmpi eq, %99, %117 : vector<2x31xi32>
    %cst_21 = arith.constant 0.000000e+00 : f32
    %119 = vector.broadcast %cst_21 : f32 to vector<2x31xf32>
    %120 = arith.select %118, %100, %119 : vector<2x31xi1>, vector<2x31xf32>
    %cst_22 = arith.constant dense<0.000000e+00> : vector<2xf32>
    %121 = vector.multi_reduction <add>, %120, %cst_22 [1] : vector<2x31xf32> to vector<2xf32>
    %122 = vector.shape_cast %121 : vector<2xf32> to vector<2x1xf32>
    %c1_i32_23 = arith.constant 1 : i32
    %123 = vector.broadcast %c1_i32_23 : i32 to vector<2x31xi32>
    %124 = arith.cmpi eq, %103, %123 : vector<2x31xi32>
    %cst_24 = arith.constant 1.000000e+00 : f32
    %cst_25 = arith.constant 0.000000e+00 : f32
    %125 = vector.broadcast %cst_24 : f32 to vector<2x31xf32>
    %126 = vector.broadcast %cst_25 : f32 to vector<2x31xf32>
    %127 = arith.select %124, %125, %126 : vector<2x31xi1>, vector<2x31xf32>
    %cst_26 = arith.constant dense<0.000000e+00> : vector<2xf32>
    %128 = vector.multi_reduction <add>, %127, %cst_26 [1] : vector<2x31xf32> to vector<2xf32>
    %129 = vector.shape_cast %128 : vector<2xf32> to vector<2x1xf32>
    %c2_i32_27 = arith.constant 2 : i32
    %130 = vector.broadcast %c2_i32_27 : i32 to vector<2x31xi32>
    %131 = arith.cmpi eq, %99, %130 : vector<2x31xi32>
    %cst_28 = arith.constant 0.000000e+00 : f32
    %132 = vector.broadcast %cst_28 : f32 to vector<2x31xf32>
    %133 = arith.select %131, %100, %132 : vector<2x31xi1>, vector<2x31xf32>
    %cst_29 = arith.constant dense<0.000000e+00> : vector<2xf32>
    %134 = vector.multi_reduction <add>, %133, %cst_29 [1] : vector<2x31xf32> to vector<2xf32>
    %135 = vector.shape_cast %134 : vector<2xf32> to vector<2x1xf32>
    %c2_i32_30 = arith.constant 2 : i32
    %136 = vector.broadcast %c2_i32_30 : i32 to vector<2x31xi32>
    %137 = arith.cmpi eq, %103, %136 : vector<2x31xi32>
    %cst_31 = arith.constant 1.000000e+00 : f32
    %cst_32 = arith.constant 0.000000e+00 : f32
    %138 = vector.broadcast %cst_31 : f32 to vector<2x31xf32>
    %139 = vector.broadcast %cst_32 : f32 to vector<2x31xf32>
    %140 = arith.select %137, %138, %139 : vector<2x31xi1>, vector<2x31xf32>
    %cst_33 = arith.constant dense<0.000000e+00> : vector<2xf32>
    %141 = vector.multi_reduction <add>, %140, %cst_33 [1] : vector<2x31xf32> to vector<2xf32>
    %142 = vector.shape_cast %141 : vector<2xf32> to vector<2x1xf32>
    %c3_i32_34 = arith.constant 3 : i32
    %143 = vector.broadcast %c3_i32_34 : i32 to vector<2x31xi32>
    %144 = arith.cmpi eq, %99, %143 : vector<2x31xi32>
    %cst_35 = arith.constant 0.000000e+00 : f32
    %145 = vector.broadcast %cst_35 : f32 to vector<2x31xf32>
    %146 = arith.select %144, %100, %145 : vector<2x31xi1>, vector<2x31xf32>
    %cst_36 = arith.constant dense<0.000000e+00> : vector<2xf32>
    %147 = vector.multi_reduction <add>, %146, %cst_36 [1] : vector<2x31xf32> to vector<2xf32>
    %148 = vector.shape_cast %147 : vector<2xf32> to vector<2x1xf32>
    %c3_i32_37 = arith.constant 3 : i32
    %149 = vector.broadcast %c3_i32_37 : i32 to vector<2x31xi32>
    %150 = arith.cmpi eq, %103, %149 : vector<2x31xi32>
    %cst_38 = arith.constant 1.000000e+00 : f32
    %cst_39 = arith.constant 0.000000e+00 : f32
    %151 = vector.broadcast %cst_38 : f32 to vector<2x31xf32>
    %152 = vector.broadcast %cst_39 : f32 to vector<2x31xf32>
    %153 = arith.select %150, %151, %152 : vector<2x31xi1>, vector<2x31xf32>
    %cst_40 = arith.constant dense<0.000000e+00> : vector<2xf32>
    %154 = vector.multi_reduction <add>, %153, %cst_40 [1] : vector<2x31xf32> to vector<2xf32>
    %155 = vector.shape_cast %154 : vector<2xf32> to vector<2x1xf32>
    %c4_i32_41 = arith.constant 4 : i32
    %156 = vector.broadcast %c4_i32_41 : i32 to vector<2x31xi32>
    %157 = arith.cmpi eq, %99, %156 : vector<2x31xi32>
    %cst_42 = arith.constant 0.000000e+00 : f32
    %158 = vector.broadcast %cst_42 : f32 to vector<2x31xf32>
    %159 = arith.select %157, %100, %158 : vector<2x31xi1>, vector<2x31xf32>
    %cst_43 = arith.constant dense<0.000000e+00> : vector<2xf32>
    %160 = vector.multi_reduction <add>, %159, %cst_43 [1] : vector<2x31xf32> to vector<2xf32>
    %161 = vector.shape_cast %160 : vector<2xf32> to vector<2x1xf32>
    %c4_i32_44 = arith.constant 4 : i32
    %162 = vector.broadcast %c4_i32_44 : i32 to vector<2x31xi32>
    %163 = arith.cmpi eq, %103, %162 : vector<2x31xi32>
    %cst_45 = arith.constant 1.000000e+00 : f32
    %cst_46 = arith.constant 0.000000e+00 : f32
    %164 = vector.broadcast %cst_45 : f32 to vector<2x31xf32>
    %165 = vector.broadcast %cst_46 : f32 to vector<2x31xf32>
    %166 = arith.select %163, %164, %165 : vector<2x31xi1>, vector<2x31xf32>
    %cst_47 = arith.constant dense<0.000000e+00> : vector<2xf32>
    %167 = vector.multi_reduction <add>, %166, %cst_47 [1] : vector<2x31xf32> to vector<2xf32>
    %168 = vector.shape_cast %167 : vector<2xf32> to vector<2x1xf32>
    %c5_i32_48 = arith.constant 5 : i32
    %169 = vector.broadcast %c5_i32_48 : i32 to vector<2x31xi32>
    %170 = arith.cmpi eq, %99, %169 : vector<2x31xi32>
    %cst_49 = arith.constant 0.000000e+00 : f32
    %171 = vector.broadcast %cst_49 : f32 to vector<2x31xf32>
    %172 = arith.select %170, %100, %171 : vector<2x31xi1>, vector<2x31xf32>
    %cst_50 = arith.constant dense<0.000000e+00> : vector<2xf32>
    %173 = vector.multi_reduction <add>, %172, %cst_50 [1] : vector<2x31xf32> to vector<2xf32>
    %174 = vector.shape_cast %173 : vector<2xf32> to vector<2x1xf32>
    %c5_i32_51 = arith.constant 5 : i32
    %175 = vector.broadcast %c5_i32_51 : i32 to vector<2x31xi32>
    %176 = arith.cmpi eq, %103, %175 : vector<2x31xi32>
    %cst_52 = arith.constant 1.000000e+00 : f32
    %cst_53 = arith.constant 0.000000e+00 : f32
    %177 = vector.broadcast %cst_52 : f32 to vector<2x31xf32>
    %178 = vector.broadcast %cst_53 : f32 to vector<2x31xf32>
    %179 = arith.select %176, %177, %178 : vector<2x31xi1>, vector<2x31xf32>
    %cst_54 = arith.constant dense<0.000000e+00> : vector<2xf32>
    %180 = vector.multi_reduction <add>, %179, %cst_54 [1] : vector<2x31xf32> to vector<2xf32>
    %181 = vector.shape_cast %180 : vector<2xf32> to vector<2x1xf32>
    %c6_i32_55 = arith.constant 6 : i32
    %182 = vector.broadcast %c6_i32_55 : i32 to vector<2x31xi32>
    %183 = arith.cmpi eq, %99, %182 : vector<2x31xi32>
    %cst_56 = arith.constant 0.000000e+00 : f32
    %184 = vector.broadcast %cst_56 : f32 to vector<2x31xf32>
    %185 = arith.select %183, %100, %184 : vector<2x31xi1>, vector<2x31xf32>
    %cst_57 = arith.constant dense<0.000000e+00> : vector<2xf32>
    %186 = vector.multi_reduction <add>, %185, %cst_57 [1] : vector<2x31xf32> to vector<2xf32>
    %187 = vector.shape_cast %186 : vector<2xf32> to vector<2x1xf32>
    %c6_i32_58 = arith.constant 6 : i32
    %188 = vector.broadcast %c6_i32_58 : i32 to vector<2x31xi32>
    %189 = arith.cmpi eq, %103, %188 : vector<2x31xi32>
    %cst_59 = arith.constant 1.000000e+00 : f32
    %cst_60 = arith.constant 0.000000e+00 : f32
    %190 = vector.broadcast %cst_59 : f32 to vector<2x31xf32>
    %191 = vector.broadcast %cst_60 : f32 to vector<2x31xf32>
    %192 = arith.select %189, %190, %191 : vector<2x31xi1>, vector<2x31xf32>
    %cst_61 = arith.constant dense<0.000000e+00> : vector<2xf32>
    %193 = vector.multi_reduction <add>, %192, %cst_61 [1] : vector<2x31xf32> to vector<2xf32>
    %194 = vector.shape_cast %193 : vector<2xf32> to vector<2x1xf32>
    %c7_i32_62 = arith.constant 7 : i32
    %195 = vector.broadcast %c7_i32_62 : i32 to vector<2x31xi32>
    %196 = arith.cmpi eq, %99, %195 : vector<2x31xi32>
    %cst_63 = arith.constant 0.000000e+00 : f32
    %197 = vector.broadcast %cst_63 : f32 to vector<2x31xf32>
    %198 = arith.select %196, %100, %197 : vector<2x31xi1>, vector<2x31xf32>
    %cst_64 = arith.constant dense<0.000000e+00> : vector<2xf32>
    %199 = vector.multi_reduction <add>, %198, %cst_64 [1] : vector<2x31xf32> to vector<2xf32>
    %200 = vector.shape_cast %199 : vector<2xf32> to vector<2x1xf32>
    %c7_i32_65 = arith.constant 7 : i32
    %201 = vector.broadcast %c7_i32_65 : i32 to vector<2x31xi32>
    %202 = arith.cmpi eq, %103, %201 : vector<2x31xi32>
    %cst_66 = arith.constant 1.000000e+00 : f32
    %cst_67 = arith.constant 0.000000e+00 : f32
    %203 = vector.broadcast %cst_66 : f32 to vector<2x31xf32>
    %204 = vector.broadcast %cst_67 : f32 to vector<2x31xf32>
    %205 = arith.select %202, %203, %204 : vector<2x31xi1>, vector<2x31xf32>
    %cst_68 = arith.constant dense<0.000000e+00> : vector<2xf32>
    %206 = vector.multi_reduction <add>, %205, %cst_68 [1] : vector<2x31xf32> to vector<2xf32>
    %207 = vector.shape_cast %206 : vector<2xf32> to vector<2x1xf32>
    %208 = tpu.concatenate %109, %122, %135, %148, %161, %174, %187, %200 in 1 : vector<2x1xf32>, vector<2x1xf32>, vector<2x1xf32>, vector<2x1xf32>, vector<2x1xf32>, vector<2x1xf32>, vector<2x1xf32>, vector<2x1xf32> -> vector<2x8xf32>
    %c0_69 = arith.constant 0 : index
    %c0_70 = arith.constant 0 : index
    %c0_71 = arith.constant 0 : index
    %c0_72 = arith.constant 0 : index
    %209 = vector.load %arg4[%c0_69, %c0_70, %c0_71, %c0_72] : memref<2x1x2x8xf32, #tpu.memory_space<vmem>>, vector<2x1x1x8xf32>
    %210 = vector.shape_cast %209 : vector<2x1x1x8xf32> to vector<2x8xf32>
    %211 = vector.shape_cast %208 : vector<2x8xf32> to vector<2x1x1x8xf32>
    tpu.vector_store %arg4[%c0_69, %c0_70, %c0_71, %c0_72], %211 {strides = array<i32>} : memref<2x1x2x8xf32, #tpu.memory_space<vmem>>, vector<2x1x1x8xf32>,
    %212 = tpu.concatenate %116, %129, %142, %155, %168, %181, %194, %207 in 1 : vector<2x1xf32>, vector<2x1xf32>, vector<2x1xf32>, vector<2x1xf32>, vector<2x1xf32>, vector<2x1xf32>, vector<2x1xf32>, vector<2x1xf32> -> vector<2x8xf32>
    %c0_73 = arith.constant 0 : index
    %c0_74 = arith.constant 0 : index
    %c1 = arith.constant 1 : index
    %c0_75 = arith.constant 0 : index
    %213 = vector.load %arg4[%c0_73, %c0_74, %c1, %c0_75] : memref<2x1x2x8xf32, #tpu.memory_space<vmem>>, vector<2x1x1x8xf32>
    %214 = vector.shape_cast %213 : vector<2x1x1x8xf32> to vector<2x8xf32>
    %215 = vector.shape_cast %212 : vector<2x8xf32> to vector<2x1x1x8xf32>
    tpu.vector_store %arg4[%c0_73, %c0_74, %c1, %c0_75], %215 {strides = array<i32>} : memref<2x1x2x8xf32, #tpu.memory_space<vmem>>, vector<2x1x1x8xf32>,
    return
  }
  func.func @transform_0(%arg0: i32, %arg1: i32) -> (i32, i32, i32) {
    %c0_i32 = arith.constant 0 : i32
    %c0_i32_0 = arith.constant 0 : i32
    return %arg1, %arg0, %c0_i32 : i32, i32, i32
  }
  func.func @transform_1(%arg0: i32, %arg1: i32) -> (i32, i32, i32) {
    %c0_i32 = arith.constant 0 : i32
    %c0_i32_0 = arith.constant 0 : i32
    %c0_i32_1 = arith.constant 0 : i32
    return %arg1, %c0_i32, %c0_i32_0 : i32, i32, i32
  }
  func.func @transform_2(%arg0: i32, %arg1: i32) -> (i32, i32, i32, i32) {
    %c0_i32 = arith.constant 0 : i32
    %c0_i32_0 = arith.constant 0 : i32
    %c0_i32_1 = arith.constant 0 : i32
    return %arg0, %arg1, %c0_i32, %c0_i32_0 : i32, i32, i32, i32
  }
}

module attributes {stable_mosaic.version = 11 : i64} {
  func.func @_hydra_branch_kernel(%arg0: i32, %arg1: i32, %arg2: memref<1x2x48xf32, #tpu.memory_space<vmem>>, %arg3: memref<1x8x9xf32, #tpu.memory_space<vmem>>, %arg4: memref<2x1x2x8xf32, #tpu.memory_space<vmem>>) attributes {dimension_semantics = [#tpu.dimension_semantics<parallel>, #tpu.dimension_semantics<parallel>], iteration_bounds = array<i64: 1, 4>, scalar_prefetch = 0 : i64, scratch_operands = 0 : i64, tpu.core_type = #tpu.core_type<tc>, window_params = [{transform_indices = @transform_0, window_bounds = array<i64: 1, 2, 48>}, {transform_indices = @transform_1, window_bounds = array<i64: 1, 8, 9>}, {transform_indices = @transform_2, window_bounds = array<i64: 2, 1, 2, 8>}]} {
    %c0 = arith.constant 0 : index
    %c0_0 = arith.constant 0 : index
    %c0_1 = arith.constant 0 : index
    %0 = vector.load %arg2[%c0, %c0_0, %c0_1] : memref<1x2x48xf32, #tpu.memory_space<vmem>>, vector<1x2x48xf32>
    %1 = vector.shape_cast %0 : vector<1x2x48xf32> to vector<2x48xf32>
    %2 = arith.truncf %1 : vector<2x48xf32> to vector<2x48xbf16>
    %3 = vector.extract_strided_slice %2 {offsets = [0, 0], sizes = [2, 32], strides = [1, 1]} : vector<2x48xbf16> to vector<2x32xbf16>
    %4 = vector.extract_strided_slice %2 {offsets = [0, 2], sizes = [2, 32], strides = [1, 1]} : vector<2x48xbf16> to vector<2x32xbf16>
    %5 = vector.extract_strided_slice %2 {offsets = [0, 4], sizes = [2, 32], strides = [1, 1]} : vector<2x48xbf16> to vector<2x32xbf16>
    %6 = vector.extract_strided_slice %2 {offsets = [0, 6], sizes = [2, 32], strides = [1, 1]} : vector<2x48xbf16> to vector<2x32xbf16>
    %7 = vector.extract_strided_slice %2 {offsets = [0, 8], sizes = [2, 32], strides = [1, 1]} : vector<2x48xbf16> to vector<2x32xbf16>
    %8 = vector.extract_strided_slice %2 {offsets = [0, 10], sizes = [2, 32], strides = [1, 1]} : vector<2x48xbf16> to vector<2x32xbf16>
    %9 = vector.extract_strided_slice %2 {offsets = [0, 12], sizes = [2, 32], strides = [1, 1]} : vector<2x48xbf16> to vector<2x32xbf16>
    %10 = vector.extract_strided_slice %2 {offsets = [0, 14], sizes = [2, 32], strides = [1, 1]} : vector<2x48xbf16> to vector<2x32xbf16>
    %11 = vector.extract_strided_slice %2 {offsets = [0, 16], sizes = [2, 32], strides = [1, 1]} : vector<2x48xbf16> to vector<2x32xbf16>
    %12 = vector.shape_cast %3 : vector<2x32xbf16> to vector<2x1x32xbf16>
    %13 = vector.shape_cast %4 : vector<2x32xbf16> to vector<2x1x32xbf16>
    %14 = vector.shape_cast %5 : vector<2x32xbf16> to vector<2x1x32xbf16>
    %15 = vector.shape_cast %6 : vector<2x32xbf16> to vector<2x1x32xbf16>
    %16 = vector.shape_cast %7 : vector<2x32xbf16> to vector<2x1x32xbf16>
    %17 = vector.shape_cast %8 : vector<2x32xbf16> to vector<2x1x32xbf16>
    %18 = vector.shape_cast %9 : vector<2x32xbf16> to vector<2x1x32xbf16>
    %19 = vector.shape_cast %10 : vector<2x32xbf16> to vector<2x1x32xbf16>
    %20 = vector.shape_cast %11 : vector<2x32xbf16> to vector<2x1x32xbf16>
    %21 = tpu.concatenate %12, %13, %14, %15, %16, %17, %18, %19, %20 in 1 : vector<2x1x32xbf16>, vector<2x1x32xbf16>, vector<2x1x32xbf16>, vector<2x1x32xbf16>, vector<2x1x32xbf16>, vector<2x1x32xbf16>, vector<2x1x32xbf16>, vector<2x1x32xbf16>, vector<2x1x32xbf16> -> vector<2x9x32xbf16>
    %c0_2 = arith.constant 0 : index
    %c0_3 = arith.constant 0 : index
    %c0_4 = arith.constant 0 : index
    %22 = vector.load %arg3[%c0_2, %c0_3, %c0_4] : memref<1x8x9xf32, #tpu.memory_space<vmem>>, vector<1x8x9xf32>
    %23 = vector.shape_cast %22 : vector<1x8x9xf32> to vector<8x9xf32>
    %24 = arith.truncf %23 : vector<8x9xf32> to vector<8x9xbf16>
    %25 = vector.shape_cast %24 : vector<8x9xbf16> to vector<1x8x9xbf16>
    %26 = vector.shape_cast %25 : vector<1x8x9xbf16> to vector<1x8x9xbf16>
    %27 = vector.broadcast %26 : vector<1x8x9xbf16> to vector<2x8x9xbf16>
    "tpu.trace_start"() <{level = 10 : i32, message = "nkr,nrl->nkl"}> : () -> ()
    %cst = arith.constant dense<0.000000e+00> : vector<2x8x32xf32>
    %28 = tpu.matmul %27, %21, %cst {dimension_numbers = #tpu.dot_dimension_numbers<[2], [1], [1], [2], [0, 0, 0, 1, 1, 2], [0], [0]>} : vector<2x8x9xbf16>, vector<2x9x32xbf16>, vector<2x8x32xf32> -> vector<2x8x32xf32>
    "tpu.trace_stop"() : () -> ()
    %29 = vector.extract_strided_slice %28 {offsets = [0, 0, 0], sizes = [2, 1, 32], strides = [1, 1, 1]} : vector<2x8x32xf32> to vector<2x1x32xf32>
    %30 = vector.shape_cast %29 : vector<2x1x32xf32> to vector<2x32xf32>
    %31 = vector.extract_strided_slice %28 {offsets = [0, 0, 0], sizes = [2, 1, 32], strides = [1, 1, 1]} : vector<2x8x32xf32> to vector<2x1x32xf32>
    %32 = vector.shape_cast %31 : vector<2x1x32xf32> to vector<2x32xf32>
    %c0_i32 = arith.constant 0 : i32
    %33 = vector.broadcast %c0_i32 : i32 to vector<2x32xi32>
    %c0_i32_5 = arith.constant 0 : i32
    %34 = vector.broadcast %c0_i32_5 : i32 to vector<2x32xi32>
    %35 = vector.extract_strided_slice %28 {offsets = [0, 1, 0], sizes = [2, 1, 32], strides = [1, 1, 1]} : vector<2x8x32xf32> to vector<2x1x32xf32>
    %36 = vector.shape_cast %35 : vector<2x1x32xf32> to vector<2x32xf32>
    %37 = arith.cmpf ogt, %36, %30 : vector<2x32xf32>
    %c1_i32 = arith.constant 1 : i32
    %38 = vector.broadcast %c1_i32 : i32 to vector<2x32xi32>
    %39 = arith.select %37, %38, %33 : vector<2x32xi1>, vector<2x32xi32>
    %40 = arith.select %37, %36, %30 : vector<2x32xi1>, vector<2x32xf32>
    %41 = arith.cmpf olt, %36, %32 : vector<2x32xf32>
    %c1_i32_6 = arith.constant 1 : i32
    %42 = vector.broadcast %c1_i32_6 : i32 to vector<2x32xi32>
    %43 = arith.select %41, %42, %34 : vector<2x32xi1>, vector<2x32xi32>
    %44 = arith.select %41, %36, %32 : vector<2x32xi1>, vector<2x32xf32>
    %45 = vector.extract_strided_slice %28 {offsets = [0, 2, 0], sizes = [2, 1, 32], strides = [1, 1, 1]} : vector<2x8x32xf32> to vector<2x1x32xf32>
    %46 = vector.shape_cast %45 : vector<2x1x32xf32> to vector<2x32xf32>
    %47 = arith.cmpf ogt, %46, %40 : vector<2x32xf32>
    %c2_i32 = arith.constant 2 : i32
    %48 = vector.broadcast %c2_i32 : i32 to vector<2x32xi32>
    %49 = arith.select %47, %48, %39 : vector<2x32xi1>, vector<2x32xi32>
    %50 = arith.select %47, %46, %40 : vector<2x32xi1>, vector<2x32xf32>
    %51 = arith.cmpf olt, %46, %44 : vector<2x32xf32>
    %c2_i32_7 = arith.constant 2 : i32
    %52 = vector.broadcast %c2_i32_7 : i32 to vector<2x32xi32>
    %53 = arith.select %51, %52, %43 : vector<2x32xi1>, vector<2x32xi32>
    %54 = arith.select %51, %46, %44 : vector<2x32xi1>, vector<2x32xf32>
    %55 = vector.extract_strided_slice %28 {offsets = [0, 3, 0], sizes = [2, 1, 32], strides = [1, 1, 1]} : vector<2x8x32xf32> to vector<2x1x32xf32>
    %56 = vector.shape_cast %55 : vector<2x1x32xf32> to vector<2x32xf32>
    %57 = arith.cmpf ogt, %56, %50 : vector<2x32xf32>
    %c3_i32 = arith.constant 3 : i32
    %58 = vector.broadcast %c3_i32 : i32 to vector<2x32xi32>
    %59 = arith.select %57, %58, %49 : vector<2x32xi1>, vector<2x32xi32>
    %60 = arith.select %57, %56, %50 : vector<2x32xi1>, vector<2x32xf32>
    %61 = arith.cmpf olt, %56, %54 : vector<2x32xf32>
    %c3_i32_8 = arith.constant 3 : i32
    %62 = vector.broadcast %c3_i32_8 : i32 to vector<2x32xi32>
    %63 = arith.select %61, %62, %53 : vector<2x32xi1>, vector<2x32xi32>
    %64 = arith.select %61, %56, %54 : vector<2x32xi1>, vector<2x32xf32>
    %65 = vector.extract_strided_slice %28 {offsets = [0, 4, 0], sizes = [2, 1, 32], strides = [1, 1, 1]} : vector<2x8x32xf32> to vector<2x1x32xf32>
    %66 = vector.shape_cast %65 : vector<2x1x32xf32> to vector<2x32xf32>
    %67 = arith.cmpf ogt, %66, %60 : vector<2x32xf32>
    %c4_i32 = arith.constant 4 : i32
    %68 = vector.broadcast %c4_i32 : i32 to vector<2x32xi32>
    %69 = arith.select %67, %68, %59 : vector<2x32xi1>, vector<2x32xi32>
    %70 = arith.select %67, %66, %60 : vector<2x32xi1>, vector<2x32xf32>
    %71 = arith.cmpf olt, %66, %64 : vector<2x32xf32>
    %c4_i32_9 = arith.constant 4 : i32
    %72 = vector.broadcast %c4_i32_9 : i32 to vector<2x32xi32>
    %73 = arith.select %71, %72, %63 : vector<2x32xi1>, vector<2x32xi32>
    %74 = arith.select %71, %66, %64 : vector<2x32xi1>, vector<2x32xf32>
    %75 = vector.extract_strided_slice %28 {offsets = [0, 5, 0], sizes = [2, 1, 32], strides = [1, 1, 1]} : vector<2x8x32xf32> to vector<2x1x32xf32>
    %76 = vector.shape_cast %75 : vector<2x1x32xf32> to vector<2x32xf32>
    %77 = arith.cmpf ogt, %76, %70 : vector<2x32xf32>
    %c5_i32 = arith.constant 5 : i32
    %78 = vector.broadcast %c5_i32 : i32 to vector<2x32xi32>
    %79 = arith.select %77, %78, %69 : vector<2x32xi1>, vector<2x32xi32>
    %80 = arith.select %77, %76, %70 : vector<2x32xi1>, vector<2x32xf32>
    %81 = arith.cmpf olt, %76, %74 : vector<2x32xf32>
    %c5_i32_10 = arith.constant 5 : i32
    %82 = vector.broadcast %c5_i32_10 : i32 to vector<2x32xi32>
    %83 = arith.select %81, %82, %73 : vector<2x32xi1>, vector<2x32xi32>
    %84 = arith.select %81, %76, %74 : vector<2x32xi1>, vector<2x32xf32>
    %85 = vector.extract_strided_slice %28 {offsets = [0, 6, 0], sizes = [2, 1, 32], strides = [1, 1, 1]} : vector<2x8x32xf32> to vector<2x1x32xf32>
    %86 = vector.shape_cast %85 : vector<2x1x32xf32> to vector<2x32xf32>
    %87 = arith.cmpf ogt, %86, %80 : vector<2x32xf32>
    %c6_i32 = arith.constant 6 : i32
    %88 = vector.broadcast %c6_i32 : i32 to vector<2x32xi32>
    %89 = arith.select %87, %88, %79 : vector<2x32xi1>, vector<2x32xi32>
    %90 = arith.select %87, %86, %80 : vector<2x32xi1>, vector<2x32xf32>
    %91 = arith.cmpf olt, %86, %84 : vector<2x32xf32>
    %c6_i32_11 = arith.constant 6 : i32
    %92 = vector.broadcast %c6_i32_11 : i32 to vector<2x32xi32>
    %93 = arith.select %91, %92, %83 : vector<2x32xi1>, vector<2x32xi32>
    %94 = arith.select %91, %86, %84 : vector<2x32xi1>, vector<2x32xf32>
    %95 = vector.extract_strided_slice %28 {offsets = [0, 7, 0], sizes = [2, 1, 32], strides = [1, 1, 1]} : vector<2x8x32xf32> to vector<2x1x32xf32>
    %96 = vector.shape_cast %95 : vector<2x1x32xf32> to vector<2x32xf32>
    %97 = arith.cmpf ogt, %96, %90 : vector<2x32xf32>
    %c7_i32 = arith.constant 7 : i32
    %98 = vector.broadcast %c7_i32 : i32 to vector<2x32xi32>
    %99 = arith.select %97, %98, %89 : vector<2x32xi1>, vector<2x32xi32>
    %100 = arith.select %97, %96, %90 : vector<2x32xi1>, vector<2x32xf32>
    %101 = arith.cmpf olt, %96, %94 : vector<2x32xf32>
    %c7_i32_12 = arith.constant 7 : i32
    %102 = vector.broadcast %c7_i32_12 : i32 to vector<2x32xi32>
    %103 = arith.select %101, %102, %93 : vector<2x32xi1>, vector<2x32xi32>
    %c0_i32_13 = arith.constant 0 : i32
    %104 = vector.broadcast %c0_i32_13 : i32 to vector<2x32xi32>
    %105 = arith.cmpi eq, %99, %104 : vector<2x32xi32>
    %cst_14 = arith.constant 0.000000e+00 : f32
    %106 = vector.broadcast %cst_14 : f32 to vector<2x32xf32>
    %107 = arith.select %105, %100, %106 : vector<2x32xi1>, vector<2x32xf32>
    %cst_15 = arith.constant dense<0.000000e+00> : vector<2xf32>
    %108 = vector.multi_reduction <add>, %107, %cst_15 [1] : vector<2x32xf32> to vector<2xf32>
    %109 = vector.shape_cast %108 : vector<2xf32> to vector<2x1xf32>
    %c0_i32_16 = arith.constant 0 : i32
    %110 = vector.broadcast %c0_i32_16 : i32 to vector<2x32xi32>
    %111 = arith.cmpi eq, %103, %110 : vector<2x32xi32>
    %cst_17 = arith.constant 1.000000e+00 : f32
    %cst_18 = arith.constant 0.000000e+00 : f32
    %112 = vector.broadcast %cst_17 : f32 to vector<2x32xf32>
    %113 = vector.broadcast %cst_18 : f32 to vector<2x32xf32>
    %114 = arith.select %111, %112, %113 : vector<2x32xi1>, vector<2x32xf32>
    %cst_19 = arith.constant dense<0.000000e+00> : vector<2xf32>
    %115 = vector.multi_reduction <add>, %114, %cst_19 [1] : vector<2x32xf32> to vector<2xf32>
    %116 = vector.shape_cast %115 : vector<2xf32> to vector<2x1xf32>
    %c1_i32_20 = arith.constant 1 : i32
    %117 = vector.broadcast %c1_i32_20 : i32 to vector<2x32xi32>
    %118 = arith.cmpi eq, %99, %117 : vector<2x32xi32>
    %cst_21 = arith.constant 0.000000e+00 : f32
    %119 = vector.broadcast %cst_21 : f32 to vector<2x32xf32>
    %120 = arith.select %118, %100, %119 : vector<2x32xi1>, vector<2x32xf32>
    %cst_22 = arith.constant dense<0.000000e+00> : vector<2xf32>
    %121 = vector.multi_reduction <add>, %120, %cst_22 [1] : vector<2x32xf32> to vector<2xf32>
    %122 = vector.shape_cast %121 : vector<2xf32> to vector<2x1xf32>
    %c1_i32_23 = arith.constant 1 : i32
    %123 = vector.broadcast %c1_i32_23 : i32 to vector<2x32xi32>
    %124 = arith.cmpi eq, %103, %123 : vector<2x32xi32>
    %cst_24 = arith.constant 1.000000e+00 : f32
    %cst_25 = arith.constant 0.000000e+00 : f32
    %125 = vector.broadcast %cst_24 : f32 to vector<2x32xf32>
    %126 = vector.broadcast %cst_25 : f32 to vector<2x32xf32>
    %127 = arith.select %124, %125, %126 : vector<2x32xi1>, vector<2x32xf32>
    %cst_26 = arith.constant dense<0.000000e+00> : vector<2xf32>
    %128 = vector.multi_reduction <add>, %127, %cst_26 [1] : vector<2x32xf32> to vector<2xf32>
    %129 = vector.shape_cast %128 : vector<2xf32> to vector<2x1xf32>
    %c2_i32_27 = arith.constant 2 : i32
    %130 = vector.broadcast %c2_i32_27 : i32 to vector<2x32xi32>
    %131 = arith.cmpi eq, %99, %130 : vector<2x32xi32>
    %cst_28 = arith.constant 0.000000e+00 : f32
    %132 = vector.broadcast %cst_28 : f32 to vector<2x32xf32>
    %133 = arith.select %131, %100, %132 : vector<2x32xi1>, vector<2x32xf32>
    %cst_29 = arith.constant dense<0.000000e+00> : vector<2xf32>
    %134 = vector.multi_reduction <add>, %133, %cst_29 [1] : vector<2x32xf32> to vector<2xf32>
    %135 = vector.shape_cast %134 : vector<2xf32> to vector<2x1xf32>
    %c2_i32_30 = arith.constant 2 : i32
    %136 = vector.broadcast %c2_i32_30 : i32 to vector<2x32xi32>
    %137 = arith.cmpi eq, %103, %136 : vector<2x32xi32>
    %cst_31 = arith.constant 1.000000e+00 : f32
    %cst_32 = arith.constant 0.000000e+00 : f32
    %138 = vector.broadcast %cst_31 : f32 to vector<2x32xf32>
    %139 = vector.broadcast %cst_32 : f32 to vector<2x32xf32>
    %140 = arith.select %137, %138, %139 : vector<2x32xi1>, vector<2x32xf32>
    %cst_33 = arith.constant dense<0.000000e+00> : vector<2xf32>
    %141 = vector.multi_reduction <add>, %140, %cst_33 [1] : vector<2x32xf32> to vector<2xf32>
    %142 = vector.shape_cast %141 : vector<2xf32> to vector<2x1xf32>
    %c3_i32_34 = arith.constant 3 : i32
    %143 = vector.broadcast %c3_i32_34 : i32 to vector<2x32xi32>
    %144 = arith.cmpi eq, %99, %143 : vector<2x32xi32>
    %cst_35 = arith.constant 0.000000e+00 : f32
    %145 = vector.broadcast %cst_35 : f32 to vector<2x32xf32>
    %146 = arith.select %144, %100, %145 : vector<2x32xi1>, vector<2x32xf32>
    %cst_36 = arith.constant dense<0.000000e+00> : vector<2xf32>
    %147 = vector.multi_reduction <add>, %146, %cst_36 [1] : vector<2x32xf32> to vector<2xf32>
    %148 = vector.shape_cast %147 : vector<2xf32> to vector<2x1xf32>
    %c3_i32_37 = arith.constant 3 : i32
    %149 = vector.broadcast %c3_i32_37 : i32 to vector<2x32xi32>
    %150 = arith.cmpi eq, %103, %149 : vector<2x32xi32>
    %cst_38 = arith.constant 1.000000e+00 : f32
    %cst_39 = arith.constant 0.000000e+00 : f32
    %151 = vector.broadcast %cst_38 : f32 to vector<2x32xf32>
    %152 = vector.broadcast %cst_39 : f32 to vector<2x32xf32>
    %153 = arith.select %150, %151, %152 : vector<2x32xi1>, vector<2x32xf32>
    %cst_40 = arith.constant dense<0.000000e+00> : vector<2xf32>
    %154 = vector.multi_reduction <add>, %153, %cst_40 [1] : vector<2x32xf32> to vector<2xf32>
    %155 = vector.shape_cast %154 : vector<2xf32> to vector<2x1xf32>
    %c4_i32_41 = arith.constant 4 : i32
    %156 = vector.broadcast %c4_i32_41 : i32 to vector<2x32xi32>
    %157 = arith.cmpi eq, %99, %156 : vector<2x32xi32>
    %cst_42 = arith.constant 0.000000e+00 : f32
    %158 = vector.broadcast %cst_42 : f32 to vector<2x32xf32>
    %159 = arith.select %157, %100, %158 : vector<2x32xi1>, vector<2x32xf32>
    %cst_43 = arith.constant dense<0.000000e+00> : vector<2xf32>
    %160 = vector.multi_reduction <add>, %159, %cst_43 [1] : vector<2x32xf32> to vector<2xf32>
    %161 = vector.shape_cast %160 : vector<2xf32> to vector<2x1xf32>
    %c4_i32_44 = arith.constant 4 : i32
    %162 = vector.broadcast %c4_i32_44 : i32 to vector<2x32xi32>
    %163 = arith.cmpi eq, %103, %162 : vector<2x32xi32>
    %cst_45 = arith.constant 1.000000e+00 : f32
    %cst_46 = arith.constant 0.000000e+00 : f32
    %164 = vector.broadcast %cst_45 : f32 to vector<2x32xf32>
    %165 = vector.broadcast %cst_46 : f32 to vector<2x32xf32>
    %166 = arith.select %163, %164, %165 : vector<2x32xi1>, vector<2x32xf32>
    %cst_47 = arith.constant dense<0.000000e+00> : vector<2xf32>
    %167 = vector.multi_reduction <add>, %166, %cst_47 [1] : vector<2x32xf32> to vector<2xf32>
    %168 = vector.shape_cast %167 : vector<2xf32> to vector<2x1xf32>
    %c5_i32_48 = arith.constant 5 : i32
    %169 = vector.broadcast %c5_i32_48 : i32 to vector<2x32xi32>
    %170 = arith.cmpi eq, %99, %169 : vector<2x32xi32>
    %cst_49 = arith.constant 0.000000e+00 : f32
    %171 = vector.broadcast %cst_49 : f32 to vector<2x32xf32>
    %172 = arith.select %170, %100, %171 : vector<2x32xi1>, vector<2x32xf32>
    %cst_50 = arith.constant dense<0.000000e+00> : vector<2xf32>
    %173 = vector.multi_reduction <add>, %172, %cst_50 [1] : vector<2x32xf32> to vector<2xf32>
    %174 = vector.shape_cast %173 : vector<2xf32> to vector<2x1xf32>
    %c5_i32_51 = arith.constant 5 : i32
    %175 = vector.broadcast %c5_i32_51 : i32 to vector<2x32xi32>
    %176 = arith.cmpi eq, %103, %175 : vector<2x32xi32>
    %cst_52 = arith.constant 1.000000e+00 : f32
    %cst_53 = arith.constant 0.000000e+00 : f32
    %177 = vector.broadcast %cst_52 : f32 to vector<2x32xf32>
    %178 = vector.broadcast %cst_53 : f32 to vector<2x32xf32>
    %179 = arith.select %176, %177, %178 : vector<2x32xi1>, vector<2x32xf32>
    %cst_54 = arith.constant dense<0.000000e+00> : vector<2xf32>
    %180 = vector.multi_reduction <add>, %179, %cst_54 [1] : vector<2x32xf32> to vector<2xf32>
    %181 = vector.shape_cast %180 : vector<2xf32> to vector<2x1xf32>
    %c6_i32_55 = arith.constant 6 : i32
    %182 = vector.broadcast %c6_i32_55 : i32 to vector<2x32xi32>
    %183 = arith.cmpi eq, %99, %182 : vector<2x32xi32>
    %cst_56 = arith.constant 0.000000e+00 : f32
    %184 = vector.broadcast %cst_56 : f32 to vector<2x32xf32>
    %185 = arith.select %183, %100, %184 : vector<2x32xi1>, vector<2x32xf32>
    %cst_57 = arith.constant dense<0.000000e+00> : vector<2xf32>
    %186 = vector.multi_reduction <add>, %185, %cst_57 [1] : vector<2x32xf32> to vector<2xf32>
    %187 = vector.shape_cast %186 : vector<2xf32> to vector<2x1xf32>
    %c6_i32_58 = arith.constant 6 : i32
    %188 = vector.broadcast %c6_i32_58 : i32 to vector<2x32xi32>
    %189 = arith.cmpi eq, %103, %188 : vector<2x32xi32>
    %cst_59 = arith.constant 1.000000e+00 : f32
    %cst_60 = arith.constant 0.000000e+00 : f32
    %190 = vector.broadcast %cst_59 : f32 to vector<2x32xf32>
    %191 = vector.broadcast %cst_60 : f32 to vector<2x32xf32>
    %192 = arith.select %189, %190, %191 : vector<2x32xi1>, vector<2x32xf32>
    %cst_61 = arith.constant dense<0.000000e+00> : vector<2xf32>
    %193 = vector.multi_reduction <add>, %192, %cst_61 [1] : vector<2x32xf32> to vector<2xf32>
    %194 = vector.shape_cast %193 : vector<2xf32> to vector<2x1xf32>
    %c7_i32_62 = arith.constant 7 : i32
    %195 = vector.broadcast %c7_i32_62 : i32 to vector<2x32xi32>
    %196 = arith.cmpi eq, %99, %195 : vector<2x32xi32>
    %cst_63 = arith.constant 0.000000e+00 : f32
    %197 = vector.broadcast %cst_63 : f32 to vector<2x32xf32>
    %198 = arith.select %196, %100, %197 : vector<2x32xi1>, vector<2x32xf32>
    %cst_64 = arith.constant dense<0.000000e+00> : vector<2xf32>
    %199 = vector.multi_reduction <add>, %198, %cst_64 [1] : vector<2x32xf32> to vector<2xf32>
    %200 = vector.shape_cast %199 : vector<2xf32> to vector<2x1xf32>
    %c7_i32_65 = arith.constant 7 : i32
    %201 = vector.broadcast %c7_i32_65 : i32 to vector<2x32xi32>
    %202 = arith.cmpi eq, %103, %201 : vector<2x32xi32>
    %cst_66 = arith.constant 1.000000e+00 : f32
    %cst_67 = arith.constant 0.000000e+00 : f32
    %203 = vector.broadcast %cst_66 : f32 to vector<2x32xf32>
    %204 = vector.broadcast %cst_67 : f32 to vector<2x32xf32>
    %205 = arith.select %202, %203, %204 : vector<2x32xi1>, vector<2x32xf32>
    %cst_68 = arith.constant dense<0.000000e+00> : vector<2xf32>
    %206 = vector.multi_reduction <add>, %205, %cst_68 [1] : vector<2x32xf32> to vector<2xf32>
    %207 = vector.shape_cast %206 : vector<2xf32> to vector<2x1xf32>
    %208 = tpu.concatenate %109, %122, %135, %148, %161, %174, %187, %200 in 1 : vector<2x1xf32>, vector<2x1xf32>, vector<2x1xf32>, vector<2x1xf32>, vector<2x1xf32>, vector<2x1xf32>, vector<2x1xf32>, vector<2x1xf32> -> vector<2x8xf32>
    %c0_69 = arith.constant 0 : index
    %c0_70 = arith.constant 0 : index
    %c0_71 = arith.constant 0 : index
    %c0_72 = arith.constant 0 : index
    %209 = vector.load %arg4[%c0_69, %c0_70, %c0_71, %c0_72] : memref<2x1x2x8xf32, #tpu.memory_space<vmem>>, vector<2x1x1x8xf32>
    %210 = vector.shape_cast %209 : vector<2x1x1x8xf32> to vector<2x8xf32>
    %211 = vector.shape_cast %208 : vector<2x8xf32> to vector<2x1x1x8xf32>
    tpu.vector_store %arg4[%c0_69, %c0_70, %c0_71, %c0_72], %211 {strides = array<i32>} : memref<2x1x2x8xf32, #tpu.memory_space<vmem>>, vector<2x1x1x8xf32>,
    %212 = tpu.concatenate %116, %129, %142, %155, %168, %181, %194, %207 in 1 : vector<2x1xf32>, vector<2x1xf32>, vector<2x1xf32>, vector<2x1xf32>, vector<2x1xf32>, vector<2x1xf32>, vector<2x1xf32>, vector<2x1xf32> -> vector<2x8xf32>
    %c0_73 = arith.constant 0 : index
    %c0_74 = arith.constant 0 : index
    %c1 = arith.constant 1 : index
    %c0_75 = arith.constant 0 : index
    %213 = vector.load %arg4[%c0_73, %c0_74, %c1, %c0_75] : memref<2x1x2x8xf32, #tpu.memory_space<vmem>>, vector<2x1x1x8xf32>
    %214 = vector.shape_cast %213 : vector<2x1x1x8xf32> to vector<2x8xf32>
    %215 = vector.shape_cast %212 : vector<2x8xf32> to vector<2x1x1x8xf32>
    tpu.vector_store %arg4[%c0_73, %c0_74, %c1, %c0_75], %215 {strides = array<i32>} : memref<2x1x2x8xf32, #tpu.memory_space<vmem>>, vector<2x1x1x8xf32>,
    return
  }
  func.func @transform_0(%arg0: i32, %arg1: i32) -> (i32, i32, i32) {
    %c0_i32 = arith.constant 0 : i32
    %c0_i32_0 = arith.constant 0 : i32
    return %arg1, %arg0, %c0_i32 : i32, i32, i32
  }
  func.func @transform_1(%arg0: i32, %arg1: i32) -> (i32, i32, i32) {
    %c0_i32 = arith.constant 0 : i32
    %c0_i32_0 = arith.constant 0 : i32
    %c0_i32_1 = arith.constant 0 : i32
    return %arg1, %c0_i32, %c0_i32_0 : i32, i32, i32
  }
  func.func @transform_2(%arg0: i32, %arg1: i32) -> (i32, i32, i32, i32) {
    %c0_i32 = arith.constant 0 : i32
    %c0_i32_0 = arith.constant 0 : i32
    %c0_i32_1 = arith.constant 0 : i32
    return %arg0, %arg1, %c0_i32, %c0_i32_0 : i32, i32, i32, i32
  }
}

module attributes {stable_mosaic.version = 11 : i64} {
  func.func @_hydra_branch_kernel(%arg0: i32, %arg1: i32, %arg2: memref<1x2x40xf32, #tpu.memory_space<vmem>>, %arg3: memref<1x8x9xf32, #tpu.memory_space<vmem>>, %arg4: memref<2x1x2x8xf32, #tpu.memory_space<vmem>>) attributes {dimension_semantics = [#tpu.dimension_semantics<parallel>, #tpu.dimension_semantics<parallel>], iteration_bounds = array<i64: 1, 4>, scalar_prefetch = 0 : i64, scratch_operands = 0 : i64, tpu.core_type = #tpu.core_type<tc>, window_params = [{transform_indices = @transform_0, window_bounds = array<i64: 1, 2, 40>}, {transform_indices = @transform_1, window_bounds = array<i64: 1, 8, 9>}, {transform_indices = @transform_2, window_bounds = array<i64: 2, 1, 2, 8>}]} {
    %c0 = arith.constant 0 : index
    %c0_0 = arith.constant 0 : index
    %c0_1 = arith.constant 0 : index
    %0 = vector.load %arg2[%c0, %c0_0, %c0_1] : memref<1x2x40xf32, #tpu.memory_space<vmem>>, vector<1x2x40xf32>
    %1 = vector.shape_cast %0 : vector<1x2x40xf32> to vector<2x40xf32>
    %2 = arith.truncf %1 : vector<2x40xf32> to vector<2x40xbf16>
    %3 = vector.extract_strided_slice %2 {offsets = [0, 0], sizes = [2, 32], strides = [1, 1]} : vector<2x40xbf16> to vector<2x32xbf16>
    %4 = vector.extract_strided_slice %2 {offsets = [0, 1], sizes = [2, 32], strides = [1, 1]} : vector<2x40xbf16> to vector<2x32xbf16>
    %5 = vector.extract_strided_slice %2 {offsets = [0, 2], sizes = [2, 32], strides = [1, 1]} : vector<2x40xbf16> to vector<2x32xbf16>
    %6 = vector.extract_strided_slice %2 {offsets = [0, 3], sizes = [2, 32], strides = [1, 1]} : vector<2x40xbf16> to vector<2x32xbf16>
    %7 = vector.extract_strided_slice %2 {offsets = [0, 4], sizes = [2, 32], strides = [1, 1]} : vector<2x40xbf16> to vector<2x32xbf16>
    %8 = vector.extract_strided_slice %2 {offsets = [0, 5], sizes = [2, 32], strides = [1, 1]} : vector<2x40xbf16> to vector<2x32xbf16>
    %9 = vector.extract_strided_slice %2 {offsets = [0, 6], sizes = [2, 32], strides = [1, 1]} : vector<2x40xbf16> to vector<2x32xbf16>
    %10 = vector.extract_strided_slice %2 {offsets = [0, 7], sizes = [2, 32], strides = [1, 1]} : vector<2x40xbf16> to vector<2x32xbf16>
    %11 = vector.extract_strided_slice %2 {offsets = [0, 8], sizes = [2, 32], strides = [1, 1]} : vector<2x40xbf16> to vector<2x32xbf16>
    %12 = vector.shape_cast %3 : vector<2x32xbf16> to vector<2x1x32xbf16>
    %13 = vector.shape_cast %4 : vector<2x32xbf16> to vector<2x1x32xbf16>
    %14 = vector.shape_cast %5 : vector<2x32xbf16> to vector<2x1x32xbf16>
    %15 = vector.shape_cast %6 : vector<2x32xbf16> to vector<2x1x32xbf16>
    %16 = vector.shape_cast %7 : vector<2x32xbf16> to vector<2x1x32xbf16>
    %17 = vector.shape_cast %8 : vector<2x32xbf16> to vector<2x1x32xbf16>
    %18 = vector.shape_cast %9 : vector<2x32xbf16> to vector<2x1x32xbf16>
    %19 = vector.shape_cast %10 : vector<2x32xbf16> to vector<2x1x32xbf16>
    %20 = vector.shape_cast %11 : vector<2x32xbf16> to vector<2x1x32xbf16>
    %21 = tpu.concatenate %12, %13, %14, %15, %16, %17, %18, %19, %20 in 1 : vector<2x1x32xbf16>, vector<2x1x32xbf16>, vector<2x1x32xbf16>, vector<2x1x32xbf16>, vector<2x1x32xbf16>, vector<2x1x32xbf16>, vector<2x1x32xbf16>, vector<2x1x32xbf16>, vector<2x1x32xbf16> -> vector<2x9x32xbf16>
    %c0_2 = arith.constant 0 : index
    %c0_3 = arith.constant 0 : index
    %c0_4 = arith.constant 0 : index
    %22 = vector.load %arg3[%c0_2, %c0_3, %c0_4] : memref<1x8x9xf32, #tpu.memory_space<vmem>>, vector<1x8x9xf32>
    %23 = vector.shape_cast %22 : vector<1x8x9xf32> to vector<8x9xf32>
    %24 = arith.truncf %23 : vector<8x9xf32> to vector<8x9xbf16>
    %25 = vector.shape_cast %24 : vector<8x9xbf16> to vector<1x8x9xbf16>
    %26 = vector.shape_cast %25 : vector<1x8x9xbf16> to vector<1x8x9xbf16>
    %27 = vector.broadcast %26 : vector<1x8x9xbf16> to vector<2x8x9xbf16>
    "tpu.trace_start"() <{level = 10 : i32, message = "nkr,nrl->nkl"}> : () -> ()
    %cst = arith.constant dense<0.000000e+00> : vector<2x8x32xf32>
    %28 = tpu.matmul %27, %21, %cst {dimension_numbers = #tpu.dot_dimension_numbers<[2], [1], [1], [2], [0, 0, 0, 1, 1, 2], [0], [0]>} : vector<2x8x9xbf16>, vector<2x9x32xbf16>, vector<2x8x32xf32> -> vector<2x8x32xf32>
    "tpu.trace_stop"() : () -> ()
    %29 = vector.extract_strided_slice %28 {offsets = [0, 0, 0], sizes = [2, 1, 32], strides = [1, 1, 1]} : vector<2x8x32xf32> to vector<2x1x32xf32>
    %30 = vector.shape_cast %29 : vector<2x1x32xf32> to vector<2x32xf32>
    %31 = vector.extract_strided_slice %28 {offsets = [0, 0, 0], sizes = [2, 1, 32], strides = [1, 1, 1]} : vector<2x8x32xf32> to vector<2x1x32xf32>
    %32 = vector.shape_cast %31 : vector<2x1x32xf32> to vector<2x32xf32>
    %c0_i32 = arith.constant 0 : i32
    %33 = vector.broadcast %c0_i32 : i32 to vector<2x32xi32>
    %c0_i32_5 = arith.constant 0 : i32
    %34 = vector.broadcast %c0_i32_5 : i32 to vector<2x32xi32>
    %35 = vector.extract_strided_slice %28 {offsets = [0, 1, 0], sizes = [2, 1, 32], strides = [1, 1, 1]} : vector<2x8x32xf32> to vector<2x1x32xf32>
    %36 = vector.shape_cast %35 : vector<2x1x32xf32> to vector<2x32xf32>
    %37 = arith.cmpf ogt, %36, %30 : vector<2x32xf32>
    %c1_i32 = arith.constant 1 : i32
    %38 = vector.broadcast %c1_i32 : i32 to vector<2x32xi32>
    %39 = arith.select %37, %38, %33 : vector<2x32xi1>, vector<2x32xi32>
    %40 = arith.select %37, %36, %30 : vector<2x32xi1>, vector<2x32xf32>
    %41 = arith.cmpf olt, %36, %32 : vector<2x32xf32>
    %c1_i32_6 = arith.constant 1 : i32
    %42 = vector.broadcast %c1_i32_6 : i32 to vector<2x32xi32>
    %43 = arith.select %41, %42, %34 : vector<2x32xi1>, vector<2x32xi32>
    %44 = arith.select %41, %36, %32 : vector<2x32xi1>, vector<2x32xf32>
    %45 = vector.extract_strided_slice %28 {offsets = [0, 2, 0], sizes = [2, 1, 32], strides = [1, 1, 1]} : vector<2x8x32xf32> to vector<2x1x32xf32>
    %46 = vector.shape_cast %45 : vector<2x1x32xf32> to vector<2x32xf32>
    %47 = arith.cmpf ogt, %46, %40 : vector<2x32xf32>
    %c2_i32 = arith.constant 2 : i32
    %48 = vector.broadcast %c2_i32 : i32 to vector<2x32xi32>
    %49 = arith.select %47, %48, %39 : vector<2x32xi1>, vector<2x32xi32>
    %50 = arith.select %47, %46, %40 : vector<2x32xi1>, vector<2x32xf32>
    %51 = arith.cmpf olt, %46, %44 : vector<2x32xf32>
    %c2_i32_7 = arith.constant 2 : i32
    %52 = vector.broadcast %c2_i32_7 : i32 to vector<2x32xi32>
    %53 = arith.select %51, %52, %43 : vector<2x32xi1>, vector<2x32xi32>
    %54 = arith.select %51, %46, %44 : vector<2x32xi1>, vector<2x32xf32>
    %55 = vector.extract_strided_slice %28 {offsets = [0, 3, 0], sizes = [2, 1, 32], strides = [1, 1, 1]} : vector<2x8x32xf32> to vector<2x1x32xf32>
    %56 = vector.shape_cast %55 : vector<2x1x32xf32> to vector<2x32xf32>
    %57 = arith.cmpf ogt, %56, %50 : vector<2x32xf32>
    %c3_i32 = arith.constant 3 : i32
    %58 = vector.broadcast %c3_i32 : i32 to vector<2x32xi32>
    %59 = arith.select %57, %58, %49 : vector<2x32xi1>, vector<2x32xi32>
    %60 = arith.select %57, %56, %50 : vector<2x32xi1>, vector<2x32xf32>
    %61 = arith.cmpf olt, %56, %54 : vector<2x32xf32>
    %c3_i32_8 = arith.constant 3 : i32
    %62 = vector.broadcast %c3_i32_8 : i32 to vector<2x32xi32>
    %63 = arith.select %61, %62, %53 : vector<2x32xi1>, vector<2x32xi32>
    %64 = arith.select %61, %56, %54 : vector<2x32xi1>, vector<2x32xf32>
    %65 = vector.extract_strided_slice %28 {offsets = [0, 4, 0], sizes = [2, 1, 32], strides = [1, 1, 1]} : vector<2x8x32xf32> to vector<2x1x32xf32>
    %66 = vector.shape_cast %65 : vector<2x1x32xf32> to vector<2x32xf32>
    %67 = arith.cmpf ogt, %66, %60 : vector<2x32xf32>
    %c4_i32 = arith.constant 4 : i32
    %68 = vector.broadcast %c4_i32 : i32 to vector<2x32xi32>
    %69 = arith.select %67, %68, %59 : vector<2x32xi1>, vector<2x32xi32>
    %70 = arith.select %67, %66, %60 : vector<2x32xi1>, vector<2x32xf32>
    %71 = arith.cmpf olt, %66, %64 : vector<2x32xf32>
    %c4_i32_9 = arith.constant 4 : i32
    %72 = vector.broadcast %c4_i32_9 : i32 to vector<2x32xi32>
    %73 = arith.select %71, %72, %63 : vector<2x32xi1>, vector<2x32xi32>
    %74 = arith.select %71, %66, %64 : vector<2x32xi1>, vector<2x32xf32>
    %75 = vector.extract_strided_slice %28 {offsets = [0, 5, 0], sizes = [2, 1, 32], strides = [1, 1, 1]} : vector<2x8x32xf32> to vector<2x1x32xf32>
    %76 = vector.shape_cast %75 : vector<2x1x32xf32> to vector<2x32xf32>
    %77 = arith.cmpf ogt, %76, %70 : vector<2x32xf32>
    %c5_i32 = arith.constant 5 : i32
    %78 = vector.broadcast %c5_i32 : i32 to vector<2x32xi32>
    %79 = arith.select %77, %78, %69 : vector<2x32xi1>, vector<2x32xi32>
    %80 = arith.select %77, %76, %70 : vector<2x32xi1>, vector<2x32xf32>
    %81 = arith.cmpf olt, %76, %74 : vector<2x32xf32>
    %c5_i32_10 = arith.constant 5 : i32
    %82 = vector.broadcast %c5_i32_10 : i32 to vector<2x32xi32>
    %83 = arith.select %81, %82, %73 : vector<2x32xi1>, vector<2x32xi32>
    %84 = arith.select %81, %76, %74 : vector<2x32xi1>, vector<2x32xf32>
    %85 = vector.extract_strided_slice %28 {offsets = [0, 6, 0], sizes = [2, 1, 32], strides = [1, 1, 1]} : vector<2x8x32xf32> to vector<2x1x32xf32>
    %86 = vector.shape_cast %85 : vector<2x1x32xf32> to vector<2x32xf32>
    %87 = arith.cmpf ogt, %86, %80 : vector<2x32xf32>
    %c6_i32 = arith.constant 6 : i32
    %88 = vector.broadcast %c6_i32 : i32 to vector<2x32xi32>
    %89 = arith.select %87, %88, %79 : vector<2x32xi1>, vector<2x32xi32>
    %90 = arith.select %87, %86, %80 : vector<2x32xi1>, vector<2x32xf32>
    %91 = arith.cmpf olt, %86, %84 : vector<2x32xf32>
    %c6_i32_11 = arith.constant 6 : i32
    %92 = vector.broadcast %c6_i32_11 : i32 to vector<2x32xi32>
    %93 = arith.select %91, %92, %83 : vector<2x32xi1>, vector<2x32xi32>
    %94 = arith.select %91, %86, %84 : vector<2x32xi1>, vector<2x32xf32>
    %95 = vector.extract_strided_slice %28 {offsets = [0, 7, 0], sizes = [2, 1, 32], strides = [1, 1, 1]} : vector<2x8x32xf32> to vector<2x1x32xf32>
    %96 = vector.shape_cast %95 : vector<2x1x32xf32> to vector<2x32xf32>
    %97 = arith.cmpf ogt, %96, %90 : vector<2x32xf32>
    %c7_i32 = arith.constant 7 : i32
    %98 = vector.broadcast %c7_i32 : i32 to vector<2x32xi32>
    %99 = arith.select %97, %98, %89 : vector<2x32xi1>, vector<2x32xi32>
    %100 = arith.select %97, %96, %90 : vector<2x32xi1>, vector<2x32xf32>
    %101 = arith.cmpf olt, %96, %94 : vector<2x32xf32>
    %c7_i32_12 = arith.constant 7 : i32
    %102 = vector.broadcast %c7_i32_12 : i32 to vector<2x32xi32>
    %103 = arith.select %101, %102, %93 : vector<2x32xi1>, vector<2x32xi32>
    %c0_i32_13 = arith.constant 0 : i32
    %104 = vector.broadcast %c0_i32_13 : i32 to vector<2x32xi32>
    %105 = arith.cmpi eq, %99, %104 : vector<2x32xi32>
    %cst_14 = arith.constant 0.000000e+00 : f32
    %106 = vector.broadcast %cst_14 : f32 to vector<2x32xf32>
    %107 = arith.select %105, %100, %106 : vector<2x32xi1>, vector<2x32xf32>
    %cst_15 = arith.constant dense<0.000000e+00> : vector<2xf32>
    %108 = vector.multi_reduction <add>, %107, %cst_15 [1] : vector<2x32xf32> to vector<2xf32>
    %109 = vector.shape_cast %108 : vector<2xf32> to vector<2x1xf32>
    %c0_i32_16 = arith.constant 0 : i32
    %110 = vector.broadcast %c0_i32_16 : i32 to vector<2x32xi32>
    %111 = arith.cmpi eq, %103, %110 : vector<2x32xi32>
    %cst_17 = arith.constant 1.000000e+00 : f32
    %cst_18 = arith.constant 0.000000e+00 : f32
    %112 = vector.broadcast %cst_17 : f32 to vector<2x32xf32>
    %113 = vector.broadcast %cst_18 : f32 to vector<2x32xf32>
    %114 = arith.select %111, %112, %113 : vector<2x32xi1>, vector<2x32xf32>
    %cst_19 = arith.constant dense<0.000000e+00> : vector<2xf32>
    %115 = vector.multi_reduction <add>, %114, %cst_19 [1] : vector<2x32xf32> to vector<2xf32>
    %116 = vector.shape_cast %115 : vector<2xf32> to vector<2x1xf32>
    %c1_i32_20 = arith.constant 1 : i32
    %117 = vector.broadcast %c1_i32_20 : i32 to vector<2x32xi32>
    %118 = arith.cmpi eq, %99, %117 : vector<2x32xi32>
    %cst_21 = arith.constant 0.000000e+00 : f32
    %119 = vector.broadcast %cst_21 : f32 to vector<2x32xf32>
    %120 = arith.select %118, %100, %119 : vector<2x32xi1>, vector<2x32xf32>
    %cst_22 = arith.constant dense<0.000000e+00> : vector<2xf32>
    %121 = vector.multi_reduction <add>, %120, %cst_22 [1] : vector<2x32xf32> to vector<2xf32>
    %122 = vector.shape_cast %121 : vector<2xf32> to vector<2x1xf32>
    %c1_i32_23 = arith.constant 1 : i32
    %123 = vector.broadcast %c1_i32_23 : i32 to vector<2x32xi32>
    %124 = arith.cmpi eq, %103, %123 : vector<2x32xi32>
    %cst_24 = arith.constant 1.000000e+00 : f32
    %cst_25 = arith.constant 0.000000e+00 : f32
    %125 = vector.broadcast %cst_24 : f32 to vector<2x32xf32>
    %126 = vector.broadcast %cst_25 : f32 to vector<2x32xf32>
    %127 = arith.select %124, %125, %126 : vector<2x32xi1>, vector<2x32xf32>
    %cst_26 = arith.constant dense<0.000000e+00> : vector<2xf32>
    %128 = vector.multi_reduction <add>, %127, %cst_26 [1] : vector<2x32xf32> to vector<2xf32>
    %129 = vector.shape_cast %128 : vector<2xf32> to vector<2x1xf32>
    %c2_i32_27 = arith.constant 2 : i32
    %130 = vector.broadcast %c2_i32_27 : i32 to vector<2x32xi32>
    %131 = arith.cmpi eq, %99, %130 : vector<2x32xi32>
    %cst_28 = arith.constant 0.000000e+00 : f32
    %132 = vector.broadcast %cst_28 : f32 to vector<2x32xf32>
    %133 = arith.select %131, %100, %132 : vector<2x32xi1>, vector<2x32xf32>
    %cst_29 = arith.constant dense<0.000000e+00> : vector<2xf32>
    %134 = vector.multi_reduction <add>, %133, %cst_29 [1] : vector<2x32xf32> to vector<2xf32>
    %135 = vector.shape_cast %134 : vector<2xf32> to vector<2x1xf32>
    %c2_i32_30 = arith.constant 2 : i32
    %136 = vector.broadcast %c2_i32_30 : i32 to vector<2x32xi32>
    %137 = arith.cmpi eq, %103, %136 : vector<2x32xi32>
    %cst_31 = arith.constant 1.000000e+00 : f32
    %cst_32 = arith.constant 0.000000e+00 : f32
    %138 = vector.broadcast %cst_31 : f32 to vector<2x32xf32>
    %139 = vector.broadcast %cst_32 : f32 to vector<2x32xf32>
    %140 = arith.select %137, %138, %139 : vector<2x32xi1>, vector<2x32xf32>
    %cst_33 = arith.constant dense<0.000000e+00> : vector<2xf32>
    %141 = vector.multi_reduction <add>, %140, %cst_33 [1] : vector<2x32xf32> to vector<2xf32>
    %142 = vector.shape_cast %141 : vector<2xf32> to vector<2x1xf32>
    %c3_i32_34 = arith.constant 3 : i32
    %143 = vector.broadcast %c3_i32_34 : i32 to vector<2x32xi32>
    %144 = arith.cmpi eq, %99, %143 : vector<2x32xi32>
    %cst_35 = arith.constant 0.000000e+00 : f32
    %145 = vector.broadcast %cst_35 : f32 to vector<2x32xf32>
    %146 = arith.select %144, %100, %145 : vector<2x32xi1>, vector<2x32xf32>
    %cst_36 = arith.constant dense<0.000000e+00> : vector<2xf32>
    %147 = vector.multi_reduction <add>, %146, %cst_36 [1] : vector<2x32xf32> to vector<2xf32>
    %148 = vector.shape_cast %147 : vector<2xf32> to vector<2x1xf32>
    %c3_i32_37 = arith.constant 3 : i32
    %149 = vector.broadcast %c3_i32_37 : i32 to vector<2x32xi32>
    %150 = arith.cmpi eq, %103, %149 : vector<2x32xi32>
    %cst_38 = arith.constant 1.000000e+00 : f32
    %cst_39 = arith.constant 0.000000e+00 : f32
    %151 = vector.broadcast %cst_38 : f32 to vector<2x32xf32>
    %152 = vector.broadcast %cst_39 : f32 to vector<2x32xf32>
    %153 = arith.select %150, %151, %152 : vector<2x32xi1>, vector<2x32xf32>
    %cst_40 = arith.constant dense<0.000000e+00> : vector<2xf32>
    %154 = vector.multi_reduction <add>, %153, %cst_40 [1] : vector<2x32xf32> to vector<2xf32>
    %155 = vector.shape_cast %154 : vector<2xf32> to vector<2x1xf32>
    %c4_i32_41 = arith.constant 4 : i32
    %156 = vector.broadcast %c4_i32_41 : i32 to vector<2x32xi32>
    %157 = arith.cmpi eq, %99, %156 : vector<2x32xi32>
    %cst_42 = arith.constant 0.000000e+00 : f32
    %158 = vector.broadcast %cst_42 : f32 to vector<2x32xf32>
    %159 = arith.select %157, %100, %158 : vector<2x32xi1>, vector<2x32xf32>
    %cst_43 = arith.constant dense<0.000000e+00> : vector<2xf32>
    %160 = vector.multi_reduction <add>, %159, %cst_43 [1] : vector<2x32xf32> to vector<2xf32>
    %161 = vector.shape_cast %160 : vector<2xf32> to vector<2x1xf32>
    %c4_i32_44 = arith.constant 4 : i32
    %162 = vector.broadcast %c4_i32_44 : i32 to vector<2x32xi32>
    %163 = arith.cmpi eq, %103, %162 : vector<2x32xi32>
    %cst_45 = arith.constant 1.000000e+00 : f32
    %cst_46 = arith.constant 0.000000e+00 : f32
    %164 = vector.broadcast %cst_45 : f32 to vector<2x32xf32>
    %165 = vector.broadcast %cst_46 : f32 to vector<2x32xf32>
    %166 = arith.select %163, %164, %165 : vector<2x32xi1>, vector<2x32xf32>
    %cst_47 = arith.constant dense<0.000000e+00> : vector<2xf32>
    %167 = vector.multi_reduction <add>, %166, %cst_47 [1] : vector<2x32xf32> to vector<2xf32>
    %168 = vector.shape_cast %167 : vector<2xf32> to vector<2x1xf32>
    %c5_i32_48 = arith.constant 5 : i32
    %169 = vector.broadcast %c5_i32_48 : i32 to vector<2x32xi32>
    %170 = arith.cmpi eq, %99, %169 : vector<2x32xi32>
    %cst_49 = arith.constant 0.000000e+00 : f32
    %171 = vector.broadcast %cst_49 : f32 to vector<2x32xf32>
    %172 = arith.select %170, %100, %171 : vector<2x32xi1>, vector<2x32xf32>
    %cst_50 = arith.constant dense<0.000000e+00> : vector<2xf32>
    %173 = vector.multi_reduction <add>, %172, %cst_50 [1] : vector<2x32xf32> to vector<2xf32>
    %174 = vector.shape_cast %173 : vector<2xf32> to vector<2x1xf32>
    %c5_i32_51 = arith.constant 5 : i32
    %175 = vector.broadcast %c5_i32_51 : i32 to vector<2x32xi32>
    %176 = arith.cmpi eq, %103, %175 : vector<2x32xi32>
    %cst_52 = arith.constant 1.000000e+00 : f32
    %cst_53 = arith.constant 0.000000e+00 : f32
    %177 = vector.broadcast %cst_52 : f32 to vector<2x32xf32>
    %178 = vector.broadcast %cst_53 : f32 to vector<2x32xf32>
    %179 = arith.select %176, %177, %178 : vector<2x32xi1>, vector<2x32xf32>
    %cst_54 = arith.constant dense<0.000000e+00> : vector<2xf32>
    %180 = vector.multi_reduction <add>, %179, %cst_54 [1] : vector<2x32xf32> to vector<2xf32>
    %181 = vector.shape_cast %180 : vector<2xf32> to vector<2x1xf32>
    %c6_i32_55 = arith.constant 6 : i32
    %182 = vector.broadcast %c6_i32_55 : i32 to vector<2x32xi32>
    %183 = arith.cmpi eq, %99, %182 : vector<2x32xi32>
    %cst_56 = arith.constant 0.000000e+00 : f32
    %184 = vector.broadcast %cst_56 : f32 to vector<2x32xf32>
    %185 = arith.select %183, %100, %184 : vector<2x32xi1>, vector<2x32xf32>
    %cst_57 = arith.constant dense<0.000000e+00> : vector<2xf32>
    %186 = vector.multi_reduction <add>, %185, %cst_57 [1] : vector<2x32xf32> to vector<2xf32>
    %187 = vector.shape_cast %186 : vector<2xf32> to vector<2x1xf32>
    %c6_i32_58 = arith.constant 6 : i32
    %188 = vector.broadcast %c6_i32_58 : i32 to vector<2x32xi32>
    %189 = arith.cmpi eq, %103, %188 : vector<2x32xi32>
    %cst_59 = arith.constant 1.000000e+00 : f32
    %cst_60 = arith.constant 0.000000e+00 : f32
    %190 = vector.broadcast %cst_59 : f32 to vector<2x32xf32>
    %191 = vector.broadcast %cst_60 : f32 to vector<2x32xf32>
    %192 = arith.select %189, %190, %191 : vector<2x32xi1>, vector<2x32xf32>
    %cst_61 = arith.constant dense<0.000000e+00> : vector<2xf32>
    %193 = vector.multi_reduction <add>, %192, %cst_61 [1] : vector<2x32xf32> to vector<2xf32>
    %194 = vector.shape_cast %193 : vector<2xf32> to vector<2x1xf32>
    %c7_i32_62 = arith.constant 7 : i32
    %195 = vector.broadcast %c7_i32_62 : i32 to vector<2x32xi32>
    %196 = arith.cmpi eq, %99, %195 : vector<2x32xi32>
    %cst_63 = arith.constant 0.000000e+00 : f32
    %197 = vector.broadcast %cst_63 : f32 to vector<2x32xf32>
    %198 = arith.select %196, %100, %197 : vector<2x32xi1>, vector<2x32xf32>
    %cst_64 = arith.constant dense<0.000000e+00> : vector<2xf32>
    %199 = vector.multi_reduction <add>, %198, %cst_64 [1] : vector<2x32xf32> to vector<2xf32>
    %200 = vector.shape_cast %199 : vector<2xf32> to vector<2x1xf32>
    %c7_i32_65 = arith.constant 7 : i32
    %201 = vector.broadcast %c7_i32_65 : i32 to vector<2x32xi32>
    %202 = arith.cmpi eq, %103, %201 : vector<2x32xi32>
    %cst_66 = arith.constant 1.000000e+00 : f32
    %cst_67 = arith.constant 0.000000e+00 : f32
    %203 = vector.broadcast %cst_66 : f32 to vector<2x32xf32>
    %204 = vector.broadcast %cst_67 : f32 to vector<2x32xf32>
    %205 = arith.select %202, %203, %204 : vector<2x32xi1>, vector<2x32xf32>
    %cst_68 = arith.constant dense<0.000000e+00> : vector<2xf32>
    %206 = vector.multi_reduction <add>, %205, %cst_68 [1] : vector<2x32xf32> to vector<2xf32>
    %207 = vector.shape_cast %206 : vector<2xf32> to vector<2x1xf32>
    %208 = tpu.concatenate %109, %122, %135, %148, %161, %174, %187, %200 in 1 : vector<2x1xf32>, vector<2x1xf32>, vector<2x1xf32>, vector<2x1xf32>, vector<2x1xf32>, vector<2x1xf32>, vector<2x1xf32>, vector<2x1xf32> -> vector<2x8xf32>
    %c0_69 = arith.constant 0 : index
    %c0_70 = arith.constant 0 : index
    %c0_71 = arith.constant 0 : index
    %c0_72 = arith.constant 0 : index
    %209 = vector.load %arg4[%c0_69, %c0_70, %c0_71, %c0_72] : memref<2x1x2x8xf32, #tpu.memory_space<vmem>>, vector<2x1x1x8xf32>
    %210 = vector.shape_cast %209 : vector<2x1x1x8xf32> to vector<2x8xf32>
    %211 = vector.shape_cast %208 : vector<2x8xf32> to vector<2x1x1x8xf32>
    tpu.vector_store %arg4[%c0_69, %c0_70, %c0_71, %c0_72], %211 {strides = array<i32>} : memref<2x1x2x8xf32, #tpu.memory_space<vmem>>, vector<2x1x1x8xf32>,
    %212 = tpu.concatenate %116, %129, %142, %155, %168, %181, %194, %207 in 1 : vector<2x1xf32>, vector<2x1xf32>, vector<2x1xf32>, vector<2x1xf32>, vector<2x1xf32>, vector<2x1xf32>, vector<2x1xf32>, vector<2x1xf32> -> vector<2x8xf32>
    %c0_73 = arith.constant 0 : index
    %c0_74 = arith.constant 0 : index
    %c1 = arith.constant 1 : index
    %c0_75 = arith.constant 0 : index
    %213 = vector.load %arg4[%c0_73, %c0_74, %c1, %c0_75] : memref<2x1x2x8xf32, #tpu.memory_space<vmem>>, vector<2x1x1x8xf32>
    %214 = vector.shape_cast %213 : vector<2x1x1x8xf32> to vector<2x8xf32>
    %215 = vector.shape_cast %212 : vector<2x8xf32> to vector<2x1x1x8xf32>
    tpu.vector_store %arg4[%c0_73, %c0_74, %c1, %c0_75], %215 {strides = array<i32>} : memref<2x1x2x8xf32, #tpu.memory_space<vmem>>, vector<2x1x1x8xf32>,
    return
  }
  func.func @transform_0(%arg0: i32, %arg1: i32) -> (i32, i32, i32) {
    %c0_i32 = arith.constant 0 : i32
    %c0_i32_0 = arith.constant 0 : i32
    return %arg1, %arg0, %c0_i32 : i32, i32, i32
  }
  func.func @transform_1(%arg0: i32, %arg1: i32) -> (i32, i32, i32) {
    %c0_i32 = arith.constant 0 : i32
    %c0_i32_0 = arith.constant 0 : i32
    %c0_i32_1 = arith.constant 0 : i32
    return %arg1, %c0_i32, %c0_i32_0 : i32, i32, i32
  }
  func.func @transform_2(%arg0: i32, %arg1: i32) -> (i32, i32, i32, i32) {
    %c0_i32 = arith.constant 0 : i32
    %c0_i32_0 = arith.constant 0 : i32
    %c0_i32_1 = arith.constant 0 : i32
    return %arg0, %arg1, %c0_i32, %c0_i32_0 : i32, i32, i32, i32
  }
}

</mosaic_0001>

<llo_original>
// kernel: squeeze.10
$region0: #{squeeze.10}
  %s0 = inlined_call_operand.vmem [shape: f32[2,4,8], index: 0, kind: input, shape index: {}]
  %s1 = inlined_call_operand.vmem [shape: f32[2,32], index: 1, kind: output, shape index: {}]
  $region1: #{squeeze.10} parent=0
    #allocation0 [shape = 'u8[4096]{0}', space=vmem, size = 0x1000, scoped, tag = 'scoped mem for output reshape']
    #allocation1 [shape = 'u8[8192]{0}', space=vmem, size = 0x2000, scoped, tag = 'scoped mem for input reshape']
    %s3 = ssub.s32 16, 1
    %s4 = scalar_lea.vmem %s0, 4
    %v5 = vld [vmem:[%s4] sm:%s3]
    %s6 = scalar_lea.vmem [#allocation1], 8
    %7 = vst [vmem:[%s6] sm:%s3] %v5
    %v8 = vld [vmem:[%s0] sm:%s3]
    %9 = vst [vmem:[#allocation1] sm:%s3] %v8
    %s10 = smov 3
    %v11 = vld [vmem:[#allocation1] ss:$8 sm:%s10]
    %vm12 = vcmask 64512
    %13 = vst.msk [vmem:[#allocation0] sm:$0x3] %vm12, %v11
    %s14 = scalar_lea.vmem [#allocation1], 3
    %s15 = smov 3
    %v16 = vld [vmem:[%s14] ss:$8 sm:%s15]
    %17 = vrot.lane.b32.xlu0 %v16, 24
    %v18 = vpop.permute.xlu0 %17
    %vm19 = vcmask 261312
    %20 = vst.msk [vmem:[#allocation0] sm:$0x3] %vm19, %v18
    %s21 = scalar_lea.vmem [#allocation1], 2
    %s22 = smov 3
    %v23 = vld [vmem:[%s21] ss:$8 sm:%s22]
    %24 = vrot.lane.b32.xlu0 %v23, 16
    %v25 = vpop.permute.xlu0 %24
    %vm26 = vcmask 195712
    %27 = vst.msk [vmem:[#allocation0] sm:$0x3] %vm26, %v25
    %s28 = scalar_lea.vmem [#allocation1], 1
    %s29 = smov 3
    %v30 = vld [vmem:[%s28] ss:$8 sm:%s29]
    %31 = vrot.lane.b32.xlu0 %v30, 8
    %v32 = vpop.permute.xlu0 %31
    %vm33 = vcmask 130112
    %34 = vst.msk [vmem:[#allocation0] sm:$0x3] %vm33, %v32
    %s36 = ssub.s32 4, 1
    %v37 = vld [vmem:[#allocation0] sm:%s36]
    %s39 = ssub.s32 4, 1
    %40 = vst [vmem:[%s1] sm:%s39] %v37

// kernel: _lambda_.7
$region0: #{_lambda_.7}
  #allocation0 [shape = 'u32[]', space=smem, size = 0x4, offset = 0x4, fixed_abs, tag = 'smem constant byte address 0x4 - core index']
  #allocation1 [shape = 'u32[72,128]{1,0:T(1,128)}', space=vmem, size = 0x9000, scoped, tag = 'internal scratch']
  %s0 = inlined_call_operand.vmem [shape: f32[4,2,47], index: 0, kind: input, shape index: {}]
  %s1 = inlined_call_operand.vmem [shape: f32[4,8,9], index: 1, kind: input, shape index: {}]
  %s2 = inlined_call_operand.vmem [shape: f32[2,4,2,8], index: 2, kind: output, shape index: {}]
  %s3 = sld [smem:[#allocation0]]
  $region71: #{_lambda_.7} parent=0
    _
  %s5 = ssub.s32 1, %s3
  %s6 = scalar_select 0, %s5, %s3
  $region1: #{_lambda_.7} parent=0
    #allocation2 [shape = 'u8[4096]{0}', space=vmem, size = 0x1000, scoped, tag = 'output window, operand 0']
    loop: start=0, step=1, limit=6
    $region2: #{_lambda_.7} parent=1 // loop_pre_header
      _
    $region3: #{_lambda_.7} parent=1 // loop_header
      %s8 = sphi 0, %s12
      %p9 = scmp.ge.s32.totalorder %s8, 6
      %s15 = sphi 0, %s27
      %s16 = sphi 0, %s23
      %s17 = sphi 0, %s15
      %s18 = sphi 0, %s16
      %s19 = sphi 0, %s17
      %s20 = sphi 0, %s18
      %s32 = sphi 0, %s34
      %s35 = sphi 0, %s32
      %s36 = sphi 0, %s35
      %s52 = sphi 0, %s36
      %s58 = sphi 0, %s60
      %s61 = sphi 0, %s58
      %s62 = sphi 0, %s61
      %s78 = sphi 0, %s62
      %s86 = sphi 0, %s88
      %s89 = sphi 0, %s86
      %s90 = sphi 0, %s89
      %s106 = sphi 0, %s90
    $region4: #{_lambda_.7} parent=1 // loop_header_branch
      %11 = sbr.rel (%p9) target = $region8
    $region5: #{_lambda_.7} parent=1 // loop_body
      %s13 = ssub.s32 %s8, 1
      %s14 = ssub.s32 %s8, 2
      %s21 = sadd.s32 1, %s16
      %p22 = scmp.ge.s32.totalorder %s21, 4
      %s23 = scalar_select %p22, 0, %s21
      %s24 = sadd.s32 1, %s15
      %s25 = scalar_select %p22, %s24, %s15
      %p26 = scmp.ge.s32.totalorder %s25, 1
      %s27 = scalar_select %p26, 0, %s25
      %s28 = ssub.s32 %s16, %s23
      %s29 = ssub.s32 %s15, %s27
      %s30 = sor.u32 %s28, %s29
      %p31 = scmp.eq.s32.totalorder %s30, 0
      %s33 = sadd.s32 %s32, 1
      %s34 = scalar_select %p31, %s32, %s33
      %p37 = pneg %p31
      %p38 = scmp.eq.s32.totalorder %s8, 3
      %p39 = por %p37, %p38
      %p40 = scmp.ne.s32.totalorder %s32, %s35
      %p41 = scmp.eq.s32.totalorder %s8, 0
      %p42 = por %p40, %p41
      %p43 = scmp.ne.s32.totalorder %s32, %s35
      %p44 = scmp.eq.s32.totalorder %s13, 3
      %p45 = por %p43, %p44
      %p46 = scmp.ne.s32.totalorder %s35, %s36
      %p47 = scmp.eq.s32.totalorder %s13, 0
      %p48 = por %p46, %p47
      %p49 = scmp.ne.s32.totalorder %s35, %s36
      %p50 = scmp.eq.s32.totalorder %s14, 3
      %p51 = por %p49, %p50
      %p53 = scmp.ne.s32.totalorder %s36, %s52
      %p54 = scmp.eq.s32.totalorder %s14, 0
      %p55 = por %p53, %p54
      %s56 = ssub.s32 %s16, %s23
      %p57 = scmp.eq.s32.totalorder %s56, 0
      %s59 = sadd.s32 %s58, 1
      %s60 = scalar_select %p57, %s58, %s59
      %p63 = pneg %p57
      %p64 = scmp.eq.s32.totalorder %s8, 3
      %p65 = por %p63, %p64
      %p66 = scmp.ne.s32.totalorder %s58, %s61
      %p67 = scmp.eq.s32.totalorder %s8, 0
      %p68 = por %p66, %p67
      %p69 = scmp.ne.s32.totalorder %s58, %s61
      %p70 = scmp.eq.s32.totalorder %s13, 3
      %p71 = por %p69, %p70
      %p72 = scmp.ne.s32.totalorder %s61, %s62
      %p73 = scmp.eq.s32.totalorder %s13, 0
      %p74 = por %p72, %p73
      %p75 = scmp.ne.s32.totalorder %s61, %s62
      %p76 = scmp.eq.s32.totalorder %s14, 3
      %p77 = por %p75, %p76
      %p79 = scmp.ne.s32.totalorder %s62, %s78
      %p80 = scmp.eq.s32.totalorder %s14, 0
      %p81 = por %p79, %p80
      %s82 = ssub.s32 %s15, %s27
      %s83 = ssub.s32 %s16, %s23
      %s84 = sor.u32 %s82, %s83
      %p85 = scmp.eq.s32.totalorder %s84, 0
      %s87 = sadd.s32 %s86, 1
      %s88 = scalar_select %p85, %s86, %s87
      %p91 = pneg %p85
      %p92 = scmp.eq.s32.totalorder %s8, 3
      %p93 = por %p91, %p92
      %p94 = scmp.ne.s32.totalorder %s86, %s89
      %p95 = scmp.eq.s32.totalorder %s8, 0
      %p96 = por %p94, %p95
      %p97 = scmp.ne.s32.totalorder %s86, %s89
      %p98 = scmp.eq.s32.totalorder %s13, 3
      %p99 = por %p97, %p98
      %p100 = scmp.ne.s32.totalorder %s89, %s90
      %p101 = scmp.eq.s32.totalorder %s13, 0
      %p102 = por %p100, %p101
      %p103 = scmp.ne.s32.totalorder %s89, %s90
      %p104 = scmp.eq.s32.totalorder %s14, 3
      %p105 = por %p103, %p104
      %p107 = scmp.ne.s32.totalorder %s90, %s106
      %p108 = scmp.eq.s32.totalorder %s14, 0
      %p109 = por %p107, %p108
      %p110 = scmp.le.s32.totalorder 1, %s8
      %p111 = scmp.lt.s32.totalorder %s8, 5
      %p112 = pnand %p110, %p111
      %p113 = pneg %p112
      // Predicated region
      $region9: #{_lambda_.7} parent=5 // pred_check
        _
      $region10: #{_lambda_.7} parent=5 // pred_check_branch
        %115 = sbr.rel (%p112) target = $region12
      $region11: #{_lambda_.7} parent=5 // pred_region
        %s116 = ssub.s32 %s8, 1
      $region12: #{_lambda_.7} parent=5 // pred_fallthru
        _
      %p117 = scmp.lt.s32.totalorder %s8, 4
      // Predicated region
      $region13: #{_lambda_.7} parent=5 // pred_check
        %p118 = pneg %p117
      $region14: #{_lambda_.7} parent=5 // pred_check_branch
        %120 = sbr.rel (%p118) target = $region16
      $region15: #{_lambda_.7} parent=5 // pred_region
        // Predicated region
        $region17: #{_lambda_.7} parent=15 // pred_check
          %p121 = pneg %p42
        $region18: #{_lambda_.7} parent=15 // pred_check_branch
          %123 = sbr.rel (%p121) target = $region20
        $region19: #{_lambda_.7} parent=15 // pred_region
          %p124 = scmp.lt.s32.totalorder %s16, 3
          %s125 = scalar_select %p124, %s16, 3
          %p126 = scmp.lt.s32.totalorder %s15, 0
          %s127 = scalar_select %p126, %s15, 0
          %s128 = sadd.s32 %s127, %s125
          %s129 = smul.addr %s128, 2
          %s130 = scalar_lea.vmem %s0, %s129
        $region20: #{_lambda_.7} parent=15 // pred_fallthru
          _
        // Predicated region
        $region21: #{_lambda_.7} parent=15 // pred_check
          %p131 = pneg %p68
        $region22: #{_lambda_.7} parent=15 // pred_check_branch
          %133 = sbr.rel (%p131) target = $region24
        $region23: #{_lambda_.7} parent=15 // pred_region
          %p134 = scmp.lt.s32.totalorder %s16, 3
          %s135 = scalar_select %p134, %s16, 3
          %s136 = smul.addr %s135, 8
          %s137 = scalar_lea.vmem %s1, %s136
        $region24: #{_lambda_.7} parent=15 // pred_fallthru
          _
      $region16: #{_lambda_.7} parent=5 // pred_fallthru
        _
      %p138 = scmp.le.s32.totalorder 1, %s8
      %p139 = scmp.lt.s32.totalorder %s8, 5
      %p140 = pnand %p138, %p139
      %p141 = pneg %p140
      // Predicated region
      $region25: #{_lambda_.7} parent=5 // pred_check
        _
      $region26: #{_lambda_.7} parent=5 // pred_check_branch
        %143 = sbr.rel (%p140) target = $region28
      $region27: #{_lambda_.7} parent=5 // pred_region
        %s144 = ssub.s32 %s8, 1
        %p145 = scmp.lt.s32.totalorder %s18, 3
        %s146 = scalar_select %p145, %s18, 3
        %p147 = scmp.lt.s32.totalorder %s17, 0
        %s148 = scalar_select %p147, %s17, 0
        %s149 = sadd.s32 %s148, %s146
        %s150 = smul.addr %s149, 2
        %s151 = scalar_lea.vmem %s0, %s150
        %p152 = pneg %p48
        %p153 = pneg %p45
        %p154 = scmp.lt.s32.totalorder %s18, 3
        %s155 = scalar_select %p154, %s18, 3
        %s156 = smul.addr %s155, 8
        %s157 = scalar_lea.vmem %s1, %s156
        %p158 = pneg %p74
        %p159 = pneg %p71
        %p160 = pneg %p102
        %p161 = pneg %p99
        %s162 = sand.u32 %s89, 1
        %s163 = sand.u32 %s89, 1
        %s164 = smul.addr %s163, 4
        %s165 = scalar_lea.vmem [#allocation2], %s164
        %p166 = scmp.lt.s32.totalorder %s18, 3
        %s167 = scalar_select %p166, %s18, 3
        %p168 = scmp.lt.s32.totalorder %s17, 0
        %s169 = scalar_select %p168, %s17, 0
        %s170 = sadd.s32 %s169, %s167
        %s171 = smul.addr %s170, 2
        %s172 = scalar_lea.vmem %s0, %s171
        %p173 = scmp.lt.s32.totalorder %s18, 3
        %s174 = scalar_select %p173, %s18, 3
        %s175 = smul.addr %s174, 8
        %s176 = scalar_lea.vmem %s1, %s175
        %s177 = smul.u32 2, %s17
        %v179 = vld [vmem:[%s172] sm:$0x3]
        %v180 = vpack.c.bf16 %v179, %v179
        %v182 = vrot.slane %v180, 3
        %vm183 = vcmask 1040384
        %v186 = vsel %vm183, %v180, %v182
        %v188 = vunpack.i.l.s16 %v186
        %v189 = vunpack.i.h.s16 %v186
        %v190 = vpack.i.b16 %v188, %v188
        %v191 = vpack.i.b16 %v189, %v189
        %v192 = vperm.slane %v190, 0
        %v193 = vperm.slane %v191, 0
        %196 = vrot.lane.b32.xlu0 %v192, 126
        %v197 = vpop.permute.xlu0 %196
        %198 = vrot.lane.b32.xlu0 %v193, 126
        %v199 = vpop.permute.xlu0 %198
        %202 = vrot.lane.b32.xlu0 %v192, 124
        %v203 = vpop.permute.xlu0 %202
        %204 = vrot.lane.b32.xlu0 %v193, 124
        %v205 = vpop.permute.xlu0 %204
        %206 = vrot.lane.b32.xlu0 %v192, 122
        %v207 = vpop.permute.xlu0 %206
        %208 = vrot.lane.b32.xlu0 %v193, 122
        %v209 = vpop.permute.xlu0 %208
        %212 = vrot.lane.b32.xlu0 %v192, 120
        %v213 = vpop.permute.xlu0 %212
        %214 = vrot.lane.b32.xlu0 %v193, 120
        %v215 = vpop.permute.xlu0 %214
        %216 = vrot.lane.b32.xlu0 %v192, 118
        %v217 = vpop.permute.xlu0 %216
        %218 = vrot.lane.b32.xlu0 %v193, 118
        %v219 = vpop.permute.xlu0 %218
        %222 = vrot.lane.b32.xlu0 %v192, 116
        %v223 = vpop.permute.xlu0 %222
        %224 = vrot.lane.b32.xlu0 %v193, 116
        %v225 = vpop.permute.xlu0 %224
        %226 = vrot.lane.b32.xlu0 %v192, 114
        %v227 = vpop.permute.xlu0 %226
        %228 = vrot.lane.b32.xlu0 %v193, 114
        %v229 = vpop.permute.xlu0 %228
        %232 = vrot.lane.b32.xlu0 %v192, 112
        %v233 = vpop.permute.xlu0 %232
        %234 = vrot.lane.b32.xlu0 %v193, 112
        %v235 = vpop.permute.xlu0 %234
        %vm236 = vcmask 1040384
        %vm237 = vsmask.f32 256
        %vm238 = vmand %vm236, %vm237
        %v239 = vsel %vm238, %v192, %v197
        %v240 = vsel %vm238, %v193, %v199
        %v243 = vsel %vm183, %v239, %v203
        %v247 = vsel %vm183, %v240, %v205
        %vm249 = vcmask 1041408
        %vm250 = vsmask.f32 1280
        %vm251 = vmand %vm249, %vm250
        %v252 = vsel %vm251, %v243, %v207
        %v253 = vsel %vm251, %v247, %v209
        %vm254 = vcmask 1041408
        %v257 = vsel %vm254, %v252, %v213
        %v261 = vsel %vm254, %v253, %v215
        %vm263 = vcmask 1042432
        %vm264 = vsmask.f32 2304
        %vm265 = vmand %vm263, %vm264
        %v266 = vsel %vm265, %v257, %v217
        %v267 = vsel %vm265, %v261, %v219
        %vm268 = vcmask 1042432
        %v271 = vsel %vm268, %v266, %v223
        %v275 = vsel %vm268, %v267, %v225
        %vm277 = vcmask 1043456
        %vm278 = vsmask.f32 3328
        %vm279 = vmand %vm277, %vm278
        %v280 = vsel %vm279, %v271, %v227
        %v281 = vsel %vm279, %v275, %v229
        %vm282 = vcmask 1043456
        %v285 = vsel %vm282, %v280, %v233
        %v288 = vsel %vm282, %v281, %v235
        %v289 = vld [vmem:[%s176] sm:$0xff]
        %v290 = vpack.c.bf16 %v289, %v289
        %vm291 = vcmask 72704
        %v293 = vsel %vm291, %v290, 0
        %vm295 = vcmask 1044480
        %v296 = vsel %vm282, 4294967295, 65535
        %v297 = vsel %vm295, %v296, 0
        %v298 = vand.u32 %v285, %v297
        %300 = vmatpush.bf16.msra.mxu0 0
        %301 = vmatpush.bf16.msra.mxu0 0
        %302 = vmatpush.bf16.msra.mxu0 0
        %303 = vmatpush.bf16.msra.mxu0 0
        %304 = vmatpush.bf16.msra.mxu0 0
        %305 = vmatpush.bf16.msra.mxu0 0
        %306 = vmatpush.bf16.msra.mxu0 0
        %307 = vmatpush.bf16.msra.mxu0 %v298
        %308 = vmatmul.bf16.gmra.mxu0 %v293
        %v309 = vpop.f32.mrf.mxu0
        %v310 = vadd.f32 0.0, %v309
        %v311 = vpop.f32.mrf.mxu0
        %312 = vdwg.mxu0
        %v313 = vand.u32 %v288, %v297
        %315 = vmatpush.bf16.msra.mxu0 0
        %316 = vmatpush.bf16.msra.mxu0 0
        %317 = vmatpush.bf16.msra.mxu0 0
        %318 = vmatpush.bf16.msra.mxu0 0
        %319 = vmatpush.bf16.msra.mxu0 0
        %320 = vmatpush.bf16.msra.mxu0 0
        %321 = vmatpush.bf16.msra.mxu0 0
        %322 = vmatpush.bf16.msra.mxu0 %v313
        %323 = vmatmul.bf16.gmra.mxu0 %v293
        %v324 = vpop.f32.mrf.mxu0
        %v325 = vadd.f32 0.0, %v324
        %v326 = vpop.f32.mrf.mxu0
        %327 = vdwg.mxu0
        %v330 = vrot.slane %v310, 7
        %v331 = vrot.slane %v325, 7
        %vm334 = vcmp.gt.f32.partialorder %v310, %v330
        %vm335 = vcmp.gt.f32.partialorder %v325, %v331
        %v336 = vsel %vm334, 1, 0
        %v337 = vsel %vm335, 1, 0
        %v338 = vsel %vm334, %v310, %v330
        %v339 = vsel %vm335, %v325, %v331
        %vm340 = vcmp.lt.f32.partialorder %v310, %v330
        %vm341 = vcmp.lt.f32.partialorder %v325, %v331
        %v342 = vsel %vm340, 1, 0
        %v343 = vsel %vm341, 1, 0
        %v344 = vsel %vm340, %v310, %v330
        %v345 = vsel %vm341, %v325, %v331
        %v348 = vrot.slane %v338, 7
        %v349 = vrot.slane %v339, 7
        %vm352 = vcmp.gt.f32.partialorder %v310, %v348
        %vm353 = vcmp.gt.f32.partialorder %v325, %v349
        %v354 = vrot.slane %v336, 7
        %v355 = vrot.slane %v337, 7
        %v356 = vsel %vm352, 2, %v354
        %v357 = vsel %vm353, 2, %v355
        %v358 = vsel %vm352, %v310, %v348
        %v359 = vsel %vm353, %v325, %v349
        %v362 = vrot.slane %v344, 7
        %v363 = vrot.slane %v345, 7
        %vm366 = vcmp.lt.f32.partialorder %v310, %v362
        %vm367 = vcmp.lt.f32.partialorder %v325, %v363
        %v368 = vrot.slane %v342, 7
        %v369 = vrot.slane %v343, 7
        %v370 = vsel %vm366, 2, %v368
        %v371 = vsel %vm367, 2, %v369
        %v372 = vsel %vm366, %v310, %v362
        %v373 = vsel %vm367, %v325, %v363
        %v376 = vrot.slane %v358, 7
        %v377 = vrot.slane %v359, 7
        %vm380 = vcmp.gt.f32.partialorder %v310, %v376
        %vm381 = vcmp.gt.f32.partialorder %v325, %v377
        %v382 = vrot.slane %v356, 7
        %v383 = vrot.slane %v357, 7
        %v384 = vsel %vm380, 3, %v382
        %v385 = vsel %vm381, 3, %v383
        %v386 = vsel %vm380, %v310, %v376
        %v387 = vsel %vm381, %v325, %v377
        %v390 = vrot.slane %v372, 7
        %v391 = vrot.slane %v373, 7
        %vm394 = vcmp.lt.f32.partialorder %v310, %v390
        %vm395 = vcmp.lt.f32.partialorder %v325, %v391
        %v396 = vrot.slane %v370, 7
        %v397 = vrot.slane %v371, 7
        %v398 = vsel %vm394, 3, %v396
        %v399 = vsel %vm395, 3, %v397
        %v400 = vsel %vm394, %v310, %v390
        %v401 = vsel %vm395, %v325, %v391
        %v404 = vrot.slane %v386, 7
        %v405 = vrot.slane %v387, 7
        %vm408 = vcmp.gt.f32.partialorder %v310, %v404
        %vm409 = vcmp.gt.f32.partialorder %v325, %v405
        %v410 = vrot.slane %v384, 7
        %v411 = vrot.slane %v385, 7
        %v412 = vsel %vm408, 4, %v410
        %v413 = vsel %vm409, 4, %v411
        %v414 = vsel %vm408, %v310, %v404
        %v415 = vsel %vm409, %v325, %v405
        %v418 = vrot.slane %v400, 7
        %v419 = vrot.slane %v401, 7
        %vm422 = vcmp.lt.f32.partialorder %v310, %v418
        %vm423 = vcmp.lt.f32.partialorder %v325, %v419
        %v424 = vrot.slane %v398, 7
        %v425 = vrot.slane %v399, 7
        %v426 = vsel %vm422, 4, %v424
        %v427 = vsel %vm423, 4, %v425
        %v428 = vsel %vm422, %v310, %v418
        %v429 = vsel %vm423, %v325, %v419
        %v432 = vrot.slane %v414, 7
        %v433 = vrot.slane %v415, 7
        %vm436 = vcmp.gt.f32.partialorder %v310, %v432
        %vm437 = vcmp.gt.f32.partialorder %v325, %v433
        %v438 = vrot.slane %v412, 7
        %v439 = vrot.slane %v413, 7
        %v440 = vsel %vm436, 5, %v438
        %v441 = vsel %vm437, 5, %v439
        %v442 = vsel %vm436, %v310, %v432
        %v443 = vsel %vm437, %v325, %v433
        %v446 = vrot.slane %v428, 7
        %v447 = vrot.slane %v429, 7
        %vm450 = vcmp.lt.f32.partialorder %v310, %v446
        %vm451 = vcmp.lt.f32.partialorder %v325, %v447
        %v452 = vrot.slane %v426, 7
        %v453 = vrot.slane %v427, 7
        %v454 = vsel %vm450, 5, %v452
        %v455 = vsel %vm451, 5, %v453
        %v456 = vsel %vm450, %v310, %v446
        %v457 = vsel %vm451, %v325, %v447
        %v460 = vrot.slane %v442, 7
        %v461 = vrot.slane %v443, 7
        %vm464 = vcmp.gt.f32.partialorder %v310, %v460
        %vm465 = vcmp.gt.f32.partialorder %v325, %v461
        %v466 = vrot.slane %v440, 7
        %v467 = vrot.slane %v441, 7
        %v468 = vsel %vm464, 6, %v466
        %v469 = vsel %vm465, 6, %v467
        %v470 = vsel %vm464, %v310, %v460
        %v471 = vsel %vm465, %v325, %v461
        %v474 = vrot.slane %v456, 7
        %v475 = vrot.slane %v457, 7
        %vm478 = vcmp.lt.f32.partialorder %v310, %v474
        %vm479 = vcmp.lt.f32.partialorder %v325, %v475
        %v480 = vrot.slane %v454, 7
        %v481 = vrot.slane %v455, 7
        %v482 = vsel %vm478, 6, %v480
        %v483 = vsel %vm479, 6, %v481
        %v484 = vsel %vm478, %v310, %v474
        %v485 = vsel %vm479, %v325, %v475
        %v488 = vrot.slane %v470, 7
        %v489 = vrot.slane %v471, 7
        %vm492 = vcmp.gt.f32.partialorder %v310, %v488
        %vm493 = vcmp.gt.f32.partialorder %v325, %v489
        %v494 = vrot.slane %v468, 7
        %v495 = vrot.slane %v469, 7
        %v496 = vsel %vm492, 7, %v494
        %v497 = vsel %vm493, 7, %v495
        %v498 = vsel %vm492, %v310, %v488
        %v499 = vsel %vm493, %v325, %v489
        %v502 = vrot.slane %v484, 7
        %v503 = vrot.slane %v485, 7
        %vm506 = vcmp.lt.f32.partialorder %v310, %v502
        %vm507 = vcmp.lt.f32.partialorder %v325, %v503
        %v508 = vrot.slane %v482, 7
        %v509 = vrot.slane %v483, 7
        %v510 = vsel %vm506, 7, %v508
        %v511 = vsel %vm507, 7, %v509
        %vm512 = vcmp.eq.s32.totalorder %v496, 0
        %vm513 = vcmp.eq.s32.totalorder %v497, 0
        %v514 = vsel %vm512, %v498, 0.0
        %v515 = vsel %vm513, %v499, 0.0
        %v518 = vrot.slane %v515, 7
        %vm521 = vcmask 252935
        %v522 = vsel %vm521, %v514, 0.0
        %523 = vadd.xlane.f32.xlu0 %v522
        %v524 = vpop.xlane.xlu0 %523
        %vm525 = vcmask 245760
        %v526 = vsel %vm525, %v518, 0.0
        %527 = vadd.xlane.f32.xlu0 %v526
        %v528 = vpop.xlane.xlu0 %527
        %vm529 = vcmp.eq.s32.totalorder %v510, 0
        %vm530 = vcmp.eq.s32.totalorder %v511, 0
        %v531 = vsel %vm529, 1.0, 0.0
        %v532 = vsel %vm530, 1.0, 0.0
        %v535 = vrot.slane %v532, 7
        %v538 = vsel %vm521, %v531, 0.0
        %539 = vadd.xlane.f32.xlu0 %v538
        %v540 = vpop.xlane.xlu0 %539
        %v541 = vsel %vm525, %v535, 0.0
        %542 = vadd.xlane.f32.xlu0 %v541
        %v543 = vpop.xlane.xlu0 %542
        %vm544 = vcmp.eq.s32.totalorder %v496, 1
        %vm545 = vcmp.eq.s32.totalorder %v497, 1
        %v546 = vsel %vm544, %v498, 0.0
        %v547 = vsel %vm545, %v499, 0.0
        %v550 = vrot.slane %v547, 7
        %v553 = vsel %vm521, %v546, 0.0
        %554 = vadd.xlane.f32.xlu0 %v553
        %v555 = vpop.xlane.xlu0 %554
        %v556 = vsel %vm525, %v550, 0.0
        %557 = vadd.xlane.f32.xlu0 %v556
        %v558 = vpop.xlane.xlu0 %557
        %vm559 = vcmp.eq.s32.totalorder %v510, 1
        %vm560 = vcmp.eq.s32.totalorder %v511, 1
        %v561 = vsel %vm559, 1.0, 0.0
        %v562 = vsel %vm560, 1.0, 0.0
        %v565 = vrot.slane %v562, 7
        %v568 = vsel %vm521, %v561, 0.0
        %569 = vadd.xlane.f32.xlu0 %v568
        %v570 = vpop.xlane.xlu0 %569
        %v571 = vsel %vm525, %v565, 0.0
        %572 = vadd.xlane.f32.xlu0 %v571
        %v573 = vpop.xlane.xlu0 %572
        %vm574 = vcmp.eq.s32.totalorder %v496, 2
        %vm575 = vcmp.eq.s32.totalorder %v497, 2
        %v576 = vsel %vm574, %v498, 0.0
        %v577 = vsel %vm575, %v499, 0.0
        %v580 = vrot.slane %v577, 7
        %v583 = vsel %vm521, %v576, 0.0
        %584 = vadd.xlane.f32.xlu0 %v583
        %v585 = vpop.xlane.xlu0 %584
        %v586 = vsel %vm525, %v580, 0.0
        %587 = vadd.xlane.f32.xlu0 %v586
        %v588 = vpop.xlane.xlu0 %587
        %vm589 = vcmp.eq.s32.totalorder %v510, 2
        %vm590 = vcmp.eq.s32.totalorder %v511, 2
        %v591 = vsel %vm589, 1.0, 0.0
        %v592 = vsel %vm590, 1.0, 0.0
        %v595 = vrot.slane %v592, 7
        %v598 = vsel %vm521, %v591, 0.0
        %599 = vadd.xlane.f32.xlu0 %v598
        %v600 = vpop.xlane.xlu0 %599
        %v601 = vsel %vm525, %v595, 0.0
        %602 = vadd.xlane.f32.xlu0 %v601
        %v603 = vpop.xlane.xlu0 %602
        %vm604 = vcmp.eq.s32.totalorder %v496, 3
        %vm605 = vcmp.eq.s32.totalorder %v497, 3
        %v606 = vsel %vm604, %v498, 0.0
        %v607 = vsel %vm605, %v499, 0.0
        %v610 = vrot.slane %v607, 7
        %v613 = vsel %vm521, %v606, 0.0
        %614 = vadd.xlane.f32.xlu0 %v613
        %v615 = vpop.xlane.xlu0 %614
        %v616 = vsel %vm525, %v610, 0.0
        %617 = vadd.xlane.f32.xlu0 %v616
        %v618 = vpop.xlane.xlu0 %617
        %vm619 = vcmp.eq.s32.totalorder %v510, 3
        %vm620 = vcmp.eq.s32.totalorder %v511, 3
        %v621 = vsel %vm619, 1.0, 0.0
        %v622 = vsel %vm620, 1.0, 0.0
        %v625 = vrot.slane %v622, 7
        %v628 = vsel %vm521, %v621, 0.0
        %629 = vadd.xlane.f32.xlu0 %v628
        %v630 = vpop.xlane.xlu0 %629
        %v631 = vsel %vm525, %v625, 0.0
        %632 = vadd.xlane.f32.xlu0 %v631
        %v633 = vpop.xlane.xlu0 %632
        %vm634 = vcmp.eq.s32.totalorder %v496, 4
        %vm635 = vcmp.eq.s32.totalorder %v497, 4
        %v636 = vsel %vm634, %v498, 0.0
        %v637 = vsel %vm635, %v499, 0.0
        %v640 = vrot.slane %v637, 7
        %v643 = vsel %vm521, %v636, 0.0
        %644 = vadd.xlane.f32.xlu0 %v643
        %v645 = vpop.xlane.xlu0 %644
        %v646 = vsel %vm525, %v640, 0.0
        %647 = vadd.xlane.f32.xlu0 %v646
        %v648 = vpop.xlane.xlu0 %647
        %vm649 = vcmp.eq.s32.totalorder %v510, 4
        %vm650 = vcmp.eq.s32.totalorder %v511, 4
        %v651 = vsel %vm649, 1.0, 0.0
        %v652 = vsel %vm650, 1.0, 0.0
        %v655 = vrot.slane %v652, 7
        %v658 = vsel %vm521, %v651, 0.0
        %659 = vadd.xlane.f32.xlu0 %v658
        %v660 = vpop.xlane.xlu0 %659
        %v661 = vsel %vm525, %v655, 0.0
        %662 = vadd.xlane.f32.xlu0 %v661
        %v663 = vpop.xlane.xlu0 %662
        %vm664 = vcmp.eq.s32.totalorder %v496, 5
        %vm665 = vcmp.eq.s32.totalorder %v497, 5
        %v666 = vsel %vm664, %v498, 0.0
        %v667 = vsel %vm665, %v499, 0.0
        %v670 = vrot.slane %v667, 7
        %v673 = vsel %vm521, %v666, 0.0
        %674 = vadd.xlane.f32.xlu0 %v673
        %v675 = vpop.xlane.xlu0 %674
        %v676 = vsel %vm525, %v670, 0.0
        %677 = vadd.xlane.f32.xlu0 %v676
        %v678 = vpop.xlane.xlu0 %677
        %vm679 = vcmp.eq.s32.totalorder %v510, 5
        %vm680 = vcmp.eq.s32.totalorder %v511, 5
        %v681 = vsel %vm679, 1.0, 0.0
        %v682 = vsel %vm680, 1.0, 0.0
        %v685 = vrot.slane %v682, 7
        %v688 = vsel %vm521, %v681, 0.0
        %689 = vadd.xlane.f32.xlu0 %v688
        %v690 = vpop.xlane.xlu0 %689
        %v691 = vsel %vm525, %v685, 0.0
        %692 = vadd.xlane.f32.xlu0 %v691
        %v693 = vpop.xlane.xlu0 %692
        %vm694 = vcmp.eq.s32.totalorder %v496, 6
        %vm695 = vcmp.eq.s32.totalorder %v497, 6
        %v696 = vsel %vm694, %v498, 0.0
        %v697 = vsel %vm695, %v499, 0.0
        %v700 = vrot.slane %v697, 7
        %v703 = vsel %vm521, %v696, 0.0
        %704 = vadd.xlane.f32.xlu0 %v703
        %v705 = vpop.xlane.xlu0 %704
        %v706 = vsel %vm525, %v700, 0.0
        %707 = vadd.xlane.f32.xlu0 %v706
        %v708 = vpop.xlane.xlu0 %707
        %vm709 = vcmp.eq.s32.totalorder %v510, 6
        %vm710 = vcmp.eq.s32.totalorder %v511, 6
        %v711 = vsel %vm709, 1.0, 0.0
        %v712 = vsel %vm710, 1.0, 0.0
        %v715 = vrot.slane %v712, 7
        %v718 = vsel %vm521, %v711, 0.0
        %719 = vadd.xlane.f32.xlu0 %v718
        %v720 = vpop.xlane.xlu0 %719
        %v721 = vsel %vm525, %v715, 0.0
        %722 = vadd.xlane.f32.xlu0 %v721
        %v723 = vpop.xlane.xlu0 %722
        %vm724 = vcmp.eq.s32.totalorder %v496, 7
        %vm725 = vcmp.eq.s32.totalorder %v497, 7
        %v726 = vsel %vm724, %v498, 0.0
        %v727 = vsel %vm725, %v499, 0.0
        %v730 = vrot.slane %v727, 7
        %v733 = vsel %vm521, %v726, 0.0
        %734 = vadd.xlane.f32.xlu0 %v733
        %v735 = vpop.xlane.xlu0 %734
        %v736 = vsel %vm525, %v730, 0.0
        %737 = vadd.xlane.f32.xlu0 %v736
        %v738 = vpop.xlane.xlu0 %737
        %vm739 = vcmp.eq.s32.totalorder %v510, 7
        %vm740 = vcmp.eq.s32.totalorder %v511, 7
        %v741 = vsel %vm739, 1.0, 0.0
        %v742 = vsel %vm740, 1.0, 0.0
        %v745 = vrot.slane %v742, 7
        %v748 = vsel %vm521, %v741, 0.0
        %749 = vadd.xlane.f32.xlu0 %v748
        %v750 = vpop.xlane.xlu0 %749
        %v751 = vsel %vm525, %v745, 0.0
        %752 = vadd.xlane.f32.xlu0 %v751
        %v753 = vpop.xlane.xlu0 %752
        %vm754 = vcmask 7168
        %v755 = vsel %vm754, %v524, %v555
        %v756 = vsel %vm754, %v528, %v558
        %vm757 = vcmask 15360
        %v758 = vsel %vm757, %v755, %v585
        %v759 = vsel %vm757, %v756, %v588
        %vm760 = vcmask 23552
        %v761 = vsel %vm760, %v758, %v615
        %v762 = vsel %vm760, %v759, %v618
        %vm763 = vcmask 31744
        %v764 = vsel %vm763, %v761, %v645
        %v765 = vsel %vm763, %v762, %v648
        %vm766 = vcmask 39936
        %v767 = vsel %vm766, %v764, %v675
        %v768 = vsel %vm766, %v765, %v678
        %vm769 = vcmask 48128
        %v770 = vsel %vm769, %v767, %v705
        %v771 = vsel %vm769, %v768, %v708
        %vm772 = vcmask 56320
        %v773 = vsel %vm772, %v770, %v735
        %v774 = vsel %vm772, %v771, %v738
        %777 = vst [vmem:[#allocation1] sm:$0xff] %v773
        %s778 = scalar_lea.vmem [#allocation1], 7
        %v779 = vld [vmem:[%s778] ss:$9 sm:$0xff]
        %780 = vst [vmem:[#allocation1] sm:$0xff] %v774
        %v781 = vld [vmem:[#allocation1] ss:$9 sm:$0xff]
        %vm784 = vcmask 57344
        %785 = vst.msk [vmem:[%s165] sm:$0x1] %vm784, %v779
        %786 = vst.msk [vmem:[%s165 + $0x2] sm:$0x1] %vm784, %v781
        %v787 = vsel %vm754, %v540, %v570
        %v788 = vsel %vm754, %v543, %v573
        %v789 = vsel %vm757, %v787, %v600
        %v790 = vsel %vm757, %v788, %v603
        %v791 = vsel %vm760, %v789, %v630
        %v792 = vsel %vm760, %v790, %v633
        %v793 = vsel %vm763, %v791, %v660
        %v794 = vsel %vm763, %v792, %v663
        %v795 = vsel %vm766, %v793, %v690
        %v796 = vsel %vm766, %v794, %v693
        %v797 = vsel %vm769, %v795, %v720
        %v798 = vsel %vm769, %v796, %v723
        %v799 = vsel %vm772, %v797, %v750
        %v800 = vsel %vm772, %v798, %v753
        %803 = vst [vmem:[#allocation1] sm:$0xff] %v799
        %s804 = scalar_lea.vmem [#allocation1], 7
        %v805 = vld [vmem:[%s804] ss:$9 sm:$0xff]
        %806 = vst [vmem:[#allocation1] sm:$0xff] %v800
        %v807 = vld [vmem:[#allocation1] ss:$9 sm:$0xff]
        %810 = vst.msk [vmem:[%s165 + $0x1] sm:$0x1] %vm784, %v805
        %811 = vst.msk [vmem:[%s165 + $0x3] sm:$0x1] %vm784, %v807
        %s812 = sand.u32 %s89, 1
        %s813 = sand.u32 %s89, 1
        %s814 = smul.addr %s813, 4
        %s815 = scalar_lea.vmem [#allocation2], %s814
        // Predicated region
        $region29: #{_lambda_.7} parent=27 // pred_check
          %p816 = pneg %p99
        $region30: #{_lambda_.7} parent=27 // pred_check_branch
          %818 = sbr.rel (%p816) target = $region32
        $region31: #{_lambda_.7} parent=27 // pred_region
          %s819 = smul.u32 2, %s17
          %s820 = smul.addr %s819, 4
          %s821 = sadd.s32 %s18, %s820
          %s822 = smul.addr %s821, 2
          %s823 = scalar_lea.vmem %s2, %s822
          // Predicated region
          $region33: #{_lambda_.7} parent=31 // pred_check
            _
          $region34: #{_lambda_.7} parent=31 // pred_check_branch
            %825 = sbr.rel (0) target = $region36
          $region35: #{_lambda_.7} parent=31 // pred_region
            // Predicated region
            $region37: #{_lambda_.7} parent=35 // pred_check
              _
            $region38: #{_lambda_.7} parent=35 // pred_check_branch
              %827 = sbr.rel target = $region40
            $region39: #{_lambda_.7} parent=35 // pred_region
              // Predicated region
              $region52: #{_lambda_.7} parent=39 // pred_check
                _
              $region53: #{_lambda_.7} parent=39 // pred_check_branch
                %845 = sbr.rel (0) target = $region55
              $region54: #{_lambda_.7} parent=39 // pred_region
                %s847 = ssub.s32 4, 1
                loop: start=0, step=1, limit=1
                $region56: #{_lambda_.7} parent=54 // loop_pre_header
                  _
                $region57: #{_lambda_.7} parent=54 // loop_header
                  %s849 = sphi 0, %s853
                  %p850 = scmp.ge.s32.totalorder %s849, 1
                  %s854 = sphi %s815, %s815
                  %s855 = sphi %s823, %s823
                $region58: #{_lambda_.7} parent=54 // loop_header_branch
                  %852 = sbr.rel (%p850) target = $region62
                $region59: #{_lambda_.7} parent=54 // loop_body
                  %v856 = vld [vmem:[%s854] sm:%s847]
                  %857 = vst [vmem:[%s855] sm:%s847] %v856
                  %v858 = vld [vmem:[%s854 + $0x2] sm:%s847]
                  %859 = vst [vmem:[%s855 + $0x8] sm:%s847] %v858
                $region60: #{_lambda_.7} parent=54 // loop_footer
                  %s853 = sadd.s32 1, %s849
                $region61: #{_lambda_.7} parent=54 // loop_footer_branch
                  %848 = sbr.rel target = $region57
                $region62: #{_lambda_.7} parent=54 // loop_exit
                  _
              $region55: #{_lambda_.7} parent=39 // pred_fallthru
                _
            $region40: #{_lambda_.7} parent=35 // pred_fallthru
              _
            // Predicated region
            $region41: #{_lambda_.7} parent=35 // pred_check
              _
            $region42: #{_lambda_.7} parent=35 // pred_check_branch
              %829 = sbr.rel (0) target = $region44
            $region43: #{_lambda_.7} parent=35 // pred_region
              %s831 = ssub.s32 4, 1
              loop: start=0, step=1, limit=1
              $region45: #{_lambda_.7} parent=43 // loop_pre_header
                _
              $region46: #{_lambda_.7} parent=43 // loop_header
                %s833 = sphi 0, %s837
                %p834 = scmp.ge.s32.totalorder %s833, 1
                %s838 = sphi %s815, %s815
                %s839 = sphi %s823, %s823
              $region47: #{_lambda_.7} parent=43 // loop_header_branch
                %836 = sbr.rel (%p834) target = $region51
              $region48: #{_lambda_.7} parent=43 // loop_body
                %v840 = vld [vmem:[%s838] sm:%s831]
                %841 = vst [vmem:[%s839] sm:%s831] %v840
                %v842 = vld [vmem:[%s838 + $0x2] sm:%s831]
                %843 = vst [vmem:[%s839 + $0x8] sm:%s831] %v842
              $region49: #{_lambda_.7} parent=43 // loop_footer
                %s837 = sadd.s32 1, %s833
              $region50: #{_lambda_.7} parent=43 // loop_footer_branch
                %832 = sbr.rel target = $region46
              $region51: #{_lambda_.7} parent=43 // loop_exit
                _
            $region44: #{_lambda_.7} parent=35 // pred_fallthru
              _
          $region36: #{_lambda_.7} parent=31 // pred_fallthru
            _
          %860 = vnop
        $region32: #{_lambda_.7} parent=27 // pred_fallthru
          _
      $region28: #{_lambda_.7} parent=5 // pred_fallthru
        _
      %p861 = scmp.le.s32.totalorder 2, %s8
      // Predicated region
      $region63: #{_lambda_.7} parent=5 // pred_check
        %p862 = pneg %p861
      $region64: #{_lambda_.7} parent=5 // pred_check_branch
        %864 = sbr.rel (%p862) target = $region66
      $region65: #{_lambda_.7} parent=5 // pred_region
        %s865 = ssub.s32 %s8, 2
        // Predicated region
        $region67: #{_lambda_.7} parent=65 // pred_check
          %p866 = pneg %p105
        $region68: #{_lambda_.7} parent=65 // pred_check_branch
          %868 = sbr.rel (%p866) target = $region70
        $region69: #{_lambda_.7} parent=65 // pred_region
          %s869 = sand.u32 %s90, 1
          %s870 = sand.u32 %s90, 1
          %s871 = smul.addr %s870, 4
          %s872 = scalar_lea.vmem [#allocation2], %s871
        $region70: #{_lambda_.7} parent=65 // pred_fallthru
          _
      $region66: #{_lambda_.7} parent=5 // pred_fallthru
        _
    $region6: #{_lambda_.7} parent=1 // loop_footer
      %s12 = sadd.s32 1, %s8
    $region7: #{_lambda_.7} parent=1 // loop_footer_branch
      %7 = sbr.rel target = $region3
    $region8: #{_lambda_.7} parent=1 // loop_exit
      _

// kernel: _lambda_.5
$region0: #{_lambda_.5}
  #allocation0 [shape = 'u32[]', space=smem, size = 0x4, offset = 0x4, fixed_abs, tag = 'smem constant byte address 0x4 - core index']
  #allocation1 [shape = 'u32[72,128]{1,0:T(1,128)}', space=vmem, size = 0x9000, scoped, tag = 'internal scratch']
  %s0 = inlined_call_operand.vmem [shape: f32[4,2,39], index: 0, kind: input, shape index: {}]
  %s1 = inlined_call_operand.vmem [shape: f32[4,8,9], index: 1, kind: input, shape index: {}]
  %s2 = inlined_call_operand.vmem [shape: f32[2,4,2,8], index: 2, kind: output, shape index: {}]
  %s3 = sld [smem:[#allocation0]]
  $region71: #{_lambda_.5} parent=0
    _
  %s5 = ssub.s32 1, %s3
  %s6 = scalar_select 0, %s5, %s3
  $region1: #{_lambda_.5} parent=0
    #allocation2 [shape = 'u8[4096]{0}', space=vmem, size = 0x1000, scoped, tag = 'output window, operand 0']
    loop: start=0, step=1, limit=6
    $region2: #{_lambda_.5} parent=1 // loop_pre_header
      _
    $region3: #{_lambda_.5} parent=1 // loop_header
      %s8 = sphi 0, %s12
      %p9 = scmp.ge.s32.totalorder %s8, 6
      %s15 = sphi 0, %s27
      %s16 = sphi 0, %s23
      %s17 = sphi 0, %s15
      %s18 = sphi 0, %s16
      %s19 = sphi 0, %s17
      %s20 = sphi 0, %s18
      %s32 = sphi 0, %s34
      %s35 = sphi 0, %s32
      %s36 = sphi 0, %s35
      %s52 = sphi 0, %s36
      %s58 = sphi 0, %s60
      %s61 = sphi 0, %s58
      %s62 = sphi 0, %s61
      %s78 = sphi 0, %s62
      %s86 = sphi 0, %s88
      %s89 = sphi 0, %s86
      %s90 = sphi 0, %s89
      %s106 = sphi 0, %s90
    $region4: #{_lambda_.5} parent=1 // loop_header_branch
      %11 = sbr.rel (%p9) target = $region8
    $region5: #{_lambda_.5} parent=1 // loop_body
      %s13 = ssub.s32 %s8, 1
      %s14 = ssub.s32 %s8, 2
      %s21 = sadd.s32 1, %s16
      %p22 = scmp.ge.s32.totalorder %s21, 4
      %s23 = scalar_select %p22, 0, %s21
      %s24 = sadd.s32 1, %s15
      %s25 = scalar_select %p22, %s24, %s15
      %p26 = scmp.ge.s32.totalorder %s25, 1
      %s27 = scalar_select %p26, 0, %s25
      %s28 = ssub.s32 %s16, %s23
      %s29 = ssub.s32 %s15, %s27
      %s30 = sor.u32 %s28, %s29
      %p31 = scmp.eq.s32.totalorder %s30, 0
      %s33 = sadd.s32 %s32, 1
      %s34 = scalar_select %p31, %s32, %s33
      %p37 = pneg %p31
      %p38 = scmp.eq.s32.totalorder %s8, 3
      %p39 = por %p37, %p38
      %p40 = scmp.ne.s32.totalorder %s32, %s35
      %p41 = scmp.eq.s32.totalorder %s8, 0
      %p42 = por %p40, %p41
      %p43 = scmp.ne.s32.totalorder %s32, %s35
      %p44 = scmp.eq.s32.totalorder %s13, 3
      %p45 = por %p43, %p44
      %p46 = scmp.ne.s32.totalorder %s35, %s36
      %p47 = scmp.eq.s32.totalorder %s13, 0
      %p48 = por %p46, %p47
      %p49 = scmp.ne.s32.totalorder %s35, %s36
      %p50 = scmp.eq.s32.totalorder %s14, 3
      %p51 = por %p49, %p50
      %p53 = scmp.ne.s32.totalorder %s36, %s52
      %p54 = scmp.eq.s32.totalorder %s14, 0
      %p55 = por %p53, %p54
      %s56 = ssub.s32 %s16, %s23
      %p57 = scmp.eq.s32.totalorder %s56, 0
      %s59 = sadd.s32 %s58, 1
      %s60 = scalar_select %p57, %s58, %s59
      %p63 = pneg %p57
      %p64 = scmp.eq.s32.totalorder %s8, 3
      %p65 = por %p63, %p64
      %p66 = scmp.ne.s32.totalorder %s58, %s61
      %p67 = scmp.eq.s32.totalorder %s8, 0
      %p68 = por %p66, %p67
      %p69 = scmp.ne.s32.totalorder %s58, %s61
      %p70 = scmp.eq.s32.totalorder %s13, 3
      %p71 = por %p69, %p70
      %p72 = scmp.ne.s32.totalorder %s61, %s62
      %p73 = scmp.eq.s32.totalorder %s13, 0
      %p74 = por %p72, %p73
      %p75 = scmp.ne.s32.totalorder %s61, %s62
      %p76 = scmp.eq.s32.totalorder %s14, 3
      %p77 = por %p75, %p76
      %p79 = scmp.ne.s32.totalorder %s62, %s78
      %p80 = scmp.eq.s32.totalorder %s14, 0
      %p81 = por %p79, %p80
      %s82 = ssub.s32 %s15, %s27
      %s83 = ssub.s32 %s16, %s23
      %s84 = sor.u32 %s82, %s83
      %p85 = scmp.eq.s32.totalorder %s84, 0
      %s87 = sadd.s32 %s86, 1
      %s88 = scalar_select %p85, %s86, %s87
      %p91 = pneg %p85
      %p92 = scmp.eq.s32.totalorder %s8, 3
      %p93 = por %p91, %p92
      %p94 = scmp.ne.s32.totalorder %s86, %s89
      %p95 = scmp.eq.s32.totalorder %s8, 0
      %p96 = por %p94, %p95
      %p97 = scmp.ne.s32.totalorder %s86, %s89
      %p98 = scmp.eq.s32.totalorder %s13, 3
      %p99 = por %p97, %p98
      %p100 = scmp.ne.s32.totalorder %s89, %s90
      %p101 = scmp.eq.s32.totalorder %s13, 0
      %p102 = por %p100, %p101
      %p103 = scmp.ne.s32.totalorder %s89, %s90
      %p104 = scmp.eq.s32.totalorder %s14, 3
      %p105 = por %p103, %p104
      %p107 = scmp.ne.s32.totalorder %s90, %s106
      %p108 = scmp.eq.s32.totalorder %s14, 0
      %p109 = por %p107, %p108
      %p110 = scmp.le.s32.totalorder 1, %s8
      %p111 = scmp.lt.s32.totalorder %s8, 5
      %p112 = pnand %p110, %p111
      %p113 = pneg %p112
      // Predicated region
      $region9: #{_lambda_.5} parent=5 // pred_check
        _
      $region10: #{_lambda_.5} parent=5 // pred_check_branch
        %115 = sbr.rel (%p112) target = $region12
      $region11: #{_lambda_.5} parent=5 // pred_region
        %s116 = ssub.s32 %s8, 1
      $region12: #{_lambda_.5} parent=5 // pred_fallthru
        _
      %p117 = scmp.lt.s32.totalorder %s8, 4
      // Predicated region
      $region13: #{_lambda_.5} parent=5 // pred_check
        %p118 = pneg %p117
      $region14: #{_lambda_.5} parent=5 // pred_check_branch
        %120 = sbr.rel (%p118) target = $region16
      $region15: #{_lambda_.5} parent=5 // pred_region
        // Predicated region
        $region17: #{_lambda_.5} parent=15 // pred_check
          %p121 = pneg %p42
        $region18: #{_lambda_.5} parent=15 // pred_check_branch
          %123 = sbr.rel (%p121) target = $region20
        $region19: #{_lambda_.5} parent=15 // pred_region
          %p124 = scmp.lt.s32.totalorder %s16, 3
          %s125 = scalar_select %p124, %s16, 3
          %p126 = scmp.lt.s32.totalorder %s15, 0
          %s127 = scalar_select %p126, %s15, 0
          %s128 = sadd.s32 %s127, %s125
          %s129 = smul.addr %s128, 2
          %s130 = scalar_lea.vmem %s0, %s129
        $region20: #{_lambda_.5} parent=15 // pred_fallthru
          _
        // Predicated region
        $region21: #{_lambda_.5} parent=15 // pred_check
          %p131 = pneg %p68
        $region22: #{_lambda_.5} parent=15 // pred_check_branch
          %133 = sbr.rel (%p131) target = $region24
        $region23: #{_lambda_.5} parent=15 // pred_region
          %p134 = scmp.lt.s32.totalorder %s16, 3
          %s135 = scalar_select %p134, %s16, 3
          %s136 = smul.addr %s135, 8
          %s137 = scalar_lea.vmem %s1, %s136
        $region24: #{_lambda_.5} parent=15 // pred_fallthru
          _
      $region16: #{_lambda_.5} parent=5 // pred_fallthru
        _
      %p138 = scmp.le.s32.totalorder 1, %s8
      %p139 = scmp.lt.s32.totalorder %s8, 5
      %p140 = pnand %p138, %p139
      %p141 = pneg %p140
      // Predicated region
      $region25: #{_lambda_.5} parent=5 // pred_check
        _
      $region26: #{_lambda_.5} parent=5 // pred_check_branch
        %143 = sbr.rel (%p140) target = $region28
      $region27: #{_lambda_.5} parent=5 // pred_region
        %s144 = ssub.s32 %s8, 1
        %p145 = scmp.lt.s32.totalorder %s18, 3
        %s146 = scalar_select %p145, %s18, 3
        %p147 = scmp.lt.s32.totalorder %s17, 0
        %s148 = scalar_select %p147, %s17, 0
        %s149 = sadd.s32 %s148, %s146
        %s150 = smul.addr %s149, 2
        %s151 = scalar_lea.vmem %s0, %s150
        %p152 = pneg %p48
        %p153 = pneg %p45
        %p154 = scmp.lt.s32.totalorder %s18, 3
        %s155 = scalar_select %p154, %s18, 3
        %s156 = smul.addr %s155, 8
        %s157 = scalar_lea.vmem %s1, %s156
        %p158 = pneg %p74
        %p159 = pneg %p71
        %p160 = pneg %p102
        %p161 = pneg %p99
        %s162 = sand.u32 %s89, 1
        %s163 = sand.u32 %s89, 1
        %s164 = smul.addr %s163, 4
        %s165 = scalar_lea.vmem [#allocation2], %s164
        %p166 = scmp.lt.s32.totalorder %s18, 3
        %s167 = scalar_select %p166, %s18, 3
        %p168 = scmp.lt.s32.totalorder %s17, 0
        %s169 = scalar_select %p168, %s17, 0
        %s170 = sadd.s32 %s169, %s167
        %s171 = smul.addr %s170, 2
        %s172 = scalar_lea.vmem %s0, %s171
        %p173 = scmp.lt.s32.totalorder %s18, 3
        %s174 = scalar_select %p173, %s18, 3
        %s175 = smul.addr %s174, 8
        %s176 = scalar_lea.vmem %s1, %s175
        %s177 = smul.u32 2, %s17
        %v179 = vld [vmem:[%s172] sm:$0x3]
        %v180 = vpack.c.bf16 %v179, %v179
        %v182 = vrot.slane %v180, 3
        %vm183 = vcmask 1040384
        %v186 = vsel %vm183, %v180, %v182
        %v188 = vunpack.i.l.s16 %v186
        %v189 = vunpack.i.h.s16 %v186
        %v190 = vpack.i.b16 %v188, %v188
        %v191 = vpack.i.b16 %v189, %v189
        %v192 = vperm.slane %v190, 0
        %v193 = vperm.slane %v191, 0
        %196 = vrot.lane.b32.xlu0 %v192, 127
        %v197 = vpop.permute.xlu0 %196
        %198 = vrot.lane.b32.xlu0 %v193, 127
        %v199 = vpop.permute.xlu0 %198
        %202 = vrot.lane.b32.xlu0 %v192, 126
        %v203 = vpop.permute.xlu0 %202
        %204 = vrot.lane.b32.xlu0 %v193, 126
        %v205 = vpop.permute.xlu0 %204
        %206 = vrot.lane.b32.xlu0 %v192, 125
        %v207 = vpop.permute.xlu0 %206
        %208 = vrot.lane.b32.xlu0 %v193, 125
        %v209 = vpop.permute.xlu0 %208
        %212 = vrot.lane.b32.xlu0 %v192, 124
        %v213 = vpop.permute.xlu0 %212
        %214 = vrot.lane.b32.xlu0 %v193, 124
        %v215 = vpop.permute.xlu0 %214
        %216 = vrot.lane.b32.xlu0 %v192, 123
        %v217 = vpop.permute.xlu0 %216
        %218 = vrot.lane.b32.xlu0 %v193, 123
        %v219 = vpop.permute.xlu0 %218
        %222 = vrot.lane.b32.xlu0 %v192, 122
        %v223 = vpop.permute.xlu0 %222
        %224 = vrot.lane.b32.xlu0 %v193, 122
        %v225 = vpop.permute.xlu0 %224
        %226 = vrot.lane.b32.xlu0 %v192, 121
        %v227 = vpop.permute.xlu0 %226
        %228 = vrot.lane.b32.xlu0 %v193, 121
        %v229 = vpop.permute.xlu0 %228
        %232 = vrot.lane.b32.xlu0 %v192, 120
        %v233 = vpop.permute.xlu0 %232
        %234 = vrot.lane.b32.xlu0 %v193, 120
        %v235 = vpop.permute.xlu0 %234
        %vm236 = vcmask 1040384
        %vm237 = vsmask.f32 256
        %vm238 = vmand %vm236, %vm237
        %v239 = vsel %vm238, %v192, %v197
        %v240 = vsel %vm238, %v193, %v199
        %v243 = vsel %vm183, %v239, %v203
        %v247 = vsel %vm183, %v240, %v205
        %vm249 = vcmask 1041408
        %vm250 = vsmask.f32 1280
        %vm251 = vmand %vm249, %vm250
        %v252 = vsel %vm251, %v243, %v207
        %v253 = vsel %vm251, %v247, %v209
        %vm254 = vcmask 1041408
        %v257 = vsel %vm254, %v252, %v213
        %v261 = vsel %vm254, %v253, %v215
        %vm263 = vcmask 1042432
        %vm264 = vsmask.f32 2304
        %vm265 = vmand %vm263, %vm264
        %v266 = vsel %vm265, %v257, %v217
        %v267 = vsel %vm265, %v261, %v219
        %vm268 = vcmask 1042432
        %v271 = vsel %vm268, %v266, %v223
        %v275 = vsel %vm268, %v267, %v225
        %vm277 = vcmask 1043456
        %vm278 = vsmask.f32 3328
        %vm279 = vmand %vm277, %vm278
        %v280 = vsel %vm279, %v271, %v227
        %v281 = vsel %vm279, %v275, %v229
        %vm282 = vcmask 1043456
        %v285 = vsel %vm282, %v280, %v233
        %v288 = vsel %vm282, %v281, %v235
        %v289 = vld [vmem:[%s176] sm:$0xff]
        %v290 = vpack.c.bf16 %v289, %v289
        %vm291 = vcmask 72704
        %v293 = vsel %vm291, %v290, 0
        %vm295 = vcmask 1044480
        %v296 = vsel %vm282, 4294967295, 65535
        %v297 = vsel %vm295, %v296, 0
        %v298 = vand.u32 %v285, %v297
        %300 = vmatpush.bf16.msra.mxu0 0
        %301 = vmatpush.bf16.msra.mxu0 0
        %302 = vmatpush.bf16.msra.mxu0 0
        %303 = vmatpush.bf16.msra.mxu0 0
        %304 = vmatpush.bf16.msra.mxu0 0
        %305 = vmatpush.bf16.msra.mxu0 0
        %306 = vmatpush.bf16.msra.mxu0 0
        %307 = vmatpush.bf16.msra.mxu0 %v298
        %308 = vmatmul.bf16.gmra.mxu0 %v293
        %v309 = vpop.f32.mrf.mxu0
        %v310 = vadd.f32 0.0, %v309
        %v311 = vpop.f32.mrf.mxu0
        %312 = vdwg.mxu0
        %v313 = vand.u32 %v288, %v297
        %315 = vmatpush.bf16.msra.mxu0 0
        %316 = vmatpush.bf16.msra.mxu0 0
        %317 = vmatpush.bf16.msra.mxu0 0
        %318 = vmatpush.bf16.msra.mxu0 0
        %319 = vmatpush.bf16.msra.mxu0 0
        %320 = vmatpush.bf16.msra.mxu0 0
        %321 = vmatpush.bf16.msra.mxu0 0
        %322 = vmatpush.bf16.msra.mxu0 %v313
        %323 = vmatmul.bf16.gmra.mxu0 %v293
        %v324 = vpop.f32.mrf.mxu0
        %v325 = vadd.f32 0.0, %v324
        %v326 = vpop.f32.mrf.mxu0
        %327 = vdwg.mxu0
        %v330 = vrot.slane %v310, 7
        %v331 = vrot.slane %v325, 7
        %vm334 = vcmp.gt.f32.partialorder %v310, %v330
        %vm335 = vcmp.gt.f32.partialorder %v325, %v331
        %v336 = vsel %vm334, 1, 0
        %v337 = vsel %vm335, 1, 0
        %v338 = vsel %vm334, %v310, %v330
        %v339 = vsel %vm335, %v325, %v331
        %vm340 = vcmp.lt.f32.partialorder %v310, %v330
        %vm341 = vcmp.lt.f32.partialorder %v325, %v331
        %v342 = vsel %vm340, 1, 0
        %v343 = vsel %vm341, 1, 0
        %v344 = vsel %vm340, %v310, %v330
        %v345 = vsel %vm341, %v325, %v331
        %v348 = vrot.slane %v338, 7
        %v349 = vrot.slane %v339, 7
        %vm352 = vcmp.gt.f32.partialorder %v310, %v348
        %vm353 = vcmp.gt.f32.partialorder %v325, %v349
        %v354 = vrot.slane %v336, 7
        %v355 = vrot.slane %v337, 7
        %v356 = vsel %vm352, 2, %v354
        %v357 = vsel %vm353, 2, %v355
        %v358 = vsel %vm352, %v310, %v348
        %v359 = vsel %vm353, %v325, %v349
        %v362 = vrot.slane %v344, 7
        %v363 = vrot.slane %v345, 7
        %vm366 = vcmp.lt.f32.partialorder %v310, %v362
        %vm367 = vcmp.lt.f32.partialorder %v325, %v363
        %v368 = vrot.slane %v342, 7
        %v369 = vrot.slane %v343, 7
        %v370 = vsel %vm366, 2, %v368
        %v371 = vsel %vm367, 2, %v369
        %v372 = vsel %vm366, %v310, %v362
        %v373 = vsel %vm367, %v325, %v363
        %v376 = vrot.slane %v358, 7
        %v377 = vrot.slane %v359, 7
        %vm380 = vcmp.gt.f32.partialorder %v310, %v376
        %vm381 = vcmp.gt.f32.partialorder %v325, %v377
        %v382 = vrot.slane %v356, 7
        %v383 = vrot.slane %v357, 7
        %v384 = vsel %vm380, 3, %v382
        %v385 = vsel %vm381, 3, %v383
        %v386 = vsel %vm380, %v310, %v376
        %v387 = vsel %vm381, %v325, %v377
        %v390 = vrot.slane %v372, 7
        %v391 = vrot.slane %v373, 7
        %vm394 = vcmp.lt.f32.partialorder %v310, %v390
        %vm395 = vcmp.lt.f32.partialorder %v325, %v391
        %v396 = vrot.slane %v370, 7
        %v397 = vrot.slane %v371, 7
        %v398 = vsel %vm394, 3, %v396
        %v399 = vsel %vm395, 3, %v397
        %v400 = vsel %vm394, %v310, %v390
        %v401 = vsel %vm395, %v325, %v391
        %v404 = vrot.slane %v386, 7
        %v405 = vrot.slane %v387, 7
        %vm408 = vcmp.gt.f32.partialorder %v310, %v404
        %vm409 = vcmp.gt.f32.partialorder %v325, %v405
        %v410 = vrot.slane %v384, 7
        %v411 = vrot.slane %v385, 7
        %v412 = vsel %vm408, 4, %v410
        %v413 = vsel %vm409, 4, %v411
        %v414 = vsel %vm408, %v310, %v404
        %v415 = vsel %vm409, %v325, %v405
        %v418 = vrot.slane %v400, 7
        %v419 = vrot.slane %v401, 7
        %vm422 = vcmp.lt.f32.partialorder %v310, %v418
        %vm423 = vcmp.lt.f32.partialorder %v325, %v419
        %v424 = vrot.slane %v398, 7
        %v425 = vrot.slane %v399, 7
        %v426 = vsel %vm422, 4, %v424
        %v427 = vsel %vm423, 4, %v425
        %v428 = vsel %vm422, %v310, %v418
        %v429 = vsel %vm423, %v325, %v419
        %v432 = vrot.slane %v414, 7
        %v433 = vrot.slane %v415, 7
        %vm436 = vcmp.gt.f32.partialorder %v310, %v432
        %vm437 = vcmp.gt.f32.partialorder %v325, %v433
        %v438 = vrot.slane %v412, 7
        %v439 = vrot.slane %v413, 7
        %v440 = vsel %vm436, 5, %v438
        %v441 = vsel %vm437, 5, %v439
        %v442 = vsel %vm436, %v310, %v432
        %v443 = vsel %vm437, %v325, %v433
        %v446 = vrot.slane %v428, 7
        %v447 = vrot.slane %v429, 7
        %vm450 = vcmp.lt.f32.partialorder %v310, %v446
        %vm451 = vcmp.lt.f32.partialorder %v325, %v447
        %v452 = vrot.slane %v426, 7
        %v453 = vrot.slane %v427, 7
        %v454 = vsel %vm450, 5, %v452
        %v455 = vsel %vm451, 5, %v453
        %v456 = vsel %vm450, %v310, %v446
        %v457 = vsel %vm451, %v325, %v447
        %v460 = vrot.slane %v442, 7
        %v461 = vrot.slane %v443, 7
        %vm464 = vcmp.gt.f32.partialorder %v310, %v460
        %vm465 = vcmp.gt.f32.partialorder %v325, %v461
        %v466 = vrot.slane %v440, 7
        %v467 = vrot.slane %v441, 7
        %v468 = vsel %vm464, 6, %v466
        %v469 = vsel %vm465, 6, %v467
        %v470 = vsel %vm464, %v310, %v460
        %v471 = vsel %vm465, %v325, %v461
        %v474 = vrot.slane %v456, 7
        %v475 = vrot.slane %v457, 7
        %vm478 = vcmp.lt.f32.partialorder %v310, %v474
        %vm479 = vcmp.lt.f32.partialorder %v325, %v475
        %v480 = vrot.slane %v454, 7
        %v481 = vrot.slane %v455, 7
        %v482 = vsel %vm478, 6, %v480
        %v483 = vsel %vm479, 6, %v481
        %v484 = vsel %vm478, %v310, %v474
        %v485 = vsel %vm479, %v325, %v475
        %v488 = vrot.slane %v470, 7
        %v489 = vrot.slane %v471, 7
        %vm492 = vcmp.gt.f32.partialorder %v310, %v488
        %vm493 = vcmp.gt.f32.partialorder %v325, %v489
        %v494 = vrot.slane %v468, 7
        %v495 = vrot.slane %v469, 7
        %v496 = vsel %vm492, 7, %v494
        %v497 = vsel %vm493, 7, %v495
        %v498 = vsel %vm492, %v310, %v488
        %v499 = vsel %vm493, %v325, %v489
        %v502 = vrot.slane %v484, 7
        %v503 = vrot.slane %v485, 7
        %vm506 = vcmp.lt.f32.partialorder %v310, %v502
        %vm507 = vcmp.lt.f32.partialorder %v325, %v503
        %v508 = vrot.slane %v482, 7
        %v509 = vrot.slane %v483, 7
        %v510 = vsel %vm506, 7, %v508
        %v511 = vsel %vm507, 7, %v509
        %vm512 = vcmp.eq.s32.totalorder %v496, 0
        %vm513 = vcmp.eq.s32.totalorder %v497, 0
        %v514 = vsel %vm512, %v498, 0.0
        %v515 = vsel %vm513, %v499, 0.0
        %v518 = vrot.slane %v515, 7
        %vm521 = vcmask 252935
        %v522 = vsel %vm521, %v514, 0.0
        %523 = vadd.xlane.f32.xlu0 %v522
        %v524 = vpop.xlane.xlu0 %523
        %vm525 = vcmask 245760
        %v526 = vsel %vm525, %v518, 0.0
        %527 = vadd.xlane.f32.xlu0 %v526
        %v528 = vpop.xlane.xlu0 %527
        %vm529 = vcmp.eq.s32.totalorder %v510, 0
        %vm530 = vcmp.eq.s32.totalorder %v511, 0
        %v531 = vsel %vm529, 1.0, 0.0
        %v532 = vsel %vm530, 1.0, 0.0
        %v535 = vrot.slane %v532, 7
        %v538 = vsel %vm521, %v531, 0.0
        %539 = vadd.xlane.f32.xlu0 %v538
        %v540 = vpop.xlane.xlu0 %539
        %v541 = vsel %vm525, %v535, 0.0
        %542 = vadd.xlane.f32.xlu0 %v541
        %v543 = vpop.xlane.xlu0 %542
        %vm544 = vcmp.eq.s32.totalorder %v496, 1
        %vm545 = vcmp.eq.s32.totalorder %v497, 1
        %v546 = vsel %vm544, %v498, 0.0
        %v547 = vsel %vm545, %v499, 0.0
        %v550 = vrot.slane %v547, 7
        %v553 = vsel %vm521, %v546, 0.0
        %554 = vadd.xlane.f32.xlu0 %v553
        %v555 = vpop.xlane.xlu0 %554
        %v556 = vsel %vm525, %v550, 0.0
        %557 = vadd.xlane.f32.xlu0 %v556
        %v558 = vpop.xlane.xlu0 %557
        %vm559 = vcmp.eq.s32.totalorder %v510, 1
        %vm560 = vcmp.eq.s32.totalorder %v511, 1
        %v561 = vsel %vm559, 1.0, 0.0
        %v562 = vsel %vm560, 1.0, 0.0
        %v565 = vrot.slane %v562, 7
        %v568 = vsel %vm521, %v561, 0.0
        %569 = vadd.xlane.f32.xlu0 %v568
        %v570 = vpop.xlane.xlu0 %569
        %v571 = vsel %vm525, %v565, 0.0
        %572 = vadd.xlane.f32.xlu0 %v571
        %v573 = vpop.xlane.xlu0 %572
        %vm574 = vcmp.eq.s32.totalorder %v496, 2
        %vm575 = vcmp.eq.s32.totalorder %v497, 2
        %v576 = vsel %vm574, %v498, 0.0
        %v577 = vsel %vm575, %v499, 0.0
        %v580 = vrot.slane %v577, 7
        %v583 = vsel %vm521, %v576, 0.0
        %584 = vadd.xlane.f32.xlu0 %v583
        %v585 = vpop.xlane.xlu0 %584
        %v586 = vsel %vm525, %v580, 0.0
        %587 = vadd.xlane.f32.xlu0 %v586
        %v588 = vpop.xlane.xlu0 %587
        %vm589 = vcmp.eq.s32.totalorder %v510, 2
        %vm590 = vcmp.eq.s32.totalorder %v511, 2
        %v591 = vsel %vm589, 1.0, 0.0
        %v592 = vsel %vm590, 1.0, 0.0
        %v595 = vrot.slane %v592, 7
        %v598 = vsel %vm521, %v591, 0.0
        %599 = vadd.xlane.f32.xlu0 %v598
        %v600 = vpop.xlane.xlu0 %599
        %v601 = vsel %vm525, %v595, 0.0
        %602 = vadd.xlane.f32.xlu0 %v601
        %v603 = vpop.xlane.xlu0 %602
        %vm604 = vcmp.eq.s32.totalorder %v496, 3
        %vm605 = vcmp.eq.s32.totalorder %v497, 3
        %v606 = vsel %vm604, %v498, 0.0
        %v607 = vsel %vm605, %v499, 0.0
        %v610 = vrot.slane %v607, 7
        %v613 = vsel %vm521, %v606, 0.0
        %614 = vadd.xlane.f32.xlu0 %v613
        %v615 = vpop.xlane.xlu0 %614
        %v616 = vsel %vm525, %v610, 0.0
        %617 = vadd.xlane.f32.xlu0 %v616
        %v618 = vpop.xlane.xlu0 %617
        %vm619 = vcmp.eq.s32.totalorder %v510, 3
        %vm620 = vcmp.eq.s32.totalorder %v511, 3
        %v621 = vsel %vm619, 1.0, 0.0
        %v622 = vsel %vm620, 1.0, 0.0
        %v625 = vrot.slane %v622, 7
        %v628 = vsel %vm521, %v621, 0.0
        %629 = vadd.xlane.f32.xlu0 %v628
        %v630 = vpop.xlane.xlu0 %629
        %v631 = vsel %vm525, %v625, 0.0
        %632 = vadd.xlane.f32.xlu0 %v631
        %v633 = vpop.xlane.xlu0 %632
        %vm634 = vcmp.eq.s32.totalorder %v496, 4
        %vm635 = vcmp.eq.s32.totalorder %v497, 4
        %v636 = vsel %vm634, %v498, 0.0
        %v637 = vsel %vm635, %v499, 0.0
        %v640 = vrot.slane %v637, 7
        %v643 = vsel %vm521, %v636, 0.0
        %644 = vadd.xlane.f32.xlu0 %v643
        %v645 = vpop.xlane.xlu0 %644
        %v646 = vsel %vm525, %v640, 0.0
        %647 = vadd.xlane.f32.xlu0 %v646
        %v648 = vpop.xlane.xlu0 %647
        %vm649 = vcmp.eq.s32.totalorder %v510, 4
        %vm650 = vcmp.eq.s32.totalorder %v511, 4
        %v651 = vsel %vm649, 1.0, 0.0
        %v652 = vsel %vm650, 1.0, 0.0
        %v655 = vrot.slane %v652, 7
        %v658 = vsel %vm521, %v651, 0.0
        %659 = vadd.xlane.f32.xlu0 %v658
        %v660 = vpop.xlane.xlu0 %659
        %v661 = vsel %vm525, %v655, 0.0
        %662 = vadd.xlane.f32.xlu0 %v661
        %v663 = vpop.xlane.xlu0 %662
        %vm664 = vcmp.eq.s32.totalorder %v496, 5
        %vm665 = vcmp.eq.s32.totalorder %v497, 5
        %v666 = vsel %vm664, %v498, 0.0
        %v667 = vsel %vm665, %v499, 0.0
        %v670 = vrot.slane %v667, 7
        %v673 = vsel %vm521, %v666, 0.0
        %674 = vadd.xlane.f32.xlu0 %v673
        %v675 = vpop.xlane.xlu0 %674
        %v676 = vsel %vm525, %v670, 0.0
        %677 = vadd.xlane.f32.xlu0 %v676
        %v678 = vpop.xlane.xlu0 %677
        %vm679 = vcmp.eq.s32.totalorder %v510, 5
        %vm680 = vcmp.eq.s32.totalorder %v511, 5
        %v681 = vsel %vm679, 1.0, 0.0
        %v682 = vsel %vm680, 1.0, 0.0
        %v685 = vrot.slane %v682, 7
        %v688 = vsel %vm521, %v681, 0.0
        %689 = vadd.xlane.f32.xlu0 %v688
        %v690 = vpop.xlane.xlu0 %689
        %v691 = vsel %vm525, %v685, 0.0
        %692 = vadd.xlane.f32.xlu0 %v691
        %v693 = vpop.xlane.xlu0 %692
        %vm694 = vcmp.eq.s32.totalorder %v496, 6
        %vm695 = vcmp.eq.s32.totalorder %v497, 6
        %v696 = vsel %vm694, %v498, 0.0
        %v697 = vsel %vm695, %v499, 0.0
        %v700 = vrot.slane %v697, 7
        %v703 = vsel %vm521, %v696, 0.0
        %704 = vadd.xlane.f32.xlu0 %v703
        %v705 = vpop.xlane.xlu0 %704
        %v706 = vsel %vm525, %v700, 0.0
        %707 = vadd.xlane.f32.xlu0 %v706
        %v708 = vpop.xlane.xlu0 %707
        %vm709 = vcmp.eq.s32.totalorder %v510, 6
        %vm710 = vcmp.eq.s32.totalorder %v511, 6
        %v711 = vsel %vm709, 1.0, 0.0
        %v712 = vsel %vm710, 1.0, 0.0
        %v715 = vrot.slane %v712, 7
        %v718 = vsel %vm521, %v711, 0.0
        %719 = vadd.xlane.f32.xlu0 %v718
        %v720 = vpop.xlane.xlu0 %719
        %v721 = vsel %vm525, %v715, 0.0
        %722 = vadd.xlane.f32.xlu0 %v721
        %v723 = vpop.xlane.xlu0 %722
        %vm724 = vcmp.eq.s32.totalorder %v496, 7
        %vm725 = vcmp.eq.s32.totalorder %v497, 7
        %v726 = vsel %vm724, %v498, 0.0
        %v727 = vsel %vm725, %v499, 0.0
        %v730 = vrot.slane %v727, 7
        %v733 = vsel %vm521, %v726, 0.0
        %734 = vadd.xlane.f32.xlu0 %v733
        %v735 = vpop.xlane.xlu0 %734
        %v736 = vsel %vm525, %v730, 0.0
        %737 = vadd.xlane.f32.xlu0 %v736
        %v738 = vpop.xlane.xlu0 %737
        %vm739 = vcmp.eq.s32.totalorder %v510, 7
        %vm740 = vcmp.eq.s32.totalorder %v511, 7
        %v741 = vsel %vm739, 1.0, 0.0
        %v742 = vsel %vm740, 1.0, 0.0
        %v745 = vrot.slane %v742, 7
        %v748 = vsel %vm521, %v741, 0.0
        %749 = vadd.xlane.f32.xlu0 %v748
        %v750 = vpop.xlane.xlu0 %749
        %v751 = vsel %vm525, %v745, 0.0
        %752 = vadd.xlane.f32.xlu0 %v751
        %v753 = vpop.xlane.xlu0 %752
        %vm754 = vcmask 7168
        %v755 = vsel %vm754, %v524, %v555
        %v756 = vsel %vm754, %v528, %v558
        %vm757 = vcmask 15360
        %v758 = vsel %vm757, %v755, %v585
        %v759 = vsel %vm757, %v756, %v588
        %vm760 = vcmask 23552
        %v761 = vsel %vm760, %v758, %v615
        %v762 = vsel %vm760, %v759, %v618
        %vm763 = vcmask 31744
        %v764 = vsel %vm763, %v761, %v645
        %v765 = vsel %vm763, %v762, %v648
        %vm766 = vcmask 39936
        %v767 = vsel %vm766, %v764, %v675
        %v768 = vsel %vm766, %v765, %v678
        %vm769 = vcmask 48128
        %v770 = vsel %vm769, %v767, %v705
        %v771 = vsel %vm769, %v768, %v708
        %vm772 = vcmask 56320
        %v773 = vsel %vm772, %v770, %v735
        %v774 = vsel %vm772, %v771, %v738
        %777 = vst [vmem:[#allocation1] sm:$0xff] %v773
        %s778 = scalar_lea.vmem [#allocation1], 7
        %v779 = vld [vmem:[%s778] ss:$9 sm:$0xff]
        %780 = vst [vmem:[#allocation1] sm:$0xff] %v774
        %v781 = vld [vmem:[#allocation1] ss:$9 sm:$0xff]
        %vm784 = vcmask 57344
        %785 = vst.msk [vmem:[%s165] sm:$0x1] %vm784, %v779
        %786 = vst.msk [vmem:[%s165 + $0x2] sm:$0x1] %vm784, %v781
        %v787 = vsel %vm754, %v540, %v570
        %v788 = vsel %vm754, %v543, %v573
        %v789 = vsel %vm757, %v787, %v600
        %v790 = vsel %vm757, %v788, %v603
        %v791 = vsel %vm760, %v789, %v630
        %v792 = vsel %vm760, %v790, %v633
        %v793 = vsel %vm763, %v791, %v660
        %v794 = vsel %vm763, %v792, %v663
        %v795 = vsel %vm766, %v793, %v690
        %v796 = vsel %vm766, %v794, %v693
        %v797 = vsel %vm769, %v795, %v720
        %v798 = vsel %vm769, %v796, %v723
        %v799 = vsel %vm772, %v797, %v750
        %v800 = vsel %vm772, %v798, %v753
        %803 = vst [vmem:[#allocation1] sm:$0xff] %v799
        %s804 = scalar_lea.vmem [#allocation1], 7
        %v805 = vld [vmem:[%s804] ss:$9 sm:$0xff]
        %806 = vst [vmem:[#allocation1] sm:$0xff] %v800
        %v807 = vld [vmem:[#allocation1] ss:$9 sm:$0xff]
        %810 = vst.msk [vmem:[%s165 + $0x1] sm:$0x1] %vm784, %v805
        %811 = vst.msk [vmem:[%s165 + $0x3] sm:$0x1] %vm784, %v807
        %s812 = sand.u32 %s89, 1
        %s813 = sand.u32 %s89, 1
        %s814 = smul.addr %s813, 4
        %s815 = scalar_lea.vmem [#allocation2], %s814
        // Predicated region
        $region29: #{_lambda_.5} parent=27 // pred_check
          %p816 = pneg %p99
        $region30: #{_lambda_.5} parent=27 // pred_check_branch
          %818 = sbr.rel (%p816) target = $region32
        $region31: #{_lambda_.5} parent=27 // pred_region
          %s819 = smul.u32 2, %s17
          %s820 = smul.addr %s819, 4
          %s821 = sadd.s32 %s18, %s820
          %s822 = smul.addr %s821, 2
          %s823 = scalar_lea.vmem %s2, %s822
          // Predicated region
          $region33: #{_lambda_.5} parent=31 // pred_check
            _
          $region34: #{_lambda_.5} parent=31 // pred_check_branch
            %825 = sbr.rel (0) target = $region36
          $region35: #{_lambda_.5} parent=31 // pred_region
            // Predicated region
            $region37: #{_lambda_.5} parent=35 // pred_check
              _
            $region38: #{_lambda_.5} parent=35 // pred_check_branch
              %827 = sbr.rel target = $region40
            $region39: #{_lambda_.5} parent=35 // pred_region
              // Predicated region
              $region52: #{_lambda_.5} parent=39 // pred_check
                _
              $region53: #{_lambda_.5} parent=39 // pred_check_branch
                %845 = sbr.rel (0) target = $region55
              $region54: #{_lambda_.5} parent=39 // pred_region
                %s847 = ssub.s32 4, 1
                loop: start=0, step=1, limit=1
                $region56: #{_lambda_.5} parent=54 // loop_pre_header
                  _
                $region57: #{_lambda_.5} parent=54 // loop_header
                  %s849 = sphi 0, %s853
                  %p850 = scmp.ge.s32.totalorder %s849, 1
                  %s854 = sphi %s815, %s815
                  %s855 = sphi %s823, %s823
                $region58: #{_lambda_.5} parent=54 // loop_header_branch
                  %852 = sbr.rel (%p850) target = $region62
                $region59: #{_lambda_.5} parent=54 // loop_body
                  %v856 = vld [vmem:[%s854] sm:%s847]
                  %857 = vst [vmem:[%s855] sm:%s847] %v856
                  %v858 = vld [vmem:[%s854 + $0x2] sm:%s847]
                  %859 = vst [vmem:[%s855 + $0x8] sm:%s847] %v858
                $region60: #{_lambda_.5} parent=54 // loop_footer
                  %s853 = sadd.s32 1, %s849
                $region61: #{_lambda_.5} parent=54 // loop_footer_branch
                  %848 = sbr.rel target = $region57
                $region62: #{_lambda_.5} parent=54 // loop_exit
                  _
              $region55: #{_lambda_.5} parent=39 // pred_fallthru
                _
            $region40: #{_lambda_.5} parent=35 // pred_fallthru
              _
            // Predicated region
            $region41: #{_lambda_.5} parent=35 // pred_check
              _
            $region42: #{_lambda_.5} parent=35 // pred_check_branch
              %829 = sbr.rel (0) target = $region44
            $region43: #{_lambda_.5} parent=35 // pred_region
              %s831 = ssub.s32 4, 1
              loop: start=0, step=1, limit=1
              $region45: #{_lambda_.5} parent=43 // loop_pre_header
                _
              $region46: #{_lambda_.5} parent=43 // loop_header
                %s833 = sphi 0, %s837
                %p834 = scmp.ge.s32.totalorder %s833, 1
                %s838 = sphi %s815, %s815
                %s839 = sphi %s823, %s823
              $region47: #{_lambda_.5} parent=43 // loop_header_branch
                %836 = sbr.rel (%p834) target = $region51
              $region48: #{_lambda_.5} parent=43 // loop_body
                %v840 = vld [vmem:[%s838] sm:%s831]
                %841 = vst [vmem:[%s839] sm:%s831] %v840
                %v842 = vld [vmem:[%s838 + $0x2] sm:%s831]
                %843 = vst [vmem:[%s839 + $0x8] sm:%s831] %v842
              $region49: #{_lambda_.5} parent=43 // loop_footer
                %s837 = sadd.s32 1, %s833
              $region50: #{_lambda_.5} parent=43 // loop_footer_branch
                %832 = sbr.rel target = $region46
              $region51: #{_lambda_.5} parent=43 // loop_exit
                _
            $region44: #{_lambda_.5} parent=35 // pred_fallthru
              _
          $region36: #{_lambda_.5} parent=31 // pred_fallthru
            _
          %860 = vnop
        $region32: #{_lambda_.5} parent=27 // pred_fallthru
          _
      $region28: #{_lambda_.5} parent=5 // pred_fallthru
        _
      %p861 = scmp.le.s32.totalorder 2, %s8
      // Predicated region
      $region63: #{_lambda_.5} parent=5 // pred_check
        %p862 = pneg %p861
      $region64: #{_lambda_.5} parent=5 // pred_check_branch
        %864 = sbr.rel (%p862) target = $region66
      $region65: #{_lambda_.5} parent=5 // pred_region
        %s865 = ssub.s32 %s8, 2
        // Predicated region
        $region67: #{_lambda_.5} parent=65 // pred_check
          %p866 = pneg %p105
        $region68: #{_lambda_.5} parent=65 // pred_check_branch
          %868 = sbr.rel (%p866) target = $region70
        $region69: #{_lambda_.5} parent=65 // pred_region
          %s869 = sand.u32 %s90, 1
          %s870 = sand.u32 %s90, 1
          %s871 = smul.addr %s870, 4
          %s872 = scalar_lea.vmem [#allocation2], %s871
        $region70: #{_lambda_.5} parent=65 // pred_fallthru
          _
      $region66: #{_lambda_.5} parent=5 // pred_fallthru
        _
    $region6: #{_lambda_.5} parent=1 // loop_footer
      %s12 = sadd.s32 1, %s8
    $region7: #{_lambda_.5} parent=1 // loop_footer_branch
      %7 = sbr.rel target = $region3
    $region8: #{_lambda_.5} parent=1 // loop_exit
      _

// kernel: _lambda_.6
$region0: #{_lambda_.6}
  #allocation0 [shape = 'u32[]', space=smem, size = 0x4, offset = 0x4, fixed_abs, tag = 'smem constant byte address 0x4 - core index']
  #allocation1 [shape = 'u32[72,128]{1,0:T(1,128)}', space=vmem, size = 0x9000, scoped, tag = 'internal scratch']
  %s0 = inlined_call_operand.vmem [shape: f32[4,2,48], index: 0, kind: input, shape index: {}]
  %s1 = inlined_call_operand.vmem [shape: f32[4,8,9], index: 1, kind: input, shape index: {}]
  %s2 = inlined_call_operand.vmem [shape: f32[2,4,2,8], index: 2, kind: output, shape index: {}]
  %s3 = sld [smem:[#allocation0]]
  $region71: #{_lambda_.6} parent=0
    _
  %s5 = ssub.s32 1, %s3
  %s6 = scalar_select 0, %s5, %s3
  $region1: #{_lambda_.6} parent=0
    #allocation2 [shape = 'u8[4096]{0}', space=vmem, size = 0x1000, scoped, tag = 'output window, operand 0']
    loop: start=0, step=1, limit=6
    $region2: #{_lambda_.6} parent=1 // loop_pre_header
      _
    $region3: #{_lambda_.6} parent=1 // loop_header
      %s8 = sphi 0, %s12
      %p9 = scmp.ge.s32.totalorder %s8, 6
      %s15 = sphi 0, %s27
      %s16 = sphi 0, %s23
      %s17 = sphi 0, %s15
      %s18 = sphi 0, %s16
      %s19 = sphi 0, %s17
      %s20 = sphi 0, %s18
      %s32 = sphi 0, %s34
      %s35 = sphi 0, %s32
      %s36 = sphi 0, %s35
      %s52 = sphi 0, %s36
      %s58 = sphi 0, %s60
      %s61 = sphi 0, %s58
      %s62 = sphi 0, %s61
      %s78 = sphi 0, %s62
      %s86 = sphi 0, %s88
      %s89 = sphi 0, %s86
      %s90 = sphi 0, %s89
      %s106 = sphi 0, %s90
    $region4: #{_lambda_.6} parent=1 // loop_header_branch
      %11 = sbr.rel (%p9) target = $region8
    $region5: #{_lambda_.6} parent=1 // loop_body
      %s13 = ssub.s32 %s8, 1
      %s14 = ssub.s32 %s8, 2
      %s21 = sadd.s32 1, %s16
      %p22 = scmp.ge.s32.totalorder %s21, 4
      %s23 = scalar_select %p22, 0, %s21
      %s24 = sadd.s32 1, %s15
      %s25 = scalar_select %p22, %s24, %s15
      %p26 = scmp.ge.s32.totalorder %s25, 1
      %s27 = scalar_select %p26, 0, %s25
      %s28 = ssub.s32 %s16, %s23
      %s29 = ssub.s32 %s15, %s27
      %s30 = sor.u32 %s28, %s29
      %p31 = scmp.eq.s32.totalorder %s30, 0
      %s33 = sadd.s32 %s32, 1
      %s34 = scalar_select %p31, %s32, %s33
      %p37 = pneg %p31
      %p38 = scmp.eq.s32.totalorder %s8, 3
      %p39 = por %p37, %p38
      %p40 = scmp.ne.s32.totalorder %s32, %s35
      %p41 = scmp.eq.s32.totalorder %s8, 0
      %p42 = por %p40, %p41
      %p43 = scmp.ne.s32.totalorder %s32, %s35
      %p44 = scmp.eq.s32.totalorder %s13, 3
      %p45 = por %p43, %p44
      %p46 = scmp.ne.s32.totalorder %s35, %s36
      %p47 = scmp.eq.s32.totalorder %s13, 0
      %p48 = por %p46, %p47
      %p49 = scmp.ne.s32.totalorder %s35, %s36
      %p50 = scmp.eq.s32.totalorder %s14, 3
      %p51 = por %p49, %p50
      %p53 = scmp.ne.s32.totalorder %s36, %s52
      %p54 = scmp.eq.s32.totalorder %s14, 0
      %p55 = por %p53, %p54
      %s56 = ssub.s32 %s16, %s23
      %p57 = scmp.eq.s32.totalorder %s56, 0
      %s59 = sadd.s32 %s58, 1
      %s60 = scalar_select %p57, %s58, %s59
      %p63 = pneg %p57
      %p64 = scmp.eq.s32.totalorder %s8, 3
      %p65 = por %p63, %p64
      %p66 = scmp.ne.s32.totalorder %s58, %s61
      %p67 = scmp.eq.s32.totalorder %s8, 0
      %p68 = por %p66, %p67
      %p69 = scmp.ne.s32.totalorder %s58, %s61
      %p70 = scmp.eq.s32.totalorder %s13, 3
      %p71 = por %p69, %p70
      %p72 = scmp.ne.s32.totalorder %s61, %s62
      %p73 = scmp.eq.s32.totalorder %s13, 0
      %p74 = por %p72, %p73
      %p75 = scmp.ne.s32.totalorder %s61, %s62
      %p76 = scmp.eq.s32.totalorder %s14, 3
      %p77 = por %p75, %p76
      %p79 = scmp.ne.s32.totalorder %s62, %s78
      %p80 = scmp.eq.s32.totalorder %s14, 0
      %p81 = por %p79, %p80
      %s82 = ssub.s32 %s15, %s27
      %s83 = ssub.s32 %s16, %s23
      %s84 = sor.u32 %s82, %s83
      %p85 = scmp.eq.s32.totalorder %s84, 0
      %s87 = sadd.s32 %s86, 1
      %s88 = scalar_select %p85, %s86, %s87
      %p91 = pneg %p85
      %p92 = scmp.eq.s32.totalorder %s8, 3
      %p93 = por %p91, %p92
      %p94 = scmp.ne.s32.totalorder %s86, %s89
      %p95 = scmp.eq.s32.totalorder %s8, 0
      %p96 = por %p94, %p95
      %p97 = scmp.ne.s32.totalorder %s86, %s89
      %p98 = scmp.eq.s32.totalorder %s13, 3
      %p99 = por %p97, %p98
      %p100 = scmp.ne.s32.totalorder %s89, %s90
      %p101 = scmp.eq.s32.totalorder %s13, 0
      %p102 = por %p100, %p101
      %p103 = scmp.ne.s32.totalorder %s89, %s90
      %p104 = scmp.eq.s32.totalorder %s14, 3
      %p105 = por %p103, %p104
      %p107 = scmp.ne.s32.totalorder %s90, %s106
      %p108 = scmp.eq.s32.totalorder %s14, 0
      %p109 = por %p107, %p108
      %p110 = scmp.le.s32.totalorder 1, %s8
      %p111 = scmp.lt.s32.totalorder %s8, 5
      %p112 = pnand %p110, %p111
      %p113 = pneg %p112
      // Predicated region
      $region9: #{_lambda_.6} parent=5 // pred_check
        _
      $region10: #{_lambda_.6} parent=5 // pred_check_branch
        %115 = sbr.rel (%p112) target = $region12
      $region11: #{_lambda_.6} parent=5 // pred_region
        %s116 = ssub.s32 %s8, 1
      $region12: #{_lambda_.6} parent=5 // pred_fallthru
        _
      %p117 = scmp.lt.s32.totalorder %s8, 4
      // Predicated region
      $region13: #{_lambda_.6} parent=5 // pred_check
        %p118 = pneg %p117
      $region14: #{_lambda_.6} parent=5 // pred_check_branch
        %120 = sbr.rel (%p118) target = $region16
      $region15: #{_lambda_.6} parent=5 // pred_region
        // Predicated region
        $region17: #{_lambda_.6} parent=15 // pred_check
          %p121 = pneg %p42
        $region18: #{_lambda_.6} parent=15 // pred_check_branch
          %123 = sbr.rel (%p121) target = $region20
        $region19: #{_lambda_.6} parent=15 // pred_region
          %p124 = scmp.lt.s32.totalorder %s16, 3
          %s125 = scalar_select %p124, %s16, 3
          %p126 = scmp.lt.s32.totalorder %s15, 0
          %s127 = scalar_select %p126, %s15, 0
          %s128 = sadd.s32 %s127, %s125
          %s129 = smul.addr %s128, 2
          %s130 = scalar_lea.vmem %s0, %s129
        $region20: #{_lambda_.6} parent=15 // pred_fallthru
          _
        // Predicated region
        $region21: #{_lambda_.6} parent=15 // pred_check
          %p131 = pneg %p68
        $region22: #{_lambda_.6} parent=15 // pred_check_branch
          %133 = sbr.rel (%p131) target = $region24
        $region23: #{_lambda_.6} parent=15 // pred_region
          %p134 = scmp.lt.s32.totalorder %s16, 3
          %s135 = scalar_select %p134, %s16, 3
          %s136 = smul.addr %s135, 8
          %s137 = scalar_lea.vmem %s1, %s136
        $region24: #{_lambda_.6} parent=15 // pred_fallthru
          _
      $region16: #{_lambda_.6} parent=5 // pred_fallthru
        _
      %p138 = scmp.le.s32.totalorder 1, %s8
      %p139 = scmp.lt.s32.totalorder %s8, 5
      %p140 = pnand %p138, %p139
      %p141 = pneg %p140
      // Predicated region
      $region25: #{_lambda_.6} parent=5 // pred_check
        _
      $region26: #{_lambda_.6} parent=5 // pred_check_branch
        %143 = sbr.rel (%p140) target = $region28
      $region27: #{_lambda_.6} parent=5 // pred_region
        %s144 = ssub.s32 %s8, 1
        %p145 = scmp.lt.s32.totalorder %s18, 3
        %s146 = scalar_select %p145, %s18, 3
        %p147 = scmp.lt.s32.totalorder %s17, 0
        %s148 = scalar_select %p147, %s17, 0
        %s149 = sadd.s32 %s148, %s146
        %s150 = smul.addr %s149, 2
        %s151 = scalar_lea.vmem %s0, %s150
        %p152 = pneg %p48
        %p153 = pneg %p45
        %p154 = scmp.lt.s32.totalorder %s18, 3
        %s155 = scalar_select %p154, %s18, 3
        %s156 = smul.addr %s155, 8
        %s157 = scalar_lea.vmem %s1, %s156
        %p158 = pneg %p74
        %p159 = pneg %p71
        %p160 = pneg %p102
        %p161 = pneg %p99
        %s162 = sand.u32 %s89, 1
        %s163 = sand.u32 %s89, 1
        %s164 = smul.addr %s163, 4
        %s165 = scalar_lea.vmem [#allocation2], %s164
        %p166 = scmp.lt.s32.totalorder %s18, 3
        %s167 = scalar_select %p166, %s18, 3
        %p168 = scmp.lt.s32.totalorder %s17, 0
        %s169 = scalar_select %p168, %s17, 0
        %s170 = sadd.s32 %s169, %s167
        %s171 = smul.addr %s170, 2
        %s172 = scalar_lea.vmem %s0, %s171
        %p173 = scmp.lt.s32.totalorder %s18, 3
        %s174 = scalar_select %p173, %s18, 3
        %s175 = smul.addr %s174, 8
        %s176 = scalar_lea.vmem %s1, %s175
        %s177 = smul.u32 2, %s17
        %v179 = vld [vmem:[%s172] sm:$0x3]
        %v180 = vpack.c.bf16 %v179, %v179
        %v182 = vrot.slane %v180, 3
        %vm183 = vcmask 1040384
        %v186 = vsel %vm183, %v180, %v182
        %v188 = vunpack.i.l.s16 %v186
        %v189 = vunpack.i.h.s16 %v186
        %v190 = vpack.i.b16 %v188, %v188
        %v191 = vpack.i.b16 %v189, %v189
        %v192 = vperm.slane %v190, 0
        %v193 = vperm.slane %v191, 0
        %196 = vrot.lane.b32.xlu0 %v192, 126
        %v197 = vpop.permute.xlu0 %196
        %198 = vrot.lane.b32.xlu0 %v193, 126
        %v199 = vpop.permute.xlu0 %198
        %202 = vrot.lane.b32.xlu0 %v192, 124
        %v203 = vpop.permute.xlu0 %202
        %204 = vrot.lane.b32.xlu0 %v193, 124
        %v205 = vpop.permute.xlu0 %204
        %206 = vrot.lane.b32.xlu0 %v192, 122
        %v207 = vpop.permute.xlu0 %206
        %208 = vrot.lane.b32.xlu0 %v193, 122
        %v209 = vpop.permute.xlu0 %208
        %212 = vrot.lane.b32.xlu0 %v192, 120
        %v213 = vpop.permute.xlu0 %212
        %214 = vrot.lane.b32.xlu0 %v193, 120
        %v215 = vpop.permute.xlu0 %214
        %216 = vrot.lane.b32.xlu0 %v192, 118
        %v217 = vpop.permute.xlu0 %216
        %218 = vrot.lane.b32.xlu0 %v193, 118
        %v219 = vpop.permute.xlu0 %218
        %222 = vrot.lane.b32.xlu0 %v192, 116
        %v223 = vpop.permute.xlu0 %222
        %224 = vrot.lane.b32.xlu0 %v193, 116
        %v225 = vpop.permute.xlu0 %224
        %226 = vrot.lane.b32.xlu0 %v192, 114
        %v227 = vpop.permute.xlu0 %226
        %228 = vrot.lane.b32.xlu0 %v193, 114
        %v229 = vpop.permute.xlu0 %228
        %232 = vrot.lane.b32.xlu0 %v192, 112
        %v233 = vpop.permute.xlu0 %232
        %234 = vrot.lane.b32.xlu0 %v193, 112
        %v235 = vpop.permute.xlu0 %234
        %vm236 = vcmask 1040384
        %vm237 = vsmask.f32 256
        %vm238 = vmand %vm236, %vm237
        %v239 = vsel %vm238, %v192, %v197
        %v240 = vsel %vm238, %v193, %v199
        %v243 = vsel %vm183, %v239, %v203
        %v247 = vsel %vm183, %v240, %v205
        %vm249 = vcmask 1041408
        %vm250 = vsmask.f32 1280
        %vm251 = vmand %vm249, %vm250
        %v252 = vsel %vm251, %v243, %v207
        %v253 = vsel %vm251, %v247, %v209
        %vm254 = vcmask 1041408
        %v257 = vsel %vm254, %v252, %v213
        %v261 = vsel %vm254, %v253, %v215
        %vm263 = vcmask 1042432
        %vm264 = vsmask.f32 2304
        %vm265 = vmand %vm263, %vm264
        %v266 = vsel %vm265, %v257, %v217
        %v267 = vsel %vm265, %v261, %v219
        %vm268 = vcmask 1042432
        %v271 = vsel %vm268, %v266, %v223
        %v275 = vsel %vm268, %v267, %v225
        %vm277 = vcmask 1043456
        %vm278 = vsmask.f32 3328
        %vm279 = vmand %vm277, %vm278
        %v280 = vsel %vm279, %v271, %v227
        %v281 = vsel %vm279, %v275, %v229
        %vm282 = vcmask 1043456
        %v285 = vsel %vm282, %v280, %v233
        %v288 = vsel %vm282, %v281, %v235
        %v289 = vld [vmem:[%s176] sm:$0xff]
        %v290 = vpack.c.bf16 %v289, %v289
        %vm291 = vcmask 72704
        %v293 = vsel %vm291, %v290, 0
        %vm295 = vcmask 1044480
        %v296 = vsel %vm282, 4294967295, 65535
        %v297 = vsel %vm295, %v296, 0
        %v298 = vand.u32 %v285, %v297
        %300 = vmatpush.bf16.msra.mxu0 0
        %301 = vmatpush.bf16.msra.mxu0 0
        %302 = vmatpush.bf16.msra.mxu0 0
        %303 = vmatpush.bf16.msra.mxu0 0
        %304 = vmatpush.bf16.msra.mxu0 0
        %305 = vmatpush.bf16.msra.mxu0 0
        %306 = vmatpush.bf16.msra.mxu0 0
        %307 = vmatpush.bf16.msra.mxu0 %v298
        %308 = vmatmul.bf16.gmra.mxu0 %v293
        %v309 = vpop.f32.mrf.mxu0
        %v310 = vadd.f32 0.0, %v309
        %v311 = vpop.f32.mrf.mxu0
        %312 = vdwg.mxu0
        %v313 = vand.u32 %v288, %v297
        %315 = vmatpush.bf16.msra.mxu0 0
        %316 = vmatpush.bf16.msra.mxu0 0
        %317 = vmatpush.bf16.msra.mxu0 0
        %318 = vmatpush.bf16.msra.mxu0 0
        %319 = vmatpush.bf16.msra.mxu0 0
        %320 = vmatpush.bf16.msra.mxu0 0
        %321 = vmatpush.bf16.msra.mxu0 0
        %322 = vmatpush.bf16.msra.mxu0 %v313
        %323 = vmatmul.bf16.gmra.mxu0 %v293
        %v324 = vpop.f32.mrf.mxu0
        %v325 = vadd.f32 0.0, %v324
        %v326 = vpop.f32.mrf.mxu0
        %327 = vdwg.mxu0
        %v330 = vrot.slane %v310, 7
        %v331 = vrot.slane %v325, 7
        %vm334 = vcmp.gt.f32.partialorder %v310, %v330
        %vm335 = vcmp.gt.f32.partialorder %v325, %v331
        %v336 = vsel %vm334, 1, 0
        %v337 = vsel %vm335, 1, 0
        %v338 = vsel %vm334, %v310, %v330
        %v339 = vsel %vm335, %v325, %v331
        %vm340 = vcmp.lt.f32.partialorder %v310, %v330
        %vm341 = vcmp.lt.f32.partialorder %v325, %v331
        %v342 = vsel %vm340, 1, 0
        %v343 = vsel %vm341, 1, 0
        %v344 = vsel %vm340, %v310, %v330
        %v345 = vsel %vm341, %v325, %v331
        %v348 = vrot.slane %v338, 7
        %v349 = vrot.slane %v339, 7
        %vm352 = vcmp.gt.f32.partialorder %v310, %v348
        %vm353 = vcmp.gt.f32.partialorder %v325, %v349
        %v354 = vrot.slane %v336, 7
        %v355 = vrot.slane %v337, 7
        %v356 = vsel %vm352, 2, %v354
        %v357 = vsel %vm353, 2, %v355
        %v358 = vsel %vm352, %v310, %v348
        %v359 = vsel %vm353, %v325, %v349
        %v362 = vrot.slane %v344, 7
        %v363 = vrot.slane %v345, 7
        %vm366 = vcmp.lt.f32.partialorder %v310, %v362
        %vm367 = vcmp.lt.f32.partialorder %v325, %v363
        %v368 = vrot.slane %v342, 7
        %v369 = vrot.slane %v343, 7
        %v370 = vsel %vm366, 2, %v368
        %v371 = vsel %vm367, 2, %v369
        %v372 = vsel %vm366, %v310, %v362
        %v373 = vsel %vm367, %v325, %v363
        %v376 = vrot.slane %v358, 7
        %v377 = vrot.slane %v359, 7
        %vm380 = vcmp.gt.f32.partialorder %v310, %v376
        %vm381 = vcmp.gt.f32.partialorder %v325, %v377
        %v382 = vrot.slane %v356, 7
        %v383 = vrot.slane %v357, 7
        %v384 = vsel %vm380, 3, %v382
        %v385 = vsel %vm381, 3, %v383
        %v386 = vsel %vm380, %v310, %v376
        %v387 = vsel %vm381, %v325, %v377
        %v390 = vrot.slane %v372, 7
        %v391 = vrot.slane %v373, 7
        %vm394 = vcmp.lt.f32.partialorder %v310, %v390
        %vm395 = vcmp.lt.f32.partialorder %v325, %v391
        %v396 = vrot.slane %v370, 7
        %v397 = vrot.slane %v371, 7
        %v398 = vsel %vm394, 3, %v396
        %v399 = vsel %vm395, 3, %v397
        %v400 = vsel %vm394, %v310, %v390
        %v401 = vsel %vm395, %v325, %v391
        %v404 = vrot.slane %v386, 7
        %v405 = vrot.slane %v387, 7
        %vm408 = vcmp.gt.f32.partialorder %v310, %v404
        %vm409 = vcmp.gt.f32.partialorder %v325, %v405
        %v410 = vrot.slane %v384, 7
        %v411 = vrot.slane %v385, 7
        %v412 = vsel %vm408, 4, %v410
        %v413 = vsel %vm409, 4, %v411
        %v414 = vsel %vm408, %v310, %v404
        %v415 = vsel %vm409, %v325, %v405
        %v418 = vrot.slane %v400, 7
        %v419 = vrot.slane %v401, 7
        %vm422 = vcmp.lt.f32.partialorder %v310, %v418
        %vm423 = vcmp.lt.f32.partialorder %v325, %v419
        %v424 = vrot.slane %v398, 7
        %v425 = vrot.slane %v399, 7
        %v426 = vsel %vm422, 4, %v424
        %v427 = vsel %vm423, 4, %v425
        %v428 = vsel %vm422, %v310, %v418
        %v429 = vsel %vm423, %v325, %v419
        %v432 = vrot.slane %v414, 7
        %v433 = vrot.slane %v415, 7
        %vm436 = vcmp.gt.f32.partialorder %v310, %v432
        %vm437 = vcmp.gt.f32.partialorder %v325, %v433
        %v438 = vrot.slane %v412, 7
        %v439 = vrot.slane %v413, 7
        %v440 = vsel %vm436, 5, %v438
        %v441 = vsel %vm437, 5, %v439
        %v442 = vsel %vm436, %v310, %v432
        %v443 = vsel %vm437, %v325, %v433
        %v446 = vrot.slane %v428, 7
        %v447 = vrot.slane %v429, 7
        %vm450 = vcmp.lt.f32.partialorder %v310, %v446
        %vm451 = vcmp.lt.f32.partialorder %v325, %v447
        %v452 = vrot.slane %v426, 7
        %v453 = vrot.slane %v427, 7
        %v454 = vsel %vm450, 5, %v452
        %v455 = vsel %vm451, 5, %v453
        %v456 = vsel %vm450, %v310, %v446
        %v457 = vsel %vm451, %v325, %v447
        %v460 = vrot.slane %v442, 7
        %v461 = vrot.slane %v443, 7
        %vm464 = vcmp.gt.f32.partialorder %v310, %v460
        %vm465 = vcmp.gt.f32.partialorder %v325, %v461
        %v466 = vrot.slane %v440, 7
        %v467 = vrot.slane %v441, 7
        %v468 = vsel %vm464, 6, %v466
        %v469 = vsel %vm465, 6, %v467
        %v470 = vsel %vm464, %v310, %v460
        %v471 = vsel %vm465, %v325, %v461
        %v474 = vrot.slane %v456, 7
        %v475 = vrot.slane %v457, 7
        %vm478 = vcmp.lt.f32.partialorder %v310, %v474
        %vm479 = vcmp.lt.f32.partialorder %v325, %v475
        %v480 = vrot.slane %v454, 7
        %v481 = vrot.slane %v455, 7
        %v482 = vsel %vm478, 6, %v480
        %v483 = vsel %vm479, 6, %v481
        %v484 = vsel %vm478, %v310, %v474
        %v485 = vsel %vm479, %v325, %v475
        %v488 = vrot.slane %v470, 7
        %v489 = vrot.slane %v471, 7
        %vm492 = vcmp.gt.f32.partialorder %v310, %v488
        %vm493 = vcmp.gt.f32.partialorder %v325, %v489
        %v494 = vrot.slane %v468, 7
        %v495 = vrot.slane %v469, 7
        %v496 = vsel %vm492, 7, %v494
        %v497 = vsel %vm493, 7, %v495
        %v498 = vsel %vm492, %v310, %v488
        %v499 = vsel %vm493, %v325, %v489
        %v502 = vrot.slane %v484, 7
        %v503 = vrot.slane %v485, 7
        %vm506 = vcmp.lt.f32.partialorder %v310, %v502
        %vm507 = vcmp.lt.f32.partialorder %v325, %v503
        %v508 = vrot.slane %v482, 7
        %v509 = vrot.slane %v483, 7
        %v510 = vsel %vm506, 7, %v508
        %v511 = vsel %vm507, 7, %v509
        %vm512 = vcmp.eq.s32.totalorder %v496, 0
        %vm513 = vcmp.eq.s32.totalorder %v497, 0
        %v514 = vsel %vm512, %v498, 0.0
        %v515 = vsel %vm513, %v499, 0.0
        %v518 = vrot.slane %v515, 7
        %vm521 = vcmask 261127
        %v522 = vsel %vm521, %v514, 0.0
        %523 = vadd.xlane.f32.xlu0 %v522
        %v524 = vpop.xlane.xlu0 %523
        %vm525 = vcmask 253952
        %v526 = vsel %vm525, %v518, 0.0
        %527 = vadd.xlane.f32.xlu0 %v526
        %v528 = vpop.xlane.xlu0 %527
        %vm529 = vcmp.eq.s32.totalorder %v510, 0
        %vm530 = vcmp.eq.s32.totalorder %v511, 0
        %v531 = vsel %vm529, 1.0, 0.0
        %v532 = vsel %vm530, 1.0, 0.0
        %v535 = vrot.slane %v532, 7
        %v538 = vsel %vm521, %v531, 0.0
        %539 = vadd.xlane.f32.xlu0 %v538
        %v540 = vpop.xlane.xlu0 %539
        %v541 = vsel %vm525, %v535, 0.0
        %542 = vadd.xlane.f32.xlu0 %v541
        %v543 = vpop.xlane.xlu0 %542
        %vm544 = vcmp.eq.s32.totalorder %v496, 1
        %vm545 = vcmp.eq.s32.totalorder %v497, 1
        %v546 = vsel %vm544, %v498, 0.0
        %v547 = vsel %vm545, %v499, 0.0
        %v550 = vrot.slane %v547, 7
        %v553 = vsel %vm521, %v546, 0.0
        %554 = vadd.xlane.f32.xlu0 %v553
        %v555 = vpop.xlane.xlu0 %554
        %v556 = vsel %vm525, %v550, 0.0
        %557 = vadd.xlane.f32.xlu0 %v556
        %v558 = vpop.xlane.xlu0 %557
        %vm559 = vcmp.eq.s32.totalorder %v510, 1
        %vm560 = vcmp.eq.s32.totalorder %v511, 1
        %v561 = vsel %vm559, 1.0, 0.0
        %v562 = vsel %vm560, 1.0, 0.0
        %v565 = vrot.slane %v562, 7
        %v568 = vsel %vm521, %v561, 0.0
        %569 = vadd.xlane.f32.xlu0 %v568
        %v570 = vpop.xlane.xlu0 %569
        %v571 = vsel %vm525, %v565, 0.0
        %572 = vadd.xlane.f32.xlu0 %v571
        %v573 = vpop.xlane.xlu0 %572
        %vm574 = vcmp.eq.s32.totalorder %v496, 2
        %vm575 = vcmp.eq.s32.totalorder %v497, 2
        %v576 = vsel %vm574, %v498, 0.0
        %v577 = vsel %vm575, %v499, 0.0
        %v580 = vrot.slane %v577, 7
        %v583 = vsel %vm521, %v576, 0.0
        %584 = vadd.xlane.f32.xlu0 %v583
        %v585 = vpop.xlane.xlu0 %584
        %v586 = vsel %vm525, %v580, 0.0
        %587 = vadd.xlane.f32.xlu0 %v586
        %v588 = vpop.xlane.xlu0 %587
        %vm589 = vcmp.eq.s32.totalorder %v510, 2
        %vm590 = vcmp.eq.s32.totalorder %v511, 2
        %v591 = vsel %vm589, 1.0, 0.0
        %v592 = vsel %vm590, 1.0, 0.0
        %v595 = vrot.slane %v592, 7
        %v598 = vsel %vm521, %v591, 0.0
        %599 = vadd.xlane.f32.xlu0 %v598
        %v600 = vpop.xlane.xlu0 %599
        %v601 = vsel %vm525, %v595, 0.0
        %602 = vadd.xlane.f32.xlu0 %v601
        %v603 = vpop.xlane.xlu0 %602
        %vm604 = vcmp.eq.s32.totalorder %v496, 3
        %vm605 = vcmp.eq.s32.totalorder %v497, 3
        %v606 = vsel %vm604, %v498, 0.0
        %v607 = vsel %vm605, %v499, 0.0
        %v610 = vrot.slane %v607, 7
        %v613 = vsel %vm521, %v606, 0.0
        %614 = vadd.xlane.f32.xlu0 %v613
        %v615 = vpop.xlane.xlu0 %614
        %v616 = vsel %vm525, %v610, 0.0
        %617 = vadd.xlane.f32.xlu0 %v616
        %v618 = vpop.xlane.xlu0 %617
        %vm619 = vcmp.eq.s32.totalorder %v510, 3
        %vm620 = vcmp.eq.s32.totalorder %v511, 3
        %v621 = vsel %vm619, 1.0, 0.0
        %v622 = vsel %vm620, 1.0, 0.0
        %v625 = vrot.slane %v622, 7
        %v628 = vsel %vm521, %v621, 0.0
        %629 = vadd.xlane.f32.xlu0 %v628
        %v630 = vpop.xlane.xlu0 %629
        %v631 = vsel %vm525, %v625, 0.0
        %632 = vadd.xlane.f32.xlu0 %v631
        %v633 = vpop.xlane.xlu0 %632
        %vm634 = vcmp.eq.s32.totalorder %v496, 4
        %vm635 = vcmp.eq.s32.totalorder %v497, 4
        %v636 = vsel %vm634, %v498, 0.0
        %v637 = vsel %vm635, %v499, 0.0
        %v640 = vrot.slane %v637, 7
        %v643 = vsel %vm521, %v636, 0.0
        %644 = vadd.xlane.f32.xlu0 %v643
        %v645 = vpop.xlane.xlu0 %644
        %v646 = vsel %vm525, %v640, 0.0
        %647 = vadd.xlane.f32.xlu0 %v646
        %v648 = vpop.xlane.xlu0 %647
        %vm649 = vcmp.eq.s32.totalorder %v510, 4
        %vm650 = vcmp.eq.s32.totalorder %v511, 4
        %v651 = vsel %vm649, 1.0, 0.0
        %v652 = vsel %vm650, 1.0, 0.0
        %v655 = vrot.slane %v652, 7
        %v658 = vsel %vm521, %v651, 0.0
        %659 = vadd.xlane.f32.xlu0 %v658
        %v660 = vpop.xlane.xlu0 %659
        %v661 = vsel %vm525, %v655, 0.0
        %662 = vadd.xlane.f32.xlu0 %v661
        %v663 = vpop.xlane.xlu0 %662
        %vm664 = vcmp.eq.s32.totalorder %v496, 5
        %vm665 = vcmp.eq.s32.totalorder %v497, 5
        %v666 = vsel %vm664, %v498, 0.0
        %v667 = vsel %vm665, %v499, 0.0
        %v670 = vrot.slane %v667, 7
        %v673 = vsel %vm521, %v666, 0.0
        %674 = vadd.xlane.f32.xlu0 %v673
        %v675 = vpop.xlane.xlu0 %674
        %v676 = vsel %vm525, %v670, 0.0
        %677 = vadd.xlane.f32.xlu0 %v676
        %v678 = vpop.xlane.xlu0 %677
        %vm679 = vcmp.eq.s32.totalorder %v510, 5
        %vm680 = vcmp.eq.s32.totalorder %v511, 5
        %v681 = vsel %vm679, 1.0, 0.0
        %v682 = vsel %vm680, 1.0, 0.0
        %v685 = vrot.slane %v682, 7
        %v688 = vsel %vm521, %v681, 0.0
        %689 = vadd.xlane.f32.xlu0 %v688
        %v690 = vpop.xlane.xlu0 %689
        %v691 = vsel %vm525, %v685, 0.0
        %692 = vadd.xlane.f32.xlu0 %v691
        %v693 = vpop.xlane.xlu0 %692
        %vm694 = vcmp.eq.s32.totalorder %v496, 6
        %vm695 = vcmp.eq.s32.totalorder %v497, 6
        %v696 = vsel %vm694, %v498, 0.0
        %v697 = vsel %vm695, %v499, 0.0
        %v700 = vrot.slane %v697, 7
        %v703 = vsel %vm521, %v696, 0.0
        %704 = vadd.xlane.f32.xlu0 %v703
        %v705 = vpop.xlane.xlu0 %704
        %v706 = vsel %vm525, %v700, 0.0
        %707 = vadd.xlane.f32.xlu0 %v706
        %v708 = vpop.xlane.xlu0 %707
        %vm709 = vcmp.eq.s32.totalorder %v510, 6
        %vm710 = vcmp.eq.s32.totalorder %v511, 6
        %v711 = vsel %vm709, 1.0, 0.0
        %v712 = vsel %vm710, 1.0, 0.0
        %v715 = vrot.slane %v712, 7
        %v718 = vsel %vm521, %v711, 0.0
        %719 = vadd.xlane.f32.xlu0 %v718
        %v720 = vpop.xlane.xlu0 %719
        %v721 = vsel %vm525, %v715, 0.0
        %722 = vadd.xlane.f32.xlu0 %v721
        %v723 = vpop.xlane.xlu0 %722
        %vm724 = vcmp.eq.s32.totalorder %v496, 7
        %vm725 = vcmp.eq.s32.totalorder %v497, 7
        %v726 = vsel %vm724, %v498, 0.0
        %v727 = vsel %vm725, %v499, 0.0
        %v730 = vrot.slane %v727, 7
        %v733 = vsel %vm521, %v726, 0.0
        %734 = vadd.xlane.f32.xlu0 %v733
        %v735 = vpop.xlane.xlu0 %734
        %v736 = vsel %vm525, %v730, 0.0
        %737 = vadd.xlane.f32.xlu0 %v736
        %v738 = vpop.xlane.xlu0 %737
        %vm739 = vcmp.eq.s32.totalorder %v510, 7
        %vm740 = vcmp.eq.s32.totalorder %v511, 7
        %v741 = vsel %vm739, 1.0, 0.0
        %v742 = vsel %vm740, 1.0, 0.0
        %v745 = vrot.slane %v742, 7
        %v748 = vsel %vm521, %v741, 0.0
        %749 = vadd.xlane.f32.xlu0 %v748
        %v750 = vpop.xlane.xlu0 %749
        %v751 = vsel %vm525, %v745, 0.0
        %752 = vadd.xlane.f32.xlu0 %v751
        %v753 = vpop.xlane.xlu0 %752
        %vm754 = vcmask 7168
        %v755 = vsel %vm754, %v524, %v555
        %v756 = vsel %vm754, %v528, %v558
        %vm757 = vcmask 15360
        %v758 = vsel %vm757, %v755, %v585
        %v759 = vsel %vm757, %v756, %v588
        %vm760 = vcmask 23552
        %v761 = vsel %vm760, %v758, %v615
        %v762 = vsel %vm760, %v759, %v618
        %vm763 = vcmask 31744
        %v764 = vsel %vm763, %v761, %v645
        %v765 = vsel %vm763, %v762, %v648
        %vm766 = vcmask 39936
        %v767 = vsel %vm766, %v764, %v675
        %v768 = vsel %vm766, %v765, %v678
        %vm769 = vcmask 48128
        %v770 = vsel %vm769, %v767, %v705
        %v771 = vsel %vm769, %v768, %v708
        %vm772 = vcmask 56320
        %v773 = vsel %vm772, %v770, %v735
        %v774 = vsel %vm772, %v771, %v738
        %777 = vst [vmem:[#allocation1] sm:$0xff] %v773
        %s778 = scalar_lea.vmem [#allocation1], 7
        %v779 = vld [vmem:[%s778] ss:$9 sm:$0xff]
        %780 = vst [vmem:[#allocation1] sm:$0xff] %v774
        %v781 = vld [vmem:[#allocation1] ss:$9 sm:$0xff]
        %vm784 = vcmask 57344
        %785 = vst.msk [vmem:[%s165] sm:$0x1] %vm784, %v779
        %786 = vst.msk [vmem:[%s165 + $0x2] sm:$0x1] %vm784, %v781
        %v787 = vsel %vm754, %v540, %v570
        %v788 = vsel %vm754, %v543, %v573
        %v789 = vsel %vm757, %v787, %v600
        %v790 = vsel %vm757, %v788, %v603
        %v791 = vsel %vm760, %v789, %v630
        %v792 = vsel %vm760, %v790, %v633
        %v793 = vsel %vm763, %v791, %v660
        %v794 = vsel %vm763, %v792, %v663
        %v795 = vsel %vm766, %v793, %v690
        %v796 = vsel %vm766, %v794, %v693
        %v797 = vsel %vm769, %v795, %v720
        %v798 = vsel %vm769, %v796, %v723
        %v799 = vsel %vm772, %v797, %v750
        %v800 = vsel %vm772, %v798, %v753
        %803 = vst [vmem:[#allocation1] sm:$0xff] %v799
        %s804 = scalar_lea.vmem [#allocation1], 7
        %v805 = vld [vmem:[%s804] ss:$9 sm:$0xff]
        %806 = vst [vmem:[#allocation1] sm:$0xff] %v800
        %v807 = vld [vmem:[#allocation1] ss:$9 sm:$0xff]
        %810 = vst.msk [vmem:[%s165 + $0x1] sm:$0x1] %vm784, %v805
        %811 = vst.msk [vmem:[%s165 + $0x3] sm:$0x1] %vm784, %v807
        %s812 = sand.u32 %s89, 1
        %s813 = sand.u32 %s89, 1
        %s814 = smul.addr %s813, 4
        %s815 = scalar_lea.vmem [#allocation2], %s814
        // Predicated region
        $region29: #{_lambda_.6} parent=27 // pred_check
          %p816 = pneg %p99
        $region30: #{_lambda_.6} parent=27 // pred_check_branch
          %818 = sbr.rel (%p816) target = $region32
        $region31: #{_lambda_.6} parent=27 // pred_region
          %s819 = smul.u32 2, %s17
          %s820 = smul.addr %s819, 4
          %s821 = sadd.s32 %s18, %s820
          %s822 = smul.addr %s821, 2
          %s823 = scalar_lea.vmem %s2, %s822
          // Predicated region
          $region33: #{_lambda_.6} parent=31 // pred_check
            _
          $region34: #{_lambda_.6} parent=31 // pred_check_branch
            %825 = sbr.rel (0) target = $region36
          $region35: #{_lambda_.6} parent=31 // pred_region
            // Predicated region
            $region37: #{_lambda_.6} parent=35 // pred_check
              _
            $region38: #{_lambda_.6} parent=35 // pred_check_branch
              %827 = sbr.rel target = $region40
            $region39: #{_lambda_.6} parent=35 // pred_region
              // Predicated region
              $region52: #{_lambda_.6} parent=39 // pred_check
                _
              $region53: #{_lambda_.6} parent=39 // pred_check_branch
                %845 = sbr.rel (0) target = $region55
              $region54: #{_lambda_.6} parent=39 // pred_region
                %s847 = ssub.s32 4, 1
                loop: start=0, step=1, limit=1
                $region56: #{_lambda_.6} parent=54 // loop_pre_header
                  _
                $region57: #{_lambda_.6} parent=54 // loop_header
                  %s849 = sphi 0, %s853
                  %p850 = scmp.ge.s32.totalorder %s849, 1
                  %s854 = sphi %s815, %s815
                  %s855 = sphi %s823, %s823
                $region58: #{_lambda_.6} parent=54 // loop_header_branch
                  %852 = sbr.rel (%p850) target = $region62
                $region59: #{_lambda_.6} parent=54 // loop_body
                  %v856 = vld [vmem:[%s854] sm:%s847]
                  %857 = vst [vmem:[%s855] sm:%s847] %v856
                  %v858 = vld [vmem:[%s854 + $0x2] sm:%s847]
                  %859 = vst [vmem:[%s855 + $0x8] sm:%s847] %v858
                $region60: #{_lambda_.6} parent=54 // loop_footer
                  %s853 = sadd.s32 1, %s849
                $region61: #{_lambda_.6} parent=54 // loop_footer_branch
                  %848 = sbr.rel target = $region57
                $region62: #{_lambda_.6} parent=54 // loop_exit
                  _
              $region55: #{_lambda_.6} parent=39 // pred_fallthru
                _
            $region40: #{_lambda_.6} parent=35 // pred_fallthru
              _
            // Predicated region
            $region41: #{_lambda_.6} parent=35 // pred_check
              _
            $region42: #{_lambda_.6} parent=35 // pred_check_branch
              %829 = sbr.rel (0) target = $region44
            $region43: #{_lambda_.6} parent=35 // pred_region
              %s831 = ssub.s32 4, 1
              loop: start=0, step=1, limit=1
              $region45: #{_lambda_.6} parent=43 // loop_pre_header
                _
              $region46: #{_lambda_.6} parent=43 // loop_header
                %s833 = sphi 0, %s837
                %p834 = scmp.ge.s32.totalorder %s833, 1
                %s838 = sphi %s815, %s815
                %s839 = sphi %s823, %s823
              $region47: #{_lambda_.6} parent=43 // loop_header_branch
                %836 = sbr.rel (%p834) target = $region51
              $region48: #{_lambda_.6} parent=43 // loop_body
                %v840 = vld [vmem:[%s838] sm:%s831]
                %841 = vst [vmem:[%s839] sm:%s831] %v840
                %v842 = vld [vmem:[%s838 + $0x2] sm:%s831]
                %843 = vst [vmem:[%s839 + $0x8] sm:%s831] %v842
              $region49: #{_lambda_.6} parent=43 // loop_footer
                %s837 = sadd.s32 1, %s833
              $region50: #{_lambda_.6} parent=43 // loop_footer_branch
                %832 = sbr.rel target = $region46
              $region51: #{_lambda_.6} parent=43 // loop_exit
                _
            $region44: #{_lambda_.6} parent=35 // pred_fallthru
              _
          $region36: #{_lambda_.6} parent=31 // pred_fallthru
            _
          %860 = vnop
        $region32: #{_lambda_.6} parent=27 // pred_fallthru
          _
      $region28: #{_lambda_.6} parent=5 // pred_fallthru
        _
      %p861 = scmp.le.s32.totalorder 2, %s8
      // Predicated region
      $region63: #{_lambda_.6} parent=5 // pred_check
        %p862 = pneg %p861
      $region64: #{_lambda_.6} parent=5 // pred_check_branch
        %864 = sbr.rel (%p862) target = $region66
      $region65: #{_lambda_.6} parent=5 // pred_region
        %s865 = ssub.s32 %s8, 2
        // Predicated region
        $region67: #{_lambda_.6} parent=65 // pred_check
          %p866 = pneg %p105
        $region68: #{_lambda_.6} parent=65 // pred_check_branch
          %868 = sbr.rel (%p866) target = $region70
        $region69: #{_lambda_.6} parent=65 // pred_region
          %s869 = sand.u32 %s90, 1
          %s870 = sand.u32 %s90, 1
          %s871 = smul.addr %s870, 4
          %s872 = scalar_lea.vmem [#allocation2], %s871
        $region70: #{_lambda_.6} parent=65 // pred_fallthru
          _
      $region66: #{_lambda_.6} parent=5 // pred_fallthru
        _
    $region6: #{_lambda_.6} parent=1 // loop_footer
      %s12 = sadd.s32 1, %s8
    $region7: #{_lambda_.6} parent=1 // loop_footer_branch
      %7 = sbr.rel target = $region3
    $region8: #{_lambda_.6} parent=1 // loop_exit
      _

// kernel: _lambda_.4
$region0: #{_lambda_.4}
  #allocation0 [shape = 'u32[]', space=smem, size = 0x4, offset = 0x4, fixed_abs, tag = 'smem constant byte address 0x4 - core index']
  #allocation1 [shape = 'u32[72,128]{1,0:T(1,128)}', space=vmem, size = 0x9000, scoped, tag = 'internal scratch']
  %s0 = inlined_call_operand.vmem [shape: f32[4,2,40], index: 0, kind: input, shape index: {}]
  %s1 = inlined_call_operand.vmem [shape: f32[4,8,9], index: 1, kind: input, shape index: {}]
  %s2 = inlined_call_operand.vmem [shape: f32[2,4,2,8], index: 2, kind: output, shape index: {}]
  %s3 = sld [smem:[#allocation0]]
  $region71: #{_lambda_.4} parent=0
    _
  %s5 = ssub.s32 1, %s3
  %s6 = scalar_select 0, %s5, %s3
  $region1: #{_lambda_.4} parent=0
    #allocation2 [shape = 'u8[4096]{0}', space=vmem, size = 0x1000, scoped, tag = 'output window, operand 0']
    loop: start=0, step=1, limit=6
    $region2: #{_lambda_.4} parent=1 // loop_pre_header
      _
    $region3: #{_lambda_.4} parent=1 // loop_header
      %s8 = sphi 0, %s12
      %p9 = scmp.ge.s32.totalorder %s8, 6
      %s15 = sphi 0, %s27
      %s16 = sphi 0, %s23
      %s17 = sphi 0, %s15
      %s18 = sphi 0, %s16
      %s19 = sphi 0, %s17
      %s20 = sphi 0, %s18
      %s32 = sphi 0, %s34
      %s35 = sphi 0, %s32
      %s36 = sphi 0, %s35
      %s52 = sphi 0, %s36
      %s58 = sphi 0, %s60
      %s61 = sphi 0, %s58
      %s62 = sphi 0, %s61
      %s78 = sphi 0, %s62
      %s86 = sphi 0, %s88
      %s89 = sphi 0, %s86
      %s90 = sphi 0, %s89
      %s106 = sphi 0, %s90
    $region4: #{_lambda_.4} parent=1 // loop_header_branch
      %11 = sbr.rel (%p9) target = $region8
    $region5: #{_lambda_.4} parent=1 // loop_body
      %s13 = ssub.s32 %s8, 1
      %s14 = ssub.s32 %s8, 2
      %s21 = sadd.s32 1, %s16
      %p22 = scmp.ge.s32.totalorder %s21, 4
      %s23 = scalar_select %p22, 0, %s21
      %s24 = sadd.s32 1, %s15
      %s25 = scalar_select %p22, %s24, %s15
      %p26 = scmp.ge.s32.totalorder %s25, 1
      %s27 = scalar_select %p26, 0, %s25
      %s28 = ssub.s32 %s16, %s23
      %s29 = ssub.s32 %s15, %s27
      %s30 = sor.u32 %s28, %s29
      %p31 = scmp.eq.s32.totalorder %s30, 0
      %s33 = sadd.s32 %s32, 1
      %s34 = scalar_select %p31, %s32, %s33
      %p37 = pneg %p31
      %p38 = scmp.eq.s32.totalorder %s8, 3
      %p39 = por %p37, %p38
      %p40 = scmp.ne.s32.totalorder %s32, %s35
      %p41 = scmp.eq.s32.totalorder %s8, 0
      %p42 = por %p40, %p41
      %p43 = scmp.ne.s32.totalorder %s32, %s35
      %p44 = scmp.eq.s32.totalorder %s13, 3
      %p45 = por %p43, %p44
      %p46 = scmp.ne.s32.totalorder %s35, %s36
      %p47 = scmp.eq.s32.totalorder %s13, 0
      %p48 = por %p46, %p47
      %p49 = scmp.ne.s32.totalorder %s35, %s36
      %p50 = scmp.eq.s32.totalorder %s14, 3
      %p51 = por %p49, %p50
      %p53 = scmp.ne.s32.totalorder %s36, %s52
      %p54 = scmp.eq.s32.totalorder %s14, 0
      %p55 = por %p53, %p54
      %s56 = ssub.s32 %s16, %s23
      %p57 = scmp.eq.s32.totalorder %s56, 0
      %s59 = sadd.s32 %s58, 1
      %s60 = scalar_select %p57, %s58, %s59
      %p63 = pneg %p57
      %p64 = scmp.eq.s32.totalorder %s8, 3
      %p65 = por %p63, %p64
      %p66 = scmp.ne.s32.totalorder %s58, %s61
      %p67 = scmp.eq.s32.totalorder %s8, 0
      %p68 = por %p66, %p67
      %p69 = scmp.ne.s32.totalorder %s58, %s61
      %p70 = scmp.eq.s32.totalorder %s13, 3
      %p71 = por %p69, %p70
      %p72 = scmp.ne.s32.totalorder %s61, %s62
      %p73 = scmp.eq.s32.totalorder %s13, 0
      %p74 = por %p72, %p73
      %p75 = scmp.ne.s32.totalorder %s61, %s62
      %p76 = scmp.eq.s32.totalorder %s14, 3
      %p77 = por %p75, %p76
      %p79 = scmp.ne.s32.totalorder %s62, %s78
      %p80 = scmp.eq.s32.totalorder %s14, 0
      %p81 = por %p79, %p80
      %s82 = ssub.s32 %s15, %s27
      %s83 = ssub.s32 %s16, %s23
      %s84 = sor.u32 %s82, %s83
      %p85 = scmp.eq.s32.totalorder %s84, 0
      %s87 = sadd.s32 %s86, 1
      %s88 = scalar_select %p85, %s86, %s87
      %p91 = pneg %p85
      %p92 = scmp.eq.s32.totalorder %s8, 3
      %p93 = por %p91, %p92
      %p94 = scmp.ne.s32.totalorder %s86, %s89
      %p95 = scmp.eq.s32.totalorder %s8, 0
      %p96 = por %p94, %p95
      %p97 = scmp.ne.s32.totalorder %s86, %s89
      %p98 = scmp.eq.s32.totalorder %s13, 3
      %p99 = por %p97, %p98
      %p100 = scmp.ne.s32.totalorder %s89, %s90
      %p101 = scmp.eq.s32.totalorder %s13, 0
      %p102 = por %p100, %p101
      %p103 = scmp.ne.s32.totalorder %s89, %s90
      %p104 = scmp.eq.s32.totalorder %s14, 3
      %p105 = por %p103, %p104
      %p107 = scmp.ne.s32.totalorder %s90, %s106
      %p108 = scmp.eq.s32.totalorder %s14, 0
      %p109 = por %p107, %p108
      %p110 = scmp.le.s32.totalorder 1, %s8
      %p111 = scmp.lt.s32.totalorder %s8, 5
      %p112 = pnand %p110, %p111
      %p113 = pneg %p112
      // Predicated region
      $region9: #{_lambda_.4} parent=5 // pred_check
        _
      $region10: #{_lambda_.4} parent=5 // pred_check_branch
        %115 = sbr.rel (%p112) target = $region12
      $region11: #{_lambda_.4} parent=5 // pred_region
        %s116 = ssub.s32 %s8, 1
      $region12: #{_lambda_.4} parent=5 // pred_fallthru
        _
      %p117 = scmp.lt.s32.totalorder %s8, 4
      // Predicated region
      $region13: #{_lambda_.4} parent=5 // pred_check
        %p118 = pneg %p117
      $region14: #{_lambda_.4} parent=5 // pred_check_branch
        %120 = sbr.rel (%p118) target = $region16
      $region15: #{_lambda_.4} parent=5 // pred_region
        // Predicated region
        $region17: #{_lambda_.4} parent=15 // pred_check
          %p121 = pneg %p42
        $region18: #{_lambda_.4} parent=15 // pred_check_branch
          %123 = sbr.rel (%p121) target = $region20
        $region19: #{_lambda_.4} parent=15 // pred_region
          %p124 = scmp.lt.s32.totalorder %s16, 3
          %s125 = scalar_select %p124, %s16, 3
          %p126 = scmp.lt.s32.totalorder %s15, 0
          %s127 = scalar_select %p126, %s15, 0
          %s128 = sadd.s32 %s127, %s125
          %s129 = smul.addr %s128, 2
          %s130 = scalar_lea.vmem %s0, %s129
        $region20: #{_lambda_.4} parent=15 // pred_fallthru
          _
        // Predicated region
        $region21: #{_lambda_.4} parent=15 // pred_check
          %p131 = pneg %p68
        $region22: #{_lambda_.4} parent=15 // pred_check_branch
          %133 = sbr.rel (%p131) target = $region24
        $region23: #{_lambda_.4} parent=15 // pred_region
          %p134 = scmp.lt.s32.totalorder %s16, 3
          %s135 = scalar_select %p134, %s16, 3
          %s136 = smul.addr %s135, 8
          %s137 = scalar_lea.vmem %s1, %s136
        $region24: #{_lambda_.4} parent=15 // pred_fallthru
          _
      $region16: #{_lambda_.4} parent=5 // pred_fallthru
        _
      %p138 = scmp.le.s32.totalorder 1, %s8
      %p139 = scmp.lt.s32.totalorder %s8, 5
      %p140 = pnand %p138, %p139
      %p141 = pneg %p140
      // Predicated region
      $region25: #{_lambda_.4} parent=5 // pred_check
        _
      $region26: #{_lambda_.4} parent=5 // pred_check_branch
        %143 = sbr.rel (%p140) target = $region28
      $region27: #{_lambda_.4} parent=5 // pred_region
        %s144 = ssub.s32 %s8, 1
        %p145 = scmp.lt.s32.totalorder %s18, 3
        %s146 = scalar_select %p145, %s18, 3
        %p147 = scmp.lt.s32.totalorder %s17, 0
        %s148 = scalar_select %p147, %s17, 0
        %s149 = sadd.s32 %s148, %s146
        %s150 = smul.addr %s149, 2
        %s151 = scalar_lea.vmem %s0, %s150
        %p152 = pneg %p48
        %p153 = pneg %p45
        %p154 = scmp.lt.s32.totalorder %s18, 3
        %s155 = scalar_select %p154, %s18, 3
        %s156 = smul.addr %s155, 8
        %s157 = scalar_lea.vmem %s1, %s156
        %p158 = pneg %p74
        %p159 = pneg %p71
        %p160 = pneg %p102
        %p161 = pneg %p99
        %s162 = sand.u32 %s89, 1
        %s163 = sand.u32 %s89, 1
        %s164 = smul.addr %s163, 4
        %s165 = scalar_lea.vmem [#allocation2], %s164
        %p166 = scmp.lt.s32.totalorder %s18, 3
        %s167 = scalar_select %p166, %s18, 3
        %p168 = scmp.lt.s32.totalorder %s17, 0
        %s169 = scalar_select %p168, %s17, 0
        %s170 = sadd.s32 %s169, %s167
        %s171 = smul.addr %s170, 2
        %s172 = scalar_lea.vmem %s0, %s171
        %p173 = scmp.lt.s32.totalorder %s18, 3
        %s174 = scalar_select %p173, %s18, 3
        %s175 = smul.addr %s174, 8
        %s176 = scalar_lea.vmem %s1, %s175
        %s177 = smul.u32 2, %s17
        %v179 = vld [vmem:[%s172] sm:$0x3]
        %v180 = vpack.c.bf16 %v179, %v179
        %v182 = vrot.slane %v180, 3
        %vm183 = vcmask 1040384
        %v186 = vsel %vm183, %v180, %v182
        %v188 = vunpack.i.l.s16 %v186
        %v189 = vunpack.i.h.s16 %v186
        %v190 = vpack.i.b16 %v188, %v188
        %v191 = vpack.i.b16 %v189, %v189
        %v192 = vperm.slane %v190, 0
        %v193 = vperm.slane %v191, 0
        %196 = vrot.lane.b32.xlu0 %v192, 127
        %v197 = vpop.permute.xlu0 %196
        %198 = vrot.lane.b32.xlu0 %v193, 127
        %v199 = vpop.permute.xlu0 %198
        %202 = vrot.lane.b32.xlu0 %v192, 126
        %v203 = vpop.permute.xlu0 %202
        %204 = vrot.lane.b32.xlu0 %v193, 126
        %v205 = vpop.permute.xlu0 %204
        %206 = vrot.lane.b32.xlu0 %v192, 125
        %v207 = vpop.permute.xlu0 %206
        %208 = vrot.lane.b32.xlu0 %v193, 125
        %v209 = vpop.permute.xlu0 %208
        %212 = vrot.lane.b32.xlu0 %v192, 124
        %v213 = vpop.permute.xlu0 %212
        %214 = vrot.lane.b32.xlu0 %v193, 124
        %v215 = vpop.permute.xlu0 %214
        %216 = vrot.lane.b32.xlu0 %v192, 123
        %v217 = vpop.permute.xlu0 %216
        %218 = vrot.lane.b32.xlu0 %v193, 123
        %v219 = vpop.permute.xlu0 %218
        %222 = vrot.lane.b32.xlu0 %v192, 122
        %v223 = vpop.permute.xlu0 %222
        %224 = vrot.lane.b32.xlu0 %v193, 122
        %v225 = vpop.permute.xlu0 %224
        %226 = vrot.lane.b32.xlu0 %v192, 121
        %v227 = vpop.permute.xlu0 %226
        %228 = vrot.lane.b32.xlu0 %v193, 121
        %v229 = vpop.permute.xlu0 %228
        %232 = vrot.lane.b32.xlu0 %v192, 120
        %v233 = vpop.permute.xlu0 %232
        %234 = vrot.lane.b32.xlu0 %v193, 120
        %v235 = vpop.permute.xlu0 %234
        %vm236 = vcmask 1040384
        %vm237 = vsmask.f32 256
        %vm238 = vmand %vm236, %vm237
        %v239 = vsel %vm238, %v192, %v197
        %v240 = vsel %vm238, %v193, %v199
        %v243 = vsel %vm183, %v239, %v203
        %v247 = vsel %vm183, %v240, %v205
        %vm249 = vcmask 1041408
        %vm250 = vsmask.f32 1280
        %vm251 = vmand %vm249, %vm250
        %v252 = vsel %vm251, %v243, %v207
        %v253 = vsel %vm251, %v247, %v209
        %vm254 = vcmask 1041408
        %v257 = vsel %vm254, %v252, %v213
        %v261 = vsel %vm254, %v253, %v215
        %vm263 = vcmask 1042432
        %vm264 = vsmask.f32 2304
        %vm265 = vmand %vm263, %vm264
        %v266 = vsel %vm265, %v257, %v217
        %v267 = vsel %vm265, %v261, %v219
        %vm268 = vcmask 1042432
        %v271 = vsel %vm268, %v266, %v223
        %v275 = vsel %vm268, %v267, %v225
        %vm277 = vcmask 1043456
        %vm278 = vsmask.f32 3328
        %vm279 = vmand %vm277, %vm278
        %v280 = vsel %vm279, %v271, %v227
        %v281 = vsel %vm279, %v275, %v229
        %vm282 = vcmask 1043456
        %v285 = vsel %vm282, %v280, %v233
        %v288 = vsel %vm282, %v281, %v235
        %v289 = vld [vmem:[%s176] sm:$0xff]
        %v290 = vpack.c.bf16 %v289, %v289
        %vm291 = vcmask 72704
        %v293 = vsel %vm291, %v290, 0
        %vm295 = vcmask 1044480
        %v296 = vsel %vm282, 4294967295, 65535
        %v297 = vsel %vm295, %v296, 0
        %v298 = vand.u32 %v285, %v297
        %300 = vmatpush.bf16.msra.mxu0 0
        %301 = vmatpush.bf16.msra.mxu0 0
        %302 = vmatpush.bf16.msra.mxu0 0
        %303 = vmatpush.bf16.msra.mxu0 0
        %304 = vmatpush.bf16.msra.mxu0 0
        %305 = vmatpush.bf16.msra.mxu0 0
        %306 = vmatpush.bf16.msra.mxu0 0
        %307 = vmatpush.bf16.msra.mxu0 %v298
        %308 = vmatmul.bf16.gmra.mxu0 %v293
        %v309 = vpop.f32.mrf.mxu0
        %v310 = vadd.f32 0.0, %v309
        %v311 = vpop.f32.mrf.mxu0
        %312 = vdwg.mxu0
        %v313 = vand.u32 %v288, %v297
        %315 = vmatpush.bf16.msra.mxu0 0
        %316 = vmatpush.bf16.msra.mxu0 0
        %317 = vmatpush.bf16.msra.mxu0 0
        %318 = vmatpush.bf16.msra.mxu0 0
        %319 = vmatpush.bf16.msra.mxu0 0
        %320 = vmatpush.bf16.msra.mxu0 0
        %321 = vmatpush.bf16.msra.mxu0 0
        %322 = vmatpush.bf16.msra.mxu0 %v313
        %323 = vmatmul.bf16.gmra.mxu0 %v293
        %v324 = vpop.f32.mrf.mxu0
        %v325 = vadd.f32 0.0, %v324
        %v326 = vpop.f32.mrf.mxu0
        %327 = vdwg.mxu0
        %v330 = vrot.slane %v310, 7
        %v331 = vrot.slane %v325, 7
        %vm334 = vcmp.gt.f32.partialorder %v310, %v330
        %vm335 = vcmp.gt.f32.partialorder %v325, %v331
        %v336 = vsel %vm334, 1, 0
        %v337 = vsel %vm335, 1, 0
        %v338 = vsel %vm334, %v310, %v330
        %v339 = vsel %vm335, %v325, %v331
        %vm340 = vcmp.lt.f32.partialorder %v310, %v330
        %vm341 = vcmp.lt.f32.partialorder %v325, %v331
        %v342 = vsel %vm340, 1, 0
        %v343 = vsel %vm341, 1, 0
        %v344 = vsel %vm340, %v310, %v330
        %v345 = vsel %vm341, %v325, %v331
        %v348 = vrot.slane %v338, 7
        %v349 = vrot.slane %v339, 7
        %vm352 = vcmp.gt.f32.partialorder %v310, %v348
        %vm353 = vcmp.gt.f32.partialorder %v325, %v349
        %v354 = vrot.slane %v336, 7
        %v355 = vrot.slane %v337, 7
        %v356 = vsel %vm352, 2, %v354
        %v357 = vsel %vm353, 2, %v355
        %v358 = vsel %vm352, %v310, %v348
        %v359 = vsel %vm353, %v325, %v349
        %v362 = vrot.slane %v344, 7
        %v363 = vrot.slane %v345, 7
        %vm366 = vcmp.lt.f32.partialorder %v310, %v362
        %vm367 = vcmp.lt.f32.partialorder %v325, %v363
        %v368 = vrot.slane %v342, 7
        %v369 = vrot.slane %v343, 7
        %v370 = vsel %vm366, 2, %v368
        %v371 = vsel %vm367, 2, %v369
        %v372 = vsel %vm366, %v310, %v362
        %v373 = vsel %vm367, %v325, %v363
        %v376 = vrot.slane %v358, 7
        %v377 = vrot.slane %v359, 7
        %vm380 = vcmp.gt.f32.partialorder %v310, %v376
        %vm381 = vcmp.gt.f32.partialorder %v325, %v377
        %v382 = vrot.slane %v356, 7
        %v383 = vrot.slane %v357, 7
        %v384 = vsel %vm380, 3, %v382
        %v385 = vsel %vm381, 3, %v383
        %v386 = vsel %vm380, %v310, %v376
        %v387 = vsel %vm381, %v325, %v377
        %v390 = vrot.slane %v372, 7
        %v391 = vrot.slane %v373, 7
        %vm394 = vcmp.lt.f32.partialorder %v310, %v390
        %vm395 = vcmp.lt.f32.partialorder %v325, %v391
        %v396 = vrot.slane %v370, 7
        %v397 = vrot.slane %v371, 7
        %v398 = vsel %vm394, 3, %v396
        %v399 = vsel %vm395, 3, %v397
        %v400 = vsel %vm394, %v310, %v390
        %v401 = vsel %vm395, %v325, %v391
        %v404 = vrot.slane %v386, 7
        %v405 = vrot.slane %v387, 7
        %vm408 = vcmp.gt.f32.partialorder %v310, %v404
        %vm409 = vcmp.gt.f32.partialorder %v325, %v405
        %v410 = vrot.slane %v384, 7
        %v411 = vrot.slane %v385, 7
        %v412 = vsel %vm408, 4, %v410
        %v413 = vsel %vm409, 4, %v411
        %v414 = vsel %vm408, %v310, %v404
        %v415 = vsel %vm409, %v325, %v405
        %v418 = vrot.slane %v400, 7
        %v419 = vrot.slane %v401, 7
        %vm422 = vcmp.lt.f32.partialorder %v310, %v418
        %vm423 = vcmp.lt.f32.partialorder %v325, %v419
        %v424 = vrot.slane %v398, 7
        %v425 = vrot.slane %v399, 7
        %v426 = vsel %vm422, 4, %v424
        %v427 = vsel %vm423, 4, %v425
        %v428 = vsel %vm422, %v310, %v418
        %v429 = vsel %vm423, %v325, %v419
        %v432 = vrot.slane %v414, 7
        %v433 = vrot.slane %v415, 7
        %vm436 = vcmp.gt.f32.partialorder %v310, %v432
        %vm437 = vcmp.gt.f32.partialorder %v325, %v433
        %v438 = vrot.slane %v412, 7
        %v439 = vrot.slane %v413, 7
        %v440 = vsel %vm436, 5, %v438
        %v441 = vsel %vm437, 5, %v439
        %v442 = vsel %vm436, %v310, %v432
        %v443 = vsel %vm437, %v325, %v433
        %v446 = vrot.slane %v428, 7
        %v447 = vrot.slane %v429, 7
        %vm450 = vcmp.lt.f32.partialorder %v310, %v446
        %vm451 = vcmp.lt.f32.partialorder %v325, %v447
        %v452 = vrot.slane %v426, 7
        %v453 = vrot.slane %v427, 7
        %v454 = vsel %vm450, 5, %v452
        %v455 = vsel %vm451, 5, %v453
        %v456 = vsel %vm450, %v310, %v446
        %v457 = vsel %vm451, %v325, %v447
        %v460 = vrot.slane %v442, 7
        %v461 = vrot.slane %v443, 7
        %vm464 = vcmp.gt.f32.partialorder %v310, %v460
        %vm465 = vcmp.gt.f32.partialorder %v325, %v461
        %v466 = vrot.slane %v440, 7
        %v467 = vrot.slane %v441, 7
        %v468 = vsel %vm464, 6, %v466
        %v469 = vsel %vm465, 6, %v467
        %v470 = vsel %vm464, %v310, %v460
        %v471 = vsel %vm465, %v325, %v461
        %v474 = vrot.slane %v456, 7
        %v475 = vrot.slane %v457, 7
        %vm478 = vcmp.lt.f32.partialorder %v310, %v474
        %vm479 = vcmp.lt.f32.partialorder %v325, %v475
        %v480 = vrot.slane %v454, 7
        %v481 = vrot.slane %v455, 7
        %v482 = vsel %vm478, 6, %v480
        %v483 = vsel %vm479, 6, %v481
        %v484 = vsel %vm478, %v310, %v474
        %v485 = vsel %vm479, %v325, %v475
        %v488 = vrot.slane %v470, 7
        %v489 = vrot.slane %v471, 7
        %vm492 = vcmp.gt.f32.partialorder %v310, %v488
        %vm493 = vcmp.gt.f32.partialorder %v325, %v489
        %v494 = vrot.slane %v468, 7
        %v495 = vrot.slane %v469, 7
        %v496 = vsel %vm492, 7, %v494
        %v497 = vsel %vm493, 7, %v495
        %v498 = vsel %vm492, %v310, %v488
        %v499 = vsel %vm493, %v325, %v489
        %v502 = vrot.slane %v484, 7
        %v503 = vrot.slane %v485, 7
        %vm506 = vcmp.lt.f32.partialorder %v310, %v502
        %vm507 = vcmp.lt.f32.partialorder %v325, %v503
        %v508 = vrot.slane %v482, 7
        %v509 = vrot.slane %v483, 7
        %v510 = vsel %vm506, 7, %v508
        %v511 = vsel %vm507, 7, %v509
        %vm512 = vcmp.eq.s32.totalorder %v496, 0
        %vm513 = vcmp.eq.s32.totalorder %v497, 0
        %v514 = vsel %vm512, %v498, 0.0
        %v515 = vsel %vm513, %v499, 0.0
        %v518 = vrot.slane %v515, 7
        %vm521 = vcmask 261127
        %v522 = vsel %vm521, %v514, 0.0
        %523 = vadd.xlane.f32.xlu0 %v522
        %v524 = vpop.xlane.xlu0 %523
        %vm525 = vcmask 253952
        %v526 = vsel %vm525, %v518, 0.0
        %527 = vadd.xlane.f32.xlu0 %v526
        %v528 = vpop.xlane.xlu0 %527
        %vm529 = vcmp.eq.s32.totalorder %v510, 0
        %vm530 = vcmp.eq.s32.totalorder %v511, 0
        %v531 = vsel %vm529, 1.0, 0.0
        %v532 = vsel %vm530, 1.0, 0.0
        %v535 = vrot.slane %v532, 7
        %v538 = vsel %vm521, %v531, 0.0
        %539 = vadd.xlane.f32.xlu0 %v538
        %v540 = vpop.xlane.xlu0 %539
        %v541 = vsel %vm525, %v535, 0.0
        %542 = vadd.xlane.f32.xlu0 %v541
        %v543 = vpop.xlane.xlu0 %542
        %vm544 = vcmp.eq.s32.totalorder %v496, 1
        %vm545 = vcmp.eq.s32.totalorder %v497, 1
        %v546 = vsel %vm544, %v498, 0.0
        %v547 = vsel %vm545, %v499, 0.0
        %v550 = vrot.slane %v547, 7
        %v553 = vsel %vm521, %v546, 0.0
        %554 = vadd.xlane.f32.xlu0 %v553
        %v555 = vpop.xlane.xlu0 %554
        %v556 = vsel %vm525, %v550, 0.0
        %557 = vadd.xlane.f32.xlu0 %v556
        %v558 = vpop.xlane.xlu0 %557
        %vm559 = vcmp.eq.s32.totalorder %v510, 1
        %vm560 = vcmp.eq.s32.totalorder %v511, 1
        %v561 = vsel %vm559, 1.0, 0.0
        %v562 = vsel %vm560, 1.0, 0.0
        %v565 = vrot.slane %v562, 7
        %v568 = vsel %vm521, %v561, 0.0
        %569 = vadd.xlane.f32.xlu0 %v568
        %v570 = vpop.xlane.xlu0 %569
        %v571 = vsel %vm525, %v565, 0.0
        %572 = vadd.xlane.f32.xlu0 %v571
        %v573 = vpop.xlane.xlu0 %572
        %vm574 = vcmp.eq.s32.totalorder %v496, 2
        %vm575 = vcmp.eq.s32.totalorder %v497, 2
        %v576 = vsel %vm574, %v498, 0.0
        %v577 = vsel %vm575, %v499, 0.0
        %v580 = vrot.slane %v577, 7
        %v583 = vsel %vm521, %v576, 0.0
        %584 = vadd.xlane.f32.xlu0 %v583
        %v585 = vpop.xlane.xlu0 %584
        %v586 = vsel %vm525, %v580, 0.0
        %587 = vadd.xlane.f32.xlu0 %v586
        %v588 = vpop.xlane.xlu0 %587
        %vm589 = vcmp.eq.s32.totalorder %v510, 2
        %vm590 = vcmp.eq.s32.totalorder %v511, 2
        %v591 = vsel %vm589, 1.0, 0.0
        %v592 = vsel %vm590, 1.0, 0.0
        %v595 = vrot.slane %v592, 7
        %v598 = vsel %vm521, %v591, 0.0
        %599 = vadd.xlane.f32.xlu0 %v598
        %v600 = vpop.xlane.xlu0 %599
        %v601 = vsel %vm525, %v595, 0.0
        %602 = vadd.xlane.f32.xlu0 %v601
        %v603 = vpop.xlane.xlu0 %602
        %vm604 = vcmp.eq.s32.totalorder %v496, 3
        %vm605 = vcmp.eq.s32.totalorder %v497, 3
        %v606 = vsel %vm604, %v498, 0.0
        %v607 = vsel %vm605, %v499, 0.0
        %v610 = vrot.slane %v607, 7
        %v613 = vsel %vm521, %v606, 0.0
        %614 = vadd.xlane.f32.xlu0 %v613
        %v615 = vpop.xlane.xlu0 %614
        %v616 = vsel %vm525, %v610, 0.0
        %617 = vadd.xlane.f32.xlu0 %v616
        %v618 = vpop.xlane.xlu0 %617
        %vm619 = vcmp.eq.s32.totalorder %v510, 3
        %vm620 = vcmp.eq.s32.totalorder %v511, 3
        %v621 = vsel %vm619, 1.0, 0.0
        %v622 = vsel %vm620, 1.0, 0.0
        %v625 = vrot.slane %v622, 7
        %v628 = vsel %vm521, %v621, 0.0
        %629 = vadd.xlane.f32.xlu0 %v628
        %v630 = vpop.xlane.xlu0 %629
        %v631 = vsel %vm525, %v625, 0.0
        %632 = vadd.xlane.f32.xlu0 %v631
        %v633 = vpop.xlane.xlu0 %632
        %vm634 = vcmp.eq.s32.totalorder %v496, 4
        %vm635 = vcmp.eq.s32.totalorder %v497, 4
        %v636 = vsel %vm634, %v498, 0.0
        %v637 = vsel %vm635, %v499, 0.0
        %v640 = vrot.slane %v637, 7
        %v643 = vsel %vm521, %v636, 0.0
        %644 = vadd.xlane.f32.xlu0 %v643
        %v645 = vpop.xlane.xlu0 %644
        %v646 = vsel %vm525, %v640, 0.0
        %647 = vadd.xlane.f32.xlu0 %v646
        %v648 = vpop.xlane.xlu0 %647
        %vm649 = vcmp.eq.s32.totalorder %v510, 4
        %vm650 = vcmp.eq.s32.totalorder %v511, 4
        %v651 = vsel %vm649, 1.0, 0.0
        %v652 = vsel %vm650, 1.0, 0.0
        %v655 = vrot.slane %v652, 7
        %v658 = vsel %vm521, %v651, 0.0
        %659 = vadd.xlane.f32.xlu0 %v658
        %v660 = vpop.xlane.xlu0 %659
        %v661 = vsel %vm525, %v655, 0.0
        %662 = vadd.xlane.f32.xlu0 %v661
        %v663 = vpop.xlane.xlu0 %662
        %vm664 = vcmp.eq.s32.totalorder %v496, 5
        %vm665 = vcmp.eq.s32.totalorder %v497, 5
        %v666 = vsel %vm664, %v498, 0.0
        %v667 = vsel %vm665, %v499, 0.0
        %v670 = vrot.slane %v667, 7
        %v673 = vsel %vm521, %v666, 0.0
        %674 = vadd.xlane.f32.xlu0 %v673
        %v675 = vpop.xlane.xlu0 %674
        %v676 = vsel %vm525, %v670, 0.0
        %677 = vadd.xlane.f32.xlu0 %v676
        %v678 = vpop.xlane.xlu0 %677
        %vm679 = vcmp.eq.s32.totalorder %v510, 5
        %vm680 = vcmp.eq.s32.totalorder %v511, 5
        %v681 = vsel %vm679, 1.0, 0.0
        %v682 = vsel %vm680, 1.0, 0.0
        %v685 = vrot.slane %v682, 7
        %v688 = vsel %vm521, %v681, 0.0
        %689 = vadd.xlane.f32.xlu0 %v688
        %v690 = vpop.xlane.xlu0 %689
        %v691 = vsel %vm525, %v685, 0.0
        %692 = vadd.xlane.f32.xlu0 %v691
        %v693 = vpop.xlane.xlu0 %692
        %vm694 = vcmp.eq.s32.totalorder %v496, 6
        %vm695 = vcmp.eq.s32.totalorder %v497, 6
        %v696 = vsel %vm694, %v498, 0.0
        %v697 = vsel %vm695, %v499, 0.0
        %v700 = vrot.slane %v697, 7
        %v703 = vsel %vm521, %v696, 0.0
        %704 = vadd.xlane.f32.xlu0 %v703
        %v705 = vpop.xlane.xlu0 %704
        %v706 = vsel %vm525, %v700, 0.0
        %707 = vadd.xlane.f32.xlu0 %v706
        %v708 = vpop.xlane.xlu0 %707
        %vm709 = vcmp.eq.s32.totalorder %v510, 6
        %vm710 = vcmp.eq.s32.totalorder %v511, 6
        %v711 = vsel %vm709, 1.0, 0.0
        %v712 = vsel %vm710, 1.0, 0.0
        %v715 = vrot.slane %v712, 7
        %v718 = vsel %vm521, %v711, 0.0
        %719 = vadd.xlane.f32.xlu0 %v718
        %v720 = vpop.xlane.xlu0 %719
        %v721 = vsel %vm525, %v715, 0.0
        %722 = vadd.xlane.f32.xlu0 %v721
        %v723 = vpop.xlane.xlu0 %722
        %vm724 = vcmp.eq.s32.totalorder %v496, 7
        %vm725 = vcmp.eq.s32.totalorder %v497, 7
        %v726 = vsel %vm724, %v498, 0.0
        %v727 = vsel %vm725, %v499, 0.0
        %v730 = vrot.slane %v727, 7
        %v733 = vsel %vm521, %v726, 0.0
        %734 = vadd.xlane.f32.xlu0 %v733
        %v735 = vpop.xlane.xlu0 %734
        %v736 = vsel %vm525, %v730, 0.0
        %737 = vadd.xlane.f32.xlu0 %v736
        %v738 = vpop.xlane.xlu0 %737
        %vm739 = vcmp.eq.s32.totalorder %v510, 7
        %vm740 = vcmp.eq.s32.totalorder %v511, 7
        %v741 = vsel %vm739, 1.0, 0.0
        %v742 = vsel %vm740, 1.0, 0.0
        %v745 = vrot.slane %v742, 7
        %v748 = vsel %vm521, %v741, 0.0
        %749 = vadd.xlane.f32.xlu0 %v748
        %v750 = vpop.xlane.xlu0 %749
        %v751 = vsel %vm525, %v745, 0.0
        %752 = vadd.xlane.f32.xlu0 %v751
        %v753 = vpop.xlane.xlu0 %752
        %vm754 = vcmask 7168
        %v755 = vsel %vm754, %v524, %v555
        %v756 = vsel %vm754, %v528, %v558
        %vm757 = vcmask 15360
        %v758 = vsel %vm757, %v755, %v585
        %v759 = vsel %vm757, %v756, %v588
        %vm760 = vcmask 23552
        %v761 = vsel %vm760, %v758, %v615
        %v762 = vsel %vm760, %v759, %v618
        %vm763 = vcmask 31744
        %v764 = vsel %vm763, %v761, %v645
        %v765 = vsel %vm763, %v762, %v648
        %vm766 = vcmask 39936
        %v767 = vsel %vm766, %v764, %v675
        %v768 = vsel %vm766, %v765, %v678
        %vm769 = vcmask 48128
        %v770 = vsel %vm769, %v767, %v705
        %v771 = vsel %vm769, %v768, %v708
        %vm772 = vcmask 56320
        %v773 = vsel %vm772, %v770, %v735
        %v774 = vsel %vm772, %v771, %v738
        %777 = vst [vmem:[#allocation1] sm:$0xff] %v773
        %s778 = scalar_lea.vmem [#allocation1], 7
        %v779 = vld [vmem:[%s778] ss:$9 sm:$0xff]
        %780 = vst [vmem:[#allocation1] sm:$0xff] %v774
        %v781 = vld [vmem:[#allocation1] ss:$9 sm:$0xff]
        %vm784 = vcmask 57344
        %785 = vst.msk [vmem:[%s165] sm:$0x1] %vm784, %v779
        %786 = vst.msk [vmem:[%s165 + $0x2] sm:$0x1] %vm784, %v781
        %v787 = vsel %vm754, %v540, %v570
        %v788 = vsel %vm754, %v543, %v573
        %v789 = vsel %vm757, %v787, %v600
        %v790 = vsel %vm757, %v788, %v603
        %v791 = vsel %vm760, %v789, %v630
        %v792 = vsel %vm760, %v790, %v633
        %v793 = vsel %vm763, %v791, %v660
        %v794 = vsel %vm763, %v792, %v663
        %v795 = vsel %vm766, %v793, %v690
        %v796 = vsel %vm766, %v794, %v693
        %v797 = vsel %vm769, %v795, %v720
        %v798 = vsel %vm769, %v796, %v723
        %v799 = vsel %vm772, %v797, %v750
        %v800 = vsel %vm772, %v798, %v753
        %803 = vst [vmem:[#allocation1] sm:$0xff] %v799
        %s804 = scalar_lea.vmem [#allocation1], 7
        %v805 = vld [vmem:[%s804] ss:$9 sm:$0xff]
        %806 = vst [vmem:[#allocation1] sm:$0xff] %v800
        %v807 = vld [vmem:[#allocation1] ss:$9 sm:$0xff]
        %810 = vst.msk [vmem:[%s165 + $0x1] sm:$0x1] %vm784, %v805
        %811 = vst.msk [vmem:[%s165 + $0x3] sm:$0x1] %vm784, %v807
        %s812 = sand.u32 %s89, 1
        %s813 = sand.u32 %s89, 1
        %s814 = smul.addr %s813, 4
        %s815 = scalar_lea.vmem [#allocation2], %s814
        // Predicated region
        $region29: #{_lambda_.4} parent=27 // pred_check
          %p816 = pneg %p99
        $region30: #{_lambda_.4} parent=27 // pred_check_branch
          %818 = sbr.rel (%p816) target = $region32
        $region31: #{_lambda_.4} parent=27 // pred_region
          %s819 = smul.u32 2, %s17
          %s820 = smul.addr %s819, 4
          %s821 = sadd.s32 %s18, %s820
          %s822 = smul.addr %s821, 2
          %s823 = scalar_lea.vmem %s2, %s822
          // Predicated region
          $region33: #{_lambda_.4} parent=31 // pred_check
            _
          $region34: #{_lambda_.4} parent=31 // pred_check_branch
            %825 = sbr.rel (0) target = $region36
          $region35: #{_lambda_.4} parent=31 // pred_region
            // Predicated region
            $region37: #{_lambda_.4} parent=35 // pred_check
              _
            $region38: #{_lambda_.4} parent=35 // pred_check_branch
              %827 = sbr.rel target = $region40
            $region39: #{_lambda_.4} parent=35 // pred_region
              // Predicated region
              $region52: #{_lambda_.4} parent=39 // pred_check
                _
              $region53: #{_lambda_.4} parent=39 // pred_check_branch
                %845 = sbr.rel (0) target = $region55
              $region54: #{_lambda_.4} parent=39 // pred_region
                %s847 = ssub.s32 4, 1
                loop: start=0, step=1, limit=1
                $region56: #{_lambda_.4} parent=54 // loop_pre_header
                  _
                $region57: #{_lambda_.4} parent=54 // loop_header
                  %s849 = sphi 0, %s853
                  %p850 = scmp.ge.s32.totalorder %s849, 1
                  %s854 = sphi %s815, %s815
                  %s855 = sphi %s823, %s823
                $region58: #{_lambda_.4} parent=54 // loop_header_branch
                  %852 = sbr.rel (%p850) target = $region62
                $region59: #{_lambda_.4} parent=54 // loop_body
                  %v856 = vld [vmem:[%s854] sm:%s847]
                  %857 = vst [vmem:[%s855] sm:%s847] %v856
                  %v858 = vld [vmem:[%s854 + $0x2] sm:%s847]
                  %859 = vst [vmem:[%s855 + $0x8] sm:%s847] %v858
                $region60: #{_lambda_.4} parent=54 // loop_footer
                  %s853 = sadd.s32 1, %s849
                $region61: #{_lambda_.4} parent=54 // loop_footer_branch
                  %848 = sbr.rel target = $region57
                $region62: #{_lambda_.4} parent=54 // loop_exit
                  _
              $region55: #{_lambda_.4} parent=39 // pred_fallthru
                _
            $region40: #{_lambda_.4} parent=35 // pred_fallthru
              _
            // Predicated region
            $region41: #{_lambda_.4} parent=35 // pred_check
              _
            $region42: #{_lambda_.4} parent=35 // pred_check_branch
              %829 = sbr.rel (0) target = $region44
            $region43: #{_lambda_.4} parent=35 // pred_region
              %s831 = ssub.s32 4, 1
              loop: start=0, step=1, limit=1
              $region45: #{_lambda_.4} parent=43 // loop_pre_header
                _
              $region46: #{_lambda_.4} parent=43 // loop_header
                %s833 = sphi 0, %s837
                %p834 = scmp.ge.s32.totalorder %s833, 1
                %s838 = sphi %s815, %s815
                %s839 = sphi %s823, %s823
              $region47: #{_lambda_.4} parent=43 // loop_header_branch
                %836 = sbr.rel (%p834) target = $region51
              $region48: #{_lambda_.4} parent=43 // loop_body
                %v840 = vld [vmem:[%s838] sm:%s831]
                %841 = vst [vmem:[%s839] sm:%s831] %v840
                %v842 = vld [vmem:[%s838 + $0x2] sm:%s831]
                %843 = vst [vmem:[%s839 + $0x8] sm:%s831] %v842
              $region49: #{_lambda_.4} parent=43 // loop_footer
                %s837 = sadd.s32 1, %s833
              $region50: #{_lambda_.4} parent=43 // loop_footer_branch
                %832 = sbr.rel target = $region46
              $region51: #{_lambda_.4} parent=43 // loop_exit
                _
            $region44: #{_lambda_.4} parent=35 // pred_fallthru
              _
          $region36: #{_lambda_.4} parent=31 // pred_fallthru
            _
          %860 = vnop
        $region32: #{_lambda_.4} parent=27 // pred_fallthru
          _
      $region28: #{_lambda_.4} parent=5 // pred_fallthru
        _
      %p861 = scmp.le.s32.totalorder 2, %s8
      // Predicated region
      $region63: #{_lambda_.4} parent=5 // pred_check
        %p862 = pneg %p861
      $region64: #{_lambda_.4} parent=5 // pred_check_branch
        %864 = sbr.rel (%p862) target = $region66
      $region65: #{_lambda_.4} parent=5 // pred_region
        %s865 = ssub.s32 %s8, 2
        // Predicated region
        $region67: #{_lambda_.4} parent=65 // pred_check
          %p866 = pneg %p105
        $region68: #{_lambda_.4} parent=65 // pred_check_branch
          %868 = sbr.rel (%p866) target = $region70
        $region69: #{_lambda_.4} parent=65 // pred_region
          %s869 = sand.u32 %s90, 1
          %s870 = sand.u32 %s90, 1
          %s871 = smul.addr %s870, 4
          %s872 = scalar_lea.vmem [#allocation2], %s871
        $region70: #{_lambda_.4} parent=65 // pred_fallthru
          _
      $region66: #{_lambda_.4} parent=5 // pred_fallthru
        _
    $region6: #{_lambda_.4} parent=1 // loop_footer
      %s12 = sadd.s32 1, %s8
    $region7: #{_lambda_.4} parent=1 // loop_footer_branch
      %7 = sbr.rel target = $region3
    $region8: #{_lambda_.4} parent=1 // loop_exit
      _

</llo_original>
